<compile_context>
chip_gen: v6e
topology: v6e:2x2x1
jax: 0.10.0
libtpu: 0.0.40
codegen_flags: <defaults>
</compile_context>

<pallas_src>
import functools
import math
from dataclasses import dataclass

import jax
import jax.numpy as jnp
from jax.experimental import pallas as pl
from jax.experimental.pallas import tpu as pltpu


_LN_EPS = 1e-6
_GELU_C = 0.7978845608028654  # sqrt(2/pi)


# ----------------------------- in-kernel helpers ---------------------------- #

def _layer_norm(x, g, b):
    mu = jnp.mean(x, axis=-1, keepdims=True)
    xc = x - mu
    var = jnp.mean(xc * xc, axis=-1, keepdims=True)
    return xc * jax.lax.rsqrt(var + _LN_EPS) * g + b


def _gelu(x):
    return 0.5 * x * (1.0 + jnp.tanh(_GELU_C * (x + 0.044715 * x * x * x)))


def _softmax_lastdim(s):
    m = jnp.max(s, axis=-1, keepdims=True)
    e = jnp.exp(s - m)
    return e * pl.reciprocal(jnp.sum(e, axis=-1, keepdims=True), approx=True)


# ------------------------------- fused kernel ------------------------------- #

def _fused_ext_kernel(clss_ref,                                   # SMEM (B, N) int32
                      top_ref, maskd_ref, pe_ref, kbias_ref, mlane_ref,
                      ln1g_ref, ln1b_ref, wqkv_ref, bqkv_ref, wo_ref, bo_ref,
                      ln2g_ref, ln2b_ref, w1_ref, b1_ref, w2_ref, b2_ref,
                      fing_ref, finb_ref, sw_ref, sb_ref,
                      o_ref,
                      *, batch, n_sents, seq_len, num_heads, d_kv, num_layers):
    D = top_ref.shape[-1]
    inner = num_heads * d_kv
    bn = batch * n_sents

    # ---- fused CLS gather: exact iota-compare select + sublane reduce ----
    iota_t = jax.lax.broadcasted_iota(jnp.int32, (seq_len, 1), 0)      # (T, 1)
    rows = []
    for b in range(batch):
        top_b = top_ref[b]                                              # (T, D) f32
        for n in range(n_sents):
            idx = clss_ref[b, n]                                        # SMEM scalar
            sel = jnp.where(iota_t == idx, top_b, 0.0)                  # (T, D)
            rows.append(jnp.sum(sel, axis=0, keepdims=True))            # (1, D), exact
    x = jnp.concatenate(rows, axis=0)                                   # (B*N, D) f32
    # sents_vec * mask + positional embedding (PreSumm convention)
    x = x * maskd_ref[...] + jnp.tile(pe_ref[...], (batch, 1))

    key_bias = kbias_ref[...]                                           # (B*N, B*N)

    for li in range(num_layers):
        # ---- self-attention block (pre-LN skipped at layer 0) ----
        xn = x if li == 0 else _layer_norm(x, ln1g_ref[li], ln1b_ref[li])
        qkv = jnp.dot(xn.astype(jnp.bfloat16), wqkv_ref[li],
                      preferred_element_type=jnp.float32) + bqkv_ref[li]
        qkv = qkv.astype(jnp.bfloat16)           # single cast; Q scale pre-folded in W/b
        attn = jnp.zeros((bn, D), jnp.float32)
        for h in range(num_heads):
            q = qkv[:, h * d_kv:(h + 1) * d_kv]
            k = qkv[:, inner + h * d_kv:inner + (h + 1) * d_kv]
            v = qkv[:, 2 * inner + h * d_kv:2 * inner + (h + 1) * d_kv]
            s = jax.lax.dot_general(q, k, (((1,), (1,)), ((), ())),
                                    preferred_element_type=jnp.float32) + key_bias
            p = _softmax_lastdim(s)                                     # probs stay in VMEM
            ctx = jnp.dot(p.astype(jnp.bfloat16), v,
                          preferred_element_type=jnp.float32)
            # per-head accumulation of the output projection (no concat)
            attn = attn + jnp.dot(ctx.astype(jnp.bfloat16),
                                  wo_ref[li, h * d_kv:(h + 1) * d_kv, :],
                                  preferred_element_type=jnp.float32)
        x = x + attn + bo_ref[li]

        # ---- feed-forward block: LN -> W1 -> GELU -> W2 -> +res ----
        xn = _layer_norm(x, ln2g_ref[li], ln2b_ref[li])
        h1 = jnp.dot(xn.astype(jnp.bfloat16), w1_ref[li],
                     preferred_element_type=jnp.float32) + b1_ref[li]
        h2 = jnp.dot(_gelu(h1).astype(jnp.bfloat16), w2_ref[li],
                     preferred_element_type=jnp.float32) + b2_ref[li]
        x = x + h2

    # ---- scorer head: final LN -> Linear(D,1) -> sigmoid -> mask (lane-dense) ----
    xn = _layer_norm(x, fing_ref[...], finb_ref[...])
    logit = jax.lax.dot_general(sw_ref[...], xn, (((1,), (1,)), ((), ())),
                                preferred_element_type=jnp.float32) + sb_ref[...]
    o_ref[...] = jax.nn.sigmoid(logit) * mlane_ref[...]                 # (1, B*N)


# ------------------------------ model (glue) -------------------------------- #

@dataclass
class Cfg:
    hidden_size: int = 32     # config.hidden_size
    ext_ff_size: int = 64     # config.ext_ff_size
    ext_heads: int = 4        # ext_heads
    ext_layers: int = 2       # ext_layers


def sinusoidal_pos_emb(n, d):
    pos = jnp.arange(n, dtype=jnp.float32)[:, None]
    i = jnp.arange(0, d, 2, dtype=jnp.float32)[None, :]
    div = jnp.exp(-math.log(10000.0) * i / d)
    pe = jnp.zeros((n, d), jnp.float32)
    pe = pe.at[:, 0::2].set(jnp.sin(pos * div))
    pe = pe.at[:, 1::2].set(jnp.cos(pos * div))
    return pe


def init_params(key, cfg: Cfg):
    D, dff, H, L = cfg.hidden_size, cfg.ext_ff_size, cfg.ext_heads, cfg.ext_layers
    dk = D // H
    inner = H * dk
    scale = 1.0 / math.sqrt(dk)

    keys = jax.random.split(key, L + 1)

    def w(k, shape, s=0.1):
        return s * jax.random.normal(k, shape, jnp.float32)

    wqkv, wo, w1, w2 = [], [], [], []
    for li in range(L):
        k0, k1, k2, k3 = jax.random.split(keys[li], 4)
        wq = w(k0, (D, 3 * inner))
        wq = wq.at[:, :inner].multiply(scale)   # fold 1/sqrt(d_kv) into Q columns
        wqkv.append(wq)
        wo.append(w(k1, (inner, D)))
        w1.append(w(k2, (D, dff)))
        w2.append(w(k3, (dff, D)))

    # NOTE: when loading a real checkpoint, bqkv[:, :, :inner] must be scaled by
    # 1/sqrt(d_kv) as well (biases are zero here, so the fold is trivially correct).
    return {
        "ln1_g": jnp.ones((L, 1, D), jnp.float32), "ln1_b": jnp.zeros((L, 1, D), jnp.float32),
        "wqkv": jnp.stack(wqkv).astype(jnp.bfloat16),
        "bqkv": jnp.zeros((L, 1, 3 * inner), jnp.float32),
        "wo": jnp.stack(wo).astype(jnp.bfloat16), "bo": jnp.zeros((L, 1, D), jnp.float32),
        "ln2_g": jnp.ones((L, 1, D), jnp.float32), "ln2_b": jnp.zeros((L, 1, D), jnp.float32),
        "w1": jnp.stack(w1).astype(jnp.bfloat16), "b1": jnp.zeros((L, 1, dff), jnp.float32),
        "w2": jnp.stack(w2).astype(jnp.bfloat16), "b2": jnp.zeros((L, 1, D), jnp.float32),
        "fin_g": jnp.ones((1, D), jnp.float32), "fin_b": jnp.zeros((1, D), jnp.float32),
        "score_w": 0.1 * jax.random.normal(keys[-1], (1, D), jnp.float32),
        "score_b": jnp.zeros((1, 1), jnp.float32),
    }


def mt5_extractive_forward(params, cfg: Cfg, top_vec, clss, clss_mask):
    """top_vec: (B, T, D) f32, clss: (B, N) int32, clss_mask: (B, N) {0,1}."""
    B, T, D = top_vec.shape
    N = clss.shape[1]
    H, L, dff = cfg.ext_heads, cfg.ext_layers, cfg.ext_ff_size
    dk = D // H
    inner = H * dk
    BN = B * N

    mask_flat = clss_mask.reshape(BN).astype(jnp.float32)
    maskd = mask_flat.reshape(BN, 1)                       # per-row mask for sents_vec
    mlane = mask_flat.reshape(1, BN)                       # lane-dense final mask
    # combined additive bias: -1e9 on cross-batch keys and padded keys, 0 otherwise
    batch_id = jnp.arange(BN, dtype=jnp.int32) // N
    kbias = jnp.where((batch_id[:, None] == batch_id[None, :]) &
                      (mask_flat[None, :] > 0.5), 0.0, -1e9).astype(jnp.float32)
    pe = sinusoidal_pos_emb(N, D)

    kernel = functools.partial(_fused_ext_kernel, batch=B, n_sents=N, seq_len=T,
                               num_heads=H, d_kv=dk, num_layers=L)

    def fixed(nd):
        zeros = (0,) * nd
        return lambda i, *prefetch: zeros

    grid_spec = pltpu.PrefetchScalarGridSpec(
        num_scalar_prefetch=1,                 # clss -> SMEM
        grid=(1,),                             # whole batch in one grid step
        in_specs=[
            pl.BlockSpec((B, T, D), fixed(3)),             # top_vec
            pl.BlockSpec((BN, 1), fixed(2)),               # maskd
            pl.BlockSpec((N, D), fixed(2)),                # pos emb
            pl.BlockSpec((BN, BN), fixed(2)),              # key bias (block-diag + pad)
            pl.BlockSpec((1, BN), fixed(2)),               # final mask (lane-dense)
            pl.BlockSpec((L, 1, D), fixed(3)),             # ln1 gamma
            pl.BlockSpec((L, 1, D), fixed(3)),             # ln1 beta
            pl.BlockSpec((L, D, 3 * inner), fixed(3)),     # fused W_qkv (bf16, Q pre-scaled)
            pl.BlockSpec((L, 1, 3 * inner), fixed(3)),     # b_qkv
            pl.BlockSpec((L, inner, D), fixed(3)),         # W_o (bf16)
            pl.BlockSpec((L, 1, D), fixed(3)),             # b_o
            pl.BlockSpec((L, 1, D), fixed(3)),             # ln2 gamma
            pl.BlockSpec((L, 1, D), fixed(3)),             # ln2 beta
            pl.BlockSpec((L, D, dff), fixed(3)),           # W_1 (bf16)
            pl.BlockSpec((L, 1, dff), fixed(3)),           # b_1
            pl.BlockSpec((L, dff, D), fixed(3)),           # W_2 (bf16)
            pl.BlockSpec((L, 1, D), fixed(3)),             # b_2
            pl.BlockSpec((1, D), fixed(2)),                # final LN gamma
            pl.BlockSpec((1, D), fixed(2)),                # final LN beta
            pl.BlockSpec((1, D), fixed(2)),                # score weight
            pl.BlockSpec((1, 1), fixed(2)),                # score bias
        ],
        out_specs=pl.BlockSpec((1, BN), fixed(2)),
    )

    scores = pl.pallas_call(
        kernel,
        grid_spec=grid_spec,
        out_shape=jax.ShapeDtypeStruct((1, BN), jnp.float32),
        compiler_params=pltpu.CompilerParams(dimension_semantics=("arbitrary",)),
    )(clss.astype(jnp.int32), top_vec.astype(jnp.float32), maskd, pe, kbias, mlane,
      params["ln1_g"], params["ln1_b"], params["wqkv"], params["bqkv"],
      params["wo"], params["bo"], params["ln2_g"], params["ln2_b"],
      params["w1"], params["b1"], params["w2"], params["b2"],
      params["fin_g"], params["fin_b"], params["score_w"], params["score_b"])
    return scores.reshape(B, N)


# ---------------------------------- main ------------------------------------ #

if __name__ == "__main__":
    cfg = Cfg()
    B, T, N = 2, 16, 8

    key = jax.random.PRNGKey(0)
    kp, k1, k2 = jax.random.split(key, 3)
    params = init_params(kp, cfg)

    top_vec = jax.random.normal(k1, (B, T, cfg.hidden_size), jnp.float32)
    clss = jnp.sort(jax.random.randint(k2, (B, N), 0, T, dtype=jnp.int32), axis=1)
    clss_mask = jnp.ones((B, N), jnp.float32)

    fwd = jax.jit(lambda tv, cl, cm: mt5_extractive_forward(params, cfg, tv, cl, cm))
    sent_scores = fwd(top_vec, clss, clss_mask)
    jax.block_until_ready(sent_scores)
    assert sent_scores.shape == (B, N)
    print("KERNEL_OK")
</pallas_src>

<mosaic_0001>
module attributes {stable_mosaic.version = 11 : i64} {
  func.func @_fused_ext_kernel(%arg0: i32, %arg1: memref<2x8xi32, #tpu.memory_space<smem>>, %arg2: memref<2x16x32xf32, #tpu.memory_space<vmem>>, %arg3: memref<16x1xf32, #tpu.memory_space<vmem>>, %arg4: memref<8x32xf32, #tpu.memory_space<vmem>>, %arg5: memref<16x16xf32, #tpu.memory_space<vmem>>, %arg6: memref<1x16xf32, #tpu.memory_space<vmem>>, %arg7: memref<2x1x32xf32, #tpu.memory_space<vmem>>, %arg8: memref<2x1x32xf32, #tpu.memory_space<vmem>>, %arg9: memref<2x32x96xbf16, #tpu.memory_space<vmem>>, %arg10: memref<2x1x96xf32, #tpu.memory_space<vmem>>, %arg11: memref<2x32x32xbf16, #tpu.memory_space<vmem>>, %arg12: memref<2x1x32xf32, #tpu.memory_space<vmem>>, %arg13: memref<2x1x32xf32, #tpu.memory_space<vmem>>, %arg14: memref<2x1x32xf32, #tpu.memory_space<vmem>>, %arg15: memref<2x32x64xbf16, #tpu.memory_space<vmem>>, %arg16: memref<2x1x64xf32, #tpu.memory_space<vmem>>, %arg17: memref<2x64x32xbf16, #tpu.memory_space<vmem>>, %arg18: memref<2x1x32xf32, #tpu.memory_space<vmem>>, %arg19: memref<1x32xf32, #tpu.memory_space<vmem>>, %arg20: memref<1x32xf32, #tpu.memory_space<vmem>>, %arg21: memref<1x32xf32, #tpu.memory_space<vmem>>, %arg22: memref<1x1xf32, #tpu.memory_space<vmem>>, %arg23: memref<1x16xf32, #tpu.memory_space<vmem>>) attributes {dimension_semantics = [#tpu.dimension_semantics<arbitrary>], iteration_bounds = array<i64: 1>, scalar_prefetch = 1 : i64, scratch_operands = 0 : i64, tpu.core_type = #tpu.core_type<tc>, window_params = [{pipeline_mode = #tpu.pipeline_mode<synchronous>, transform_indices = @transform_0, window_bounds = array<i64: 2, 16, 32>}, {pipeline_mode = #tpu.pipeline_mode<synchronous>, transform_indices = @transform_1, window_bounds = array<i64: 16, 1>}, {pipeline_mode = #tpu.pipeline_mode<synchronous>, transform_indices = @transform_2, window_bounds = array<i64: 8, 32>}, {pipeline_mode = #tpu.pipeline_mode<synchronous>, transform_indices = @transform_3, window_bounds = array<i64: 16, 16>}, {pipeline_mode = #tpu.pipeline_mode<synchronous>, transform_indices = @transform_4, window_bounds = array<i64: 1, 16>}, {pipeline_mode = #tpu.pipeline_mode<synchronous>, transform_indices = @transform_5, window_bounds = array<i64: 2, 1, 32>}, {pipeline_mode = #tpu.pipeline_mode<synchronous>, transform_indices = @transform_6, window_bounds = array<i64: 2, 1, 32>}, {pipeline_mode = #tpu.pipeline_mode<synchronous>, transform_indices = @transform_7, window_bounds = array<i64: 2, 32, 96>}, {pipeline_mode = #tpu.pipeline_mode<synchronous>, transform_indices = @transform_8, window_bounds = array<i64: 2, 1, 96>}, {pipeline_mode = #tpu.pipeline_mode<synchronous>, transform_indices = @transform_9, window_bounds = array<i64: 2, 32, 32>}, {pipeline_mode = #tpu.pipeline_mode<synchronous>, transform_indices = @transform_10, window_bounds = array<i64: 2, 1, 32>}, {pipeline_mode = #tpu.pipeline_mode<synchronous>, transform_indices = @transform_11, window_bounds = array<i64: 2, 1, 32>}, {pipeline_mode = #tpu.pipeline_mode<synchronous>, transform_indices = @transform_12, window_bounds = array<i64: 2, 1, 32>}, {pipeline_mode = #tpu.pipeline_mode<synchronous>, transform_indices = @transform_13, window_bounds = array<i64: 2, 32, 64>}, {pipeline_mode = #tpu.pipeline_mode<synchronous>, transform_indices = @transform_14, window_bounds = array<i64: 2, 1, 64>}, {pipeline_mode = #tpu.pipeline_mode<synchronous>, transform_indices = @transform_15, window_bounds = array<i64: 2, 64, 32>}, {pipeline_mode = #tpu.pipeline_mode<synchronous>, transform_indices = @transform_16, window_bounds = array<i64: 2, 1, 32>}, {pipeline_mode = #tpu.pipeline_mode<synchronous>, transform_indices = @transform_17, window_bounds = array<i64: 1, 32>}, {pipeline_mode = #tpu.pipeline_mode<synchronous>, transform_indices = @transform_18, window_bounds = array<i64: 1, 32>}, {pipeline_mode = #tpu.pipeline_mode<synchronous>, transform_indices = @transform_19, window_bounds = array<i64: 1, 32>}, {pipeline_mode = #tpu.pipeline_mode<synchronous>, transform_indices = @transform_20, window_bounds = array<i64: 1, 1>}, {pipeline_mode = #tpu.pipeline_mode<synchronous>, transform_indices = @transform_21, window_bounds = array<i64: 1, 16>}]} {
    %0 = tpu.iota {dimensions = array<i32: 0>} : vector<16x1xi32>
    %c0 = arith.constant 0 : index
    %c0_0 = arith.constant 0 : index
    %c0_1 = arith.constant 0 : index
    %1 = vector.load %arg2[%c0, %c0_0, %c0_1] : memref<2x16x32xf32, #tpu.memory_space<vmem>>, vector<1x16x32xf32>
    %2 = vector.shape_cast %1 : vector<1x16x32xf32> to vector<16x32xf32>
    %c0_2 = arith.constant 0 : index
    %c0_3 = arith.constant 0 : index
    %3 = memref.load %arg1[%c0_2, %c0_3] : memref<2x8xi32, #tpu.memory_space<smem>>
    %4 = vector.broadcast %3 : i32 to vector<16x1xi32>
    %5 = arith.cmpi eq, %0, %4 : vector<16x1xi32>
    %cst = arith.constant 0.000000e+00 : f32
    %6 = vector.shape_cast %5 : vector<16x1xi1> to vector<16x1xi1>
    %7 = vector.broadcast %6 : vector<16x1xi1> to vector<16x32xi1>
    %8 = vector.broadcast %cst : f32 to vector<16x32xf32>
    %9 = arith.select %7, %2, %8 : vector<16x32xi1>, vector<16x32xf32>
    %cst_4 = arith.constant dense<0.000000e+00> : vector<32xf32>
    %10 = vector.multi_reduction <add>, %9, %cst_4 [0] : vector<16x32xf32> to vector<32xf32>
    %11 = vector.shape_cast %10 : vector<32xf32> to vector<1x32xf32>
    %c0_5 = arith.constant 0 : index
    %c1 = arith.constant 1 : index
    %12 = memref.load %arg1[%c0_5, %c1] : memref<2x8xi32, #tpu.memory_space<smem>>
    %13 = vector.broadcast %12 : i32 to vector<16x1xi32>
    %14 = arith.cmpi eq, %0, %13 : vector<16x1xi32>
    %cst_6 = arith.constant 0.000000e+00 : f32
    %15 = vector.shape_cast %14 : vector<16x1xi1> to vector<16x1xi1>
    %16 = vector.broadcast %15 : vector<16x1xi1> to vector<16x32xi1>
    %17 = vector.broadcast %cst_6 : f32 to vector<16x32xf32>
    %18 = arith.select %16, %2, %17 : vector<16x32xi1>, vector<16x32xf32>
    %cst_7 = arith.constant dense<0.000000e+00> : vector<32xf32>
    %19 = vector.multi_reduction <add>, %18, %cst_7 [0] : vector<16x32xf32> to vector<32xf32>
    %20 = vector.shape_cast %19 : vector<32xf32> to vector<1x32xf32>
    %c0_8 = arith.constant 0 : index
    %c2 = arith.constant 2 : index
    %21 = memref.load %arg1[%c0_8, %c2] : memref<2x8xi32, #tpu.memory_space<smem>>
    %22 = vector.broadcast %21 : i32 to vector<16x1xi32>
    %23 = arith.cmpi eq, %0, %22 : vector<16x1xi32>
    %cst_9 = arith.constant 0.000000e+00 : f32
    %24 = vector.shape_cast %23 : vector<16x1xi1> to vector<16x1xi1>
    %25 = vector.broadcast %24 : vector<16x1xi1> to vector<16x32xi1>
    %26 = vector.broadcast %cst_9 : f32 to vector<16x32xf32>
    %27 = arith.select %25, %2, %26 : vector<16x32xi1>, vector<16x32xf32>
    %cst_10 = arith.constant dense<0.000000e+00> : vector<32xf32>
    %28 = vector.multi_reduction <add>, %27, %cst_10 [0] : vector<16x32xf32> to vector<32xf32>
    %29 = vector.shape_cast %28 : vector<32xf32> to vector<1x32xf32>
    %c0_11 = arith.constant 0 : index
    %c3 = arith.constant 3 : index
    %30 = memref.load %arg1[%c0_11, %c3] : memref<2x8xi32, #tpu.memory_space<smem>>
    %31 = vector.broadcast %30 : i32 to vector<16x1xi32>
    %32 = arith.cmpi eq, %0, %31 : vector<16x1xi32>
    %cst_12 = arith.constant 0.000000e+00 : f32
    %33 = vector.shape_cast %32 : vector<16x1xi1> to vector<16x1xi1>
    %34 = vector.broadcast %33 : vector<16x1xi1> to vector<16x32xi1>
    %35 = vector.broadcast %cst_12 : f32 to vector<16x32xf32>
    %36 = arith.select %34, %2, %35 : vector<16x32xi1>, vector<16x32xf32>
    %cst_13 = arith.constant dense<0.000000e+00> : vector<32xf32>
    %37 = vector.multi_reduction <add>, %36, %cst_13 [0] : vector<16x32xf32> to vector<32xf32>
    %38 = vector.shape_cast %37 : vector<32xf32> to vector<1x32xf32>
    %c0_14 = arith.constant 0 : index
    %c4 = arith.constant 4 : index
    %39 = memref.load %arg1[%c0_14, %c4] : memref<2x8xi32, #tpu.memory_space<smem>>
    %40 = vector.broadcast %39 : i32 to vector<16x1xi32>
    %41 = arith.cmpi eq, %0, %40 : vector<16x1xi32>
    %cst_15 = arith.constant 0.000000e+00 : f32
    %42 = vector.shape_cast %41 : vector<16x1xi1> to vector<16x1xi1>
    %43 = vector.broadcast %42 : vector<16x1xi1> to vector<16x32xi1>
    %44 = vector.broadcast %cst_15 : f32 to vector<16x32xf32>
    %45 = arith.select %43, %2, %44 : vector<16x32xi1>, vector<16x32xf32>
    %cst_16 = arith.constant dense<0.000000e+00> : vector<32xf32>
    %46 = vector.multi_reduction <add>, %45, %cst_16 [0] : vector<16x32xf32> to vector<32xf32>
    %47 = vector.shape_cast %46 : vector<32xf32> to vector<1x32xf32>
    %c0_17 = arith.constant 0 : index
    %c5 = arith.constant 5 : index
    %48 = memref.load %arg1[%c0_17, %c5] : memref<2x8xi32, #tpu.memory_space<smem>>
    %49 = vector.broadcast %48 : i32 to vector<16x1xi32>
    %50 = arith.cmpi eq, %0, %49 : vector<16x1xi32>
    %cst_18 = arith.constant 0.000000e+00 : f32
    %51 = vector.shape_cast %50 : vector<16x1xi1> to vector<16x1xi1>
    %52 = vector.broadcast %51 : vector<16x1xi1> to vector<16x32xi1>
    %53 = vector.broadcast %cst_18 : f32 to vector<16x32xf32>
    %54 = arith.select %52, %2, %53 : vector<16x32xi1>, vector<16x32xf32>
    %cst_19 = arith.constant dense<0.000000e+00> : vector<32xf32>
    %55 = vector.multi_reduction <add>, %54, %cst_19 [0] : vector<16x32xf32> to vector<32xf32>
    %56 = vector.shape_cast %55 : vector<32xf32> to vector<1x32xf32>
    %c0_20 = arith.constant 0 : index
    %c6 = arith.constant 6 : index
    %57 = memref.load %arg1[%c0_20, %c6] : memref<2x8xi32, #tpu.memory_space<smem>>
    %58 = vector.broadcast %57 : i32 to vector<16x1xi32>
    %59 = arith.cmpi eq, %0, %58 : vector<16x1xi32>
    %cst_21 = arith.constant 0.000000e+00 : f32
    %60 = vector.shape_cast %59 : vector<16x1xi1> to vector<16x1xi1>
    %61 = vector.broadcast %60 : vector<16x1xi1> to vector<16x32xi1>
    %62 = vector.broadcast %cst_21 : f32 to vector<16x32xf32>
    %63 = arith.select %61, %2, %62 : vector<16x32xi1>, vector<16x32xf32>
    %cst_22 = arith.constant dense<0.000000e+00> : vector<32xf32>
    %64 = vector.multi_reduction <add>, %63, %cst_22 [0] : vector<16x32xf32> to vector<32xf32>
    %65 = vector.shape_cast %64 : vector<32xf32> to vector<1x32xf32>
    %c0_23 = arith.constant 0 : index
    %c7 = arith.constant 7 : index
    %66 = memref.load %arg1[%c0_23, %c7] : memref<2x8xi32, #tpu.memory_space<smem>>
    %67 = vector.broadcast %66 : i32 to vector<16x1xi32>
    %68 = arith.cmpi eq, %0, %67 : vector<16x1xi32>
    %cst_24 = arith.constant 0.000000e+00 : f32
    %69 = vector.shape_cast %68 : vector<16x1xi1> to vector<16x1xi1>
    %70 = vector.broadcast %69 : vector<16x1xi1> to vector<16x32xi1>
    %71 = vector.broadcast %cst_24 : f32 to vector<16x32xf32>
    %72 = arith.select %70, %2, %71 : vector<16x32xi1>, vector<16x32xf32>
    %cst_25 = arith.constant dense<0.000000e+00> : vector<32xf32>
    %73 = vector.multi_reduction <add>, %72, %cst_25 [0] : vector<16x32xf32> to vector<32xf32>
    %74 = vector.shape_cast %73 : vector<32xf32> to vector<1x32xf32>
    %c1_26 = arith.constant 1 : index
    %c0_27 = arith.constant 0 : index
    %c0_28 = arith.constant 0 : index
    %75 = vector.load %arg2[%c1_26, %c0_27, %c0_28] : memref<2x16x32xf32, #tpu.memory_space<vmem>>, vector<1x16x32xf32>
    %76 = vector.shape_cast %75 : vector<1x16x32xf32> to vector<16x32xf32>
    %c1_29 = arith.constant 1 : index
    %c0_30 = arith.constant 0 : index
    %77 = memref.load %arg1[%c1_29, %c0_30] : memref<2x8xi32, #tpu.memory_space<smem>>
    %78 = vector.broadcast %77 : i32 to vector<16x1xi32>
    %79 = arith.cmpi eq, %0, %78 : vector<16x1xi32>
    %cst_31 = arith.constant 0.000000e+00 : f32
    %80 = vector.shape_cast %79 : vector<16x1xi1> to vector<16x1xi1>
    %81 = vector.broadcast %80 : vector<16x1xi1> to vector<16x32xi1>
    %82 = vector.broadcast %cst_31 : f32 to vector<16x32xf32>
    %83 = arith.select %81, %76, %82 : vector<16x32xi1>, vector<16x32xf32>
    %cst_32 = arith.constant dense<0.000000e+00> : vector<32xf32>
    %84 = vector.multi_reduction <add>, %83, %cst_32 [0] : vector<16x32xf32> to vector<32xf32>
    %85 = vector.shape_cast %84 : vector<32xf32> to vector<1x32xf32>
    %c1_33 = arith.constant 1 : index
    %c1_34 = arith.constant 1 : index
    %86 = memref.load %arg1[%c1_33, %c1_34] : memref<2x8xi32, #tpu.memory_space<smem>>
    %87 = vector.broadcast %86 : i32 to vector<16x1xi32>
    %88 = arith.cmpi eq, %0, %87 : vector<16x1xi32>
    %cst_35 = arith.constant 0.000000e+00 : f32
    %89 = vector.shape_cast %88 : vector<16x1xi1> to vector<16x1xi1>
    %90 = vector.broadcast %89 : vector<16x1xi1> to vector<16x32xi1>
    %91 = vector.broadcast %cst_35 : f32 to vector<16x32xf32>
    %92 = arith.select %90, %76, %91 : vector<16x32xi1>, vector<16x32xf32>
    %cst_36 = arith.constant dense<0.000000e+00> : vector<32xf32>
    %93 = vector.multi_reduction <add>, %92, %cst_36 [0] : vector<16x32xf32> to vector<32xf32>
    %94 = vector.shape_cast %93 : vector<32xf32> to vector<1x32xf32>
    %c1_37 = arith.constant 1 : index
    %c2_38 = arith.constant 2 : index
    %95 = memref.load %arg1[%c1_37, %c2_38] : memref<2x8xi32, #tpu.memory_space<smem>>
    %96 = vector.broadcast %95 : i32 to vector<16x1xi32>
    %97 = arith.cmpi eq, %0, %96 : vector<16x1xi32>
    %cst_39 = arith.constant 0.000000e+00 : f32
    %98 = vector.shape_cast %97 : vector<16x1xi1> to vector<16x1xi1>
    %99 = vector.broadcast %98 : vector<16x1xi1> to vector<16x32xi1>
    %100 = vector.broadcast %cst_39 : f32 to vector<16x32xf32>
    %101 = arith.select %99, %76, %100 : vector<16x32xi1>, vector<16x32xf32>
    %cst_40 = arith.constant dense<0.000000e+00> : vector<32xf32>
    %102 = vector.multi_reduction <add>, %101, %cst_40 [0] : vector<16x32xf32> to vector<32xf32>
    %103 = vector.shape_cast %102 : vector<32xf32> to vector<1x32xf32>
    %c1_41 = arith.constant 1 : index
    %c3_42 = arith.constant 3 : index
    %104 = memref.load %arg1[%c1_41, %c3_42] : memref<2x8xi32, #tpu.memory_space<smem>>
    %105 = vector.broadcast %104 : i32 to vector<16x1xi32>
    %106 = arith.cmpi eq, %0, %105 : vector<16x1xi32>
    %cst_43 = arith.constant 0.000000e+00 : f32
    %107 = vector.shape_cast %106 : vector<16x1xi1> to vector<16x1xi1>
    %108 = vector.broadcast %107 : vector<16x1xi1> to vector<16x32xi1>
    %109 = vector.broadcast %cst_43 : f32 to vector<16x32xf32>
    %110 = arith.select %108, %76, %109 : vector<16x32xi1>, vector<16x32xf32>
    %cst_44 = arith.constant dense<0.000000e+00> : vector<32xf32>
    %111 = vector.multi_reduction <add>, %110, %cst_44 [0] : vector<16x32xf32> to vector<32xf32>
    %112 = vector.shape_cast %111 : vector<32xf32> to vector<1x32xf32>
    %c1_45 = arith.constant 1 : index
    %c4_46 = arith.constant 4 : index
    %113 = memref.load %arg1[%c1_45, %c4_46] : memref<2x8xi32, #tpu.memory_space<smem>>
    %114 = vector.broadcast %113 : i32 to vector<16x1xi32>
    %115 = arith.cmpi eq, %0, %114 : vector<16x1xi32>
    %cst_47 = arith.constant 0.000000e+00 : f32
    %116 = vector.shape_cast %115 : vector<16x1xi1> to vector<16x1xi1>
    %117 = vector.broadcast %116 : vector<16x1xi1> to vector<16x32xi1>
    %118 = vector.broadcast %cst_47 : f32 to vector<16x32xf32>
    %119 = arith.select %117, %76, %118 : vector<16x32xi1>, vector<16x32xf32>
    %cst_48 = arith.constant dense<0.000000e+00> : vector<32xf32>
    %120 = vector.multi_reduction <add>, %119, %cst_48 [0] : vector<16x32xf32> to vector<32xf32>
    %121 = vector.shape_cast %120 : vector<32xf32> to vector<1x32xf32>
    %c1_49 = arith.constant 1 : index
    %c5_50 = arith.constant 5 : index
    %122 = memref.load %arg1[%c1_49, %c5_50] : memref<2x8xi32, #tpu.memory_space<smem>>
    %123 = vector.broadcast %122 : i32 to vector<16x1xi32>
    %124 = arith.cmpi eq, %0, %123 : vector<16x1xi32>
    %cst_51 = arith.constant 0.000000e+00 : f32
    %125 = vector.shape_cast %124 : vector<16x1xi1> to vector<16x1xi1>
    %126 = vector.broadcast %125 : vector<16x1xi1> to vector<16x32xi1>
    %127 = vector.broadcast %cst_51 : f32 to vector<16x32xf32>
    %128 = arith.select %126, %76, %127 : vector<16x32xi1>, vector<16x32xf32>
    %cst_52 = arith.constant dense<0.000000e+00> : vector<32xf32>
    %129 = vector.multi_reduction <add>, %128, %cst_52 [0] : vector<16x32xf32> to vector<32xf32>
    %130 = vector.shape_cast %129 : vector<32xf32> to vector<1x32xf32>
    %c1_53 = arith.constant 1 : index
    %c6_54 = arith.constant 6 : index
    %131 = memref.load %arg1[%c1_53, %c6_54] : memref<2x8xi32, #tpu.memory_space<smem>>
    %132 = vector.broadcast %131 : i32 to vector<16x1xi32>
    %133 = arith.cmpi eq, %0, %132 : vector<16x1xi32>
    %cst_55 = arith.constant 0.000000e+00 : f32
    %134 = vector.shape_cast %133 : vector<16x1xi1> to vector<16x1xi1>
    %135 = vector.broadcast %134 : vector<16x1xi1> to vector<16x32xi1>
    %136 = vector.broadcast %cst_55 : f32 to vector<16x32xf32>
    %137 = arith.select %135, %76, %136 : vector<16x32xi1>, vector<16x32xf32>
    %cst_56 = arith.constant dense<0.000000e+00> : vector<32xf32>
    %138 = vector.multi_reduction <add>, %137, %cst_56 [0] : vector<16x32xf32> to vector<32xf32>
    %139 = vector.shape_cast %138 : vector<32xf32> to vector<1x32xf32>
    %c1_57 = arith.constant 1 : index
    %c7_58 = arith.constant 7 : index
    %140 = memref.load %arg1[%c1_57, %c7_58] : memref<2x8xi32, #tpu.memory_space<smem>>
    %141 = vector.broadcast %140 : i32 to vector<16x1xi32>
    %142 = arith.cmpi eq, %0, %141 : vector<16x1xi32>
    %cst_59 = arith.constant 0.000000e+00 : f32
    %143 = vector.shape_cast %142 : vector<16x1xi1> to vector<16x1xi1>
    %144 = vector.broadcast %143 : vector<16x1xi1> to vector<16x32xi1>
    %145 = vector.broadcast %cst_59 : f32 to vector<16x32xf32>
    %146 = arith.select %144, %76, %145 : vector<16x32xi1>, vector<16x32xf32>
    %cst_60 = arith.constant dense<0.000000e+00> : vector<32xf32>
    %147 = vector.multi_reduction <add>, %146, %cst_60 [0] : vector<16x32xf32> to vector<32xf32>
    %148 = vector.shape_cast %147 : vector<32xf32> to vector<1x32xf32>
    %149 = tpu.concatenate %11, %20, %29, %38, %47, %56, %65, %74, %85, %94, %103, %112, %121, %130, %139, %148 in 0 : vector<1x32xf32>, vector<1x32xf32>, vector<1x32xf32>, vector<1x32xf32>, vector<1x32xf32>, vector<1x32xf32>, vector<1x32xf32>, vector<1x32xf32>, vector<1x32xf32>, vector<1x32xf32>, vector<1x32xf32>, vector<1x32xf32>, vector<1x32xf32>, vector<1x32xf32>, vector<1x32xf32>, vector<1x32xf32> -> vector<16x32xf32>
    %c0_61 = arith.constant 0 : index
    %c0_62 = arith.constant 0 : index
    %150 = vector.load %arg3[%c0_61, %c0_62] : memref<16x1xf32, #tpu.memory_space<vmem>>, vector<16x1xf32>
    %151 = vector.broadcast %150 : vector<16x1xf32> to vector<16x32xf32>
    %152 = arith.mulf %149, %151 : vector<16x32xf32>
    %c0_63 = arith.constant 0 : index
    %c0_64 = arith.constant 0 : index
    %153 = vector.load %arg4[%c0_63, %c0_64] : memref<8x32xf32, #tpu.memory_space<vmem>>, vector<8x32xf32>
    %154 = tpu.concatenate %153, %153 in 0 : vector<8x32xf32>, vector<8x32xf32> -> vector<16x32xf32>
    %155 = arith.addf %152, %154 : vector<16x32xf32>
    %c0_65 = arith.constant 0 : index
    %c0_66 = arith.constant 0 : index
    %156 = vector.load %arg5[%c0_65, %c0_66] : memref<16x16xf32, #tpu.memory_space<vmem>>, vector<16x16xf32>
    %157 = arith.truncf %155 : vector<16x32xf32> to vector<16x32xbf16>
    %c0_67 = arith.constant 0 : index
    %c0_68 = arith.constant 0 : index
    %c0_69 = arith.constant 0 : index
    %158 = vector.load %arg9[%c0_67, %c0_68, %c0_69] : memref<2x32x96xbf16, #tpu.memory_space<vmem>>, vector<1x32x96xbf16>
    %159 = vector.shape_cast %158 : vector<1x32x96xbf16> to vector<32x96xbf16>
    %cst_70 = arith.constant dense<0.000000e+00> : vector<16x96xf32>
    %160 = tpu.matmul %157, %159, %cst_70 {dimension_numbers = #tpu.dot_dimension_numbers<[1], [0], [0], [1], [0, 0, 1, 1], [], []>} : vector<16x32xbf16>, vector<32x96xbf16>, vector<16x96xf32> -> vector<16x96xf32>
    %c0_71 = arith.constant 0 : index
    %c0_72 = arith.constant 0 : index
    %c0_73 = arith.constant 0 : index
    %161 = vector.load %arg10[%c0_71, %c0_72, %c0_73] : memref<2x1x96xf32, #tpu.memory_space<vmem>>, vector<1x1x96xf32>
    %162 = vector.shape_cast %161 : vector<1x1x96xf32> to vector<1x96xf32>
    %163 = vector.broadcast %162 : vector<1x96xf32> to vector<16x96xf32>
    %164 = arith.addf %160, %163 : vector<16x96xf32>
    %165 = arith.truncf %164 : vector<16x96xf32> to vector<16x96xbf16>
    %cst_74 = arith.constant 0.000000e+00 : f32
    %166 = vector.broadcast %cst_74 : f32 to vector<16x32xf32>
    %167 = vector.extract_strided_slice %165 {offsets = [0, 0], sizes = [16, 8], strides = [1, 1]} : vector<16x96xbf16> to vector<16x8xbf16>
    %168 = vector.extract_strided_slice %165 {offsets = [0, 32], sizes = [16, 8], strides = [1, 1]} : vector<16x96xbf16> to vector<16x8xbf16>
    %169 = vector.extract_strided_slice %165 {offsets = [0, 64], sizes = [16, 8], strides = [1, 1]} : vector<16x96xbf16> to vector<16x8xbf16>
    %cst_75 = arith.constant dense<0.000000e+00> : vector<16x16xf32>
    %170 = tpu.matmul %167, %168, %cst_75 {dimension_numbers = #tpu.dot_dimension_numbers<[1], [1], [0], [0], [0, 0, 1, 0], [], []>} : vector<16x8xbf16>, vector<16x8xbf16>, vector<16x16xf32> -> vector<16x16xf32>
    %171 = arith.addf %170, %156 : vector<16x16xf32>
    %cst_76 = arith.constant dense<0xFF800000> : vector<16xf32>
    %172 = vector.multi_reduction <maximumf>, %171, %cst_76 [1] : vector<16x16xf32> to vector<16xf32>
    %173 = vector.shape_cast %172 : vector<16xf32> to vector<16x1xf32>
    %174 = vector.broadcast %173 : vector<16x1xf32> to vector<16x16xf32>
    %175 = arith.subf %171, %174 : vector<16x16xf32>
    %176 = math.exp %175 : vector<16x16xf32>
    %cst_77 = arith.constant dense<0.000000e+00> : vector<16xf32>
    %177 = vector.multi_reduction <add>, %176, %cst_77 [1] : vector<16x16xf32> to vector<16xf32>
    %178 = vector.shape_cast %177 : vector<16xf32> to vector<16x1xf32>
    %179 = tpu.reciprocal %178 {approx = true} : vector<16x1xf32> -> vector<16x1xf32>
    %180 = vector.broadcast %179 : vector<16x1xf32> to vector<16x16xf32>
    %181 = arith.mulf %176, %180 : vector<16x16xf32>
    %182 = arith.truncf %181 : vector<16x16xf32> to vector<16x16xbf16>
    %cst_78 = arith.constant dense<0.000000e+00> : vector<16x8xf32>
    %183 = tpu.matmul %182, %169, %cst_78 {dimension_numbers = #tpu.dot_dimension_numbers<[1], [0], [0], [1], [0, 0, 1, 1], [], []>} : vector<16x16xbf16>, vector<16x8xbf16>, vector<16x8xf32> -> vector<16x8xf32>
    %184 = arith.truncf %183 : vector<16x8xf32> to vector<16x8xbf16>
    %c0_79 = arith.constant 0 : index
    %c0_80 = arith.constant 0 : index
    %c0_81 = arith.constant 0 : index
    %185 = vector.load %arg11[%c0_79, %c0_80, %c0_81] : memref<2x32x32xbf16, #tpu.memory_space<vmem>>, vector<1x8x32xbf16>
    %186 = vector.shape_cast %185 : vector<1x8x32xbf16> to vector<8x32xbf16>
    %cst_82 = arith.constant dense<0.000000e+00> : vector<16x32xf32>
    %187 = tpu.matmul %184, %186, %cst_82 {dimension_numbers = #tpu.dot_dimension_numbers<[1], [0], [0], [1], [0, 0, 1, 1], [], []>} : vector<16x8xbf16>, vector<8x32xbf16>, vector<16x32xf32> -> vector<16x32xf32>
    %188 = arith.addf %166, %187 : vector<16x32xf32>
    %189 = vector.extract_strided_slice %165 {offsets = [0, 8], sizes = [16, 8], strides = [1, 1]} : vector<16x96xbf16> to vector<16x8xbf16>
    %190 = vector.extract_strided_slice %165 {offsets = [0, 40], sizes = [16, 8], strides = [1, 1]} : vector<16x96xbf16> to vector<16x8xbf16>
    %191 = vector.extract_strided_slice %165 {offsets = [0, 72], sizes = [16, 8], strides = [1, 1]} : vector<16x96xbf16> to vector<16x8xbf16>
    %cst_83 = arith.constant dense<0.000000e+00> : vector<16x16xf32>
    %192 = tpu.matmul %189, %190, %cst_83 {dimension_numbers = #tpu.dot_dimension_numbers<[1], [1], [0], [0], [0, 0, 1, 0], [], []>} : vector<16x8xbf16>, vector<16x8xbf16>, vector<16x16xf32> -> vector<16x16xf32>
    %193 = arith.addf %192, %156 : vector<16x16xf32>
    %cst_84 = arith.constant dense<0xFF800000> : vector<16xf32>
    %194 = vector.multi_reduction <maximumf>, %193, %cst_84 [1] : vector<16x16xf32> to vector<16xf32>
    %195 = vector.shape_cast %194 : vector<16xf32> to vector<16x1xf32>
    %196 = vector.broadcast %195 : vector<16x1xf32> to vector<16x16xf32>
    %197 = arith.subf %193, %196 : vector<16x16xf32>
    %198 = math.exp %197 : vector<16x16xf32>
    %cst_85 = arith.constant dense<0.000000e+00> : vector<16xf32>
    %199 = vector.multi_reduction <add>, %198, %cst_85 [1] : vector<16x16xf32> to vector<16xf32>
    %200 = vector.shape_cast %199 : vector<16xf32> to vector<16x1xf32>
    %201 = tpu.reciprocal %200 {approx = true} : vector<16x1xf32> -> vector<16x1xf32>
    %202 = vector.broadcast %201 : vector<16x1xf32> to vector<16x16xf32>
    %203 = arith.mulf %198, %202 : vector<16x16xf32>
    %204 = arith.truncf %203 : vector<16x16xf32> to vector<16x16xbf16>
    %cst_86 = arith.constant dense<0.000000e+00> : vector<16x8xf32>
    %205 = tpu.matmul %204, %191, %cst_86 {dimension_numbers = #tpu.dot_dimension_numbers<[1], [0], [0], [1], [0, 0, 1, 1], [], []>} : vector<16x16xbf16>, vector<16x8xbf16>, vector<16x8xf32> -> vector<16x8xf32>
    %206 = arith.truncf %205 : vector<16x8xf32> to vector<16x8xbf16>
    %c0_87 = arith.constant 0 : index
    %c8 = arith.constant 8 : index
    %c0_88 = arith.constant 0 : index
    %207 = vector.load %arg11[%c0_87, %c8, %c0_88] : memref<2x32x32xbf16, #tpu.memory_space<vmem>>, vector<1x8x32xbf16>
    %208 = vector.shape_cast %207 : vector<1x8x32xbf16> to vector<8x32xbf16>
    %cst_89 = arith.constant dense<0.000000e+00> : vector<16x32xf32>
    %209 = tpu.matmul %206, %208, %cst_89 {dimension_numbers = #tpu.dot_dimension_numbers<[1], [0], [0], [1], [0, 0, 1, 1], [], []>} : vector<16x8xbf16>, vector<8x32xbf16>, vector<16x32xf32> -> vector<16x32xf32>
    %210 = arith.addf %188, %209 : vector<16x32xf32>
    %211 = vector.extract_strided_slice %165 {offsets = [0, 16], sizes = [16, 8], strides = [1, 1]} : vector<16x96xbf16> to vector<16x8xbf16>
    %212 = vector.extract_strided_slice %165 {offsets = [0, 48], sizes = [16, 8], strides = [1, 1]} : vector<16x96xbf16> to vector<16x8xbf16>
    %213 = vector.extract_strided_slice %165 {offsets = [0, 80], sizes = [16, 8], strides = [1, 1]} : vector<16x96xbf16> to vector<16x8xbf16>
    %cst_90 = arith.constant dense<0.000000e+00> : vector<16x16xf32>
    %214 = tpu.matmul %211, %212, %cst_90 {dimension_numbers = #tpu.dot_dimension_numbers<[1], [1], [0], [0], [0, 0, 1, 0], [], []>} : vector<16x8xbf16>, vector<16x8xbf16>, vector<16x16xf32> -> vector<16x16xf32>
    %215 = arith.addf %214, %156 : vector<16x16xf32>
    %cst_91 = arith.constant dense<0xFF800000> : vector<16xf32>
    %216 = vector.multi_reduction <maximumf>, %215, %cst_91 [1] : vector<16x16xf32> to vector<16xf32>
    %217 = vector.shape_cast %216 : vector<16xf32> to vector<16x1xf32>
    %218 = vector.broadcast %217 : vector<16x1xf32> to vector<16x16xf32>
    %219 = arith.subf %215, %218 : vector<16x16xf32>
    %220 = math.exp %219 : vector<16x16xf32>
    %cst_92 = arith.constant dense<0.000000e+00> : vector<16xf32>
    %221 = vector.multi_reduction <add>, %220, %cst_92 [1] : vector<16x16xf32> to vector<16xf32>
    %222 = vector.shape_cast %221 : vector<16xf32> to vector<16x1xf32>
    %223 = tpu.reciprocal %222 {approx = true} : vector<16x1xf32> -> vector<16x1xf32>
    %224 = vector.broadcast %223 : vector<16x1xf32> to vector<16x16xf32>
    %225 = arith.mulf %220, %224 : vector<16x16xf32>
    %226 = arith.truncf %225 : vector<16x16xf32> to vector<16x16xbf16>
    %cst_93 = arith.constant dense<0.000000e+00> : vector<16x8xf32>
    %227 = tpu.matmul %226, %213, %cst_93 {dimension_numbers = #tpu.dot_dimension_numbers<[1], [0], [0], [1], [0, 0, 1, 1], [], []>} : vector<16x16xbf16>, vector<16x8xbf16>, vector<16x8xf32> -> vector<16x8xf32>
    %228 = arith.truncf %227 : vector<16x8xf32> to vector<16x8xbf16>
    %c0_94 = arith.constant 0 : index
    %c16 = arith.constant 16 : index
    %c0_95 = arith.constant 0 : index
    %229 = vector.load %arg11[%c0_94, %c16, %c0_95] : memref<2x32x32xbf16, #tpu.memory_space<vmem>>, vector<1x8x32xbf16>
    %230 = vector.shape_cast %229 : vector<1x8x32xbf16> to vector<8x32xbf16>
    %cst_96 = arith.constant dense<0.000000e+00> : vector<16x32xf32>
    %231 = tpu.matmul %228, %230, %cst_96 {dimension_numbers = #tpu.dot_dimension_numbers<[1], [0], [0], [1], [0, 0, 1, 1], [], []>} : vector<16x8xbf16>, vector<8x32xbf16>, vector<16x32xf32> -> vector<16x32xf32>
    %232 = arith.addf %210, %231 : vector<16x32xf32>
    %233 = vector.extract_strided_slice %165 {offsets = [0, 24], sizes = [16, 8], strides = [1, 1]} : vector<16x96xbf16> to vector<16x8xbf16>
    %234 = vector.extract_strided_slice %165 {offsets = [0, 56], sizes = [16, 8], strides = [1, 1]} : vector<16x96xbf16> to vector<16x8xbf16>
    %235 = vector.extract_strided_slice %165 {offsets = [0, 88], sizes = [16, 8], strides = [1, 1]} : vector<16x96xbf16> to vector<16x8xbf16>
    %cst_97 = arith.constant dense<0.000000e+00> : vector<16x16xf32>
    %236 = tpu.matmul %233, %234, %cst_97 {dimension_numbers = #tpu.dot_dimension_numbers<[1], [1], [0], [0], [0, 0, 1, 0], [], []>} : vector<16x8xbf16>, vector<16x8xbf16>, vector<16x16xf32> -> vector<16x16xf32>
    %237 = arith.addf %236, %156 : vector<16x16xf32>
    %cst_98 = arith.constant dense<0xFF800000> : vector<16xf32>
    %238 = vector.multi_reduction <maximumf>, %237, %cst_98 [1] : vector<16x16xf32> to vector<16xf32>
    %239 = vector.shape_cast %238 : vector<16xf32> to vector<16x1xf32>
    %240 = vector.broadcast %239 : vector<16x1xf32> to vector<16x16xf32>
    %241 = arith.subf %237, %240 : vector<16x16xf32>
    %242 = math.exp %241 : vector<16x16xf32>
    %cst_99 = arith.constant dense<0.000000e+00> : vector<16xf32>
    %243 = vector.multi_reduction <add>, %242, %cst_99 [1] : vector<16x16xf32> to vector<16xf32>
    %244 = vector.shape_cast %243 : vector<16xf32> to vector<16x1xf32>
    %245 = tpu.reciprocal %244 {approx = true} : vector<16x1xf32> -> vector<16x1xf32>
    %246 = vector.broadcast %245 : vector<16x1xf32> to vector<16x16xf32>
    %247 = arith.mulf %242, %246 : vector<16x16xf32>
    %248 = arith.truncf %247 : vector<16x16xf32> to vector<16x16xbf16>
    %cst_100 = arith.constant dense<0.000000e+00> : vector<16x8xf32>
    %249 = tpu.matmul %248, %235, %cst_100 {dimension_numbers = #tpu.dot_dimension_numbers<[1], [0], [0], [1], [0, 0, 1, 1], [], []>} : vector<16x16xbf16>, vector<16x8xbf16>, vector<16x8xf32> -> vector<16x8xf32>
    %250 = arith.truncf %249 : vector<16x8xf32> to vector<16x8xbf16>
    %c0_101 = arith.constant 0 : index
    %c24 = arith.constant 24 : index
    %c0_102 = arith.constant 0 : index
    %251 = vector.load %arg11[%c0_101, %c24, %c0_102] : memref<2x32x32xbf16, #tpu.memory_space<vmem>>, vector<1x8x32xbf16>
    %252 = vector.shape_cast %251 : vector<1x8x32xbf16> to vector<8x32xbf16>
    %cst_103 = arith.constant dense<0.000000e+00> : vector<16x32xf32>
    %253 = tpu.matmul %250, %252, %cst_103 {dimension_numbers = #tpu.dot_dimension_numbers<[1], [0], [0], [1], [0, 0, 1, 1], [], []>} : vector<16x8xbf16>, vector<8x32xbf16>, vector<16x32xf32> -> vector<16x32xf32>
    %254 = arith.addf %232, %253 : vector<16x32xf32>
    %255 = arith.addf %155, %254 : vector<16x32xf32>
    %c0_104 = arith.constant 0 : index
    %c0_105 = arith.constant 0 : index
    %c0_106 = arith.constant 0 : index
    %256 = vector.load %arg12[%c0_104, %c0_105, %c0_106] : memref<2x1x32xf32, #tpu.memory_space<vmem>>, vector<1x1x32xf32>
    %257 = vector.shape_cast %256 : vector<1x1x32xf32> to vector<1x32xf32>
    %258 = vector.broadcast %257 : vector<1x32xf32> to vector<16x32xf32>
    %259 = arith.addf %255, %258 : vector<16x32xf32>
    %c0_107 = arith.constant 0 : index
    %c0_108 = arith.constant 0 : index
    %c0_109 = arith.constant 0 : index
    %260 = vector.load %arg13[%c0_107, %c0_108, %c0_109] : memref<2x1x32xf32, #tpu.memory_space<vmem>>, vector<1x1x32xf32>
    %261 = vector.shape_cast %260 : vector<1x1x32xf32> to vector<1x32xf32>
    %c0_110 = arith.constant 0 : index
    %c0_111 = arith.constant 0 : index
    %c0_112 = arith.constant 0 : index
    %262 = vector.load %arg14[%c0_110, %c0_111, %c0_112] : memref<2x1x32xf32, #tpu.memory_space<vmem>>, vector<1x1x32xf32>
    %263 = vector.shape_cast %262 : vector<1x1x32xf32> to vector<1x32xf32>
    %cst_113 = arith.constant dense<0.000000e+00> : vector<16xf32>
    %264 = vector.multi_reduction <add>, %259, %cst_113 [1] : vector<16x32xf32> to vector<16xf32>
    %265 = vector.shape_cast %264 : vector<16xf32> to vector<16x1xf32>
    %cst_114 = arith.constant 3.200000e+01 : f32
    %266 = vector.broadcast %cst_114 : f32 to vector<16x1xf32>
    %267 = arith.divf %265, %266 : vector<16x1xf32>
    %268 = vector.broadcast %267 : vector<16x1xf32> to vector<16x32xf32>
    %269 = arith.subf %259, %268 : vector<16x32xf32>
    %270 = arith.mulf %269, %269 : vector<16x32xf32>
    %cst_115 = arith.constant dense<0.000000e+00> : vector<16xf32>
    %271 = vector.multi_reduction <add>, %270, %cst_115 [1] : vector<16x32xf32> to vector<16xf32>
    %272 = vector.shape_cast %271 : vector<16xf32> to vector<16x1xf32>
    %cst_116 = arith.constant 3.200000e+01 : f32
    %273 = vector.broadcast %cst_116 : f32 to vector<16x1xf32>
    %274 = arith.divf %272, %273 : vector<16x1xf32>
    %cst_117 = arith.constant 9.99999997E-7 : f32
    %275 = vector.broadcast %cst_117 : f32 to vector<16x1xf32>
    %276 = arith.addf %274, %275 : vector<16x1xf32>
    %277 = math.rsqrt %276 : vector<16x1xf32>
    %278 = vector.broadcast %277 : vector<16x1xf32> to vector<16x32xf32>
    %279 = arith.mulf %269, %278 : vector<16x32xf32>
    %280 = vector.broadcast %261 : vector<1x32xf32> to vector<16x32xf32>
    %281 = arith.mulf %279, %280 : vector<16x32xf32>
    %282 = vector.broadcast %263 : vector<1x32xf32> to vector<16x32xf32>
    %283 = arith.addf %281, %282 : vector<16x32xf32>
    %284 = arith.truncf %283 : vector<16x32xf32> to vector<16x32xbf16>
    %c0_118 = arith.constant 0 : index
    %c0_119 = arith.constant 0 : index
    %c0_120 = arith.constant 0 : index
    %285 = vector.load %arg15[%c0_118, %c0_119, %c0_120] : memref<2x32x64xbf16, #tpu.memory_space<vmem>>, vector<1x32x64xbf16>
    %286 = vector.shape_cast %285 : vector<1x32x64xbf16> to vector<32x64xbf16>
    %cst_121 = arith.constant dense<0.000000e+00> : vector<16x64xf32>
    %287 = tpu.matmul %284, %286, %cst_121 {dimension_numbers = #tpu.dot_dimension_numbers<[1], [0], [0], [1], [0, 0, 1, 1], [], []>} : vector<16x32xbf16>, vector<32x64xbf16>, vector<16x64xf32> -> vector<16x64xf32>
    %c0_122 = arith.constant 0 : index
    %c0_123 = arith.constant 0 : index
    %c0_124 = arith.constant 0 : index
    %288 = vector.load %arg16[%c0_122, %c0_123, %c0_124] : memref<2x1x64xf32, #tpu.memory_space<vmem>>, vector<1x1x64xf32>
    %289 = vector.shape_cast %288 : vector<1x1x64xf32> to vector<1x64xf32>
    %290 = vector.broadcast %289 : vector<1x64xf32> to vector<16x64xf32>
    %291 = arith.addf %287, %290 : vector<16x64xf32>
    %cst_125 = arith.constant 5.000000e-01 : f32
    %292 = vector.broadcast %cst_125 : f32 to vector<16x64xf32>
    %293 = arith.mulf %292, %291 : vector<16x64xf32>
    %cst_126 = arith.constant 4.471500e-02 : f32
    %294 = vector.broadcast %cst_126 : f32 to vector<16x64xf32>
    %295 = arith.mulf %294, %291 : vector<16x64xf32>
    %296 = arith.mulf %295, %291 : vector<16x64xf32>
    %297 = arith.mulf %296, %291 : vector<16x64xf32>
    %298 = arith.addf %291, %297 : vector<16x64xf32>
    %cst_127 = arith.constant 0.797884583 : f32
    %299 = vector.broadcast %cst_127 : f32 to vector<16x64xf32>
    %300 = arith.mulf %299, %298 : vector<16x64xf32>
    %301 = math.tanh %300 : vector<16x64xf32>
    %cst_128 = arith.constant 1.000000e+00 : f32
    %302 = vector.broadcast %cst_128 : f32 to vector<16x64xf32>
    %303 = arith.addf %302, %301 : vector<16x64xf32>
    %304 = arith.mulf %293, %303 : vector<16x64xf32>
    %305 = arith.truncf %304 : vector<16x64xf32> to vector<16x64xbf16>
    %c0_129 = arith.constant 0 : index
    %c0_130 = arith.constant 0 : index
    %c0_131 = arith.constant 0 : index
    %306 = vector.load %arg17[%c0_129, %c0_130, %c0_131] : memref<2x64x32xbf16, #tpu.memory_space<vmem>>, vector<1x64x32xbf16>
    %307 = vector.shape_cast %306 : vector<1x64x32xbf16> to vector<64x32xbf16>
    %cst_132 = arith.constant dense<0.000000e+00> : vector<16x32xf32>
    %308 = tpu.matmul %305, %307, %cst_132 {dimension_numbers = #tpu.dot_dimension_numbers<[1], [0], [0], [1], [0, 0, 1, 1], [], []>} : vector<16x64xbf16>, vector<64x32xbf16>, vector<16x32xf32> -> vector<16x32xf32>
    %c0_133 = arith.constant 0 : index
    %c0_134 = arith.constant 0 : index
    %c0_135 = arith.constant 0 : index
    %309 = vector.load %arg18[%c0_133, %c0_134, %c0_135] : memref<2x1x32xf32, #tpu.memory_space<vmem>>, vector<1x1x32xf32>
    %310 = vector.shape_cast %309 : vector<1x1x32xf32> to vector<1x32xf32>
    %311 = vector.broadcast %310 : vector<1x32xf32> to vector<16x32xf32>
    %312 = arith.addf %308, %311 : vector<16x32xf32>
    %313 = arith.addf %259, %312 : vector<16x32xf32>
    %c1_136 = arith.constant 1 : index
    %c0_137 = arith.constant 0 : index
    %c0_138 = arith.constant 0 : index
    %314 = vector.load %arg7[%c1_136, %c0_137, %c0_138] : memref<2x1x32xf32, #tpu.memory_space<vmem>>, vector<1x1x32xf32>
    %315 = vector.shape_cast %314 : vector<1x1x32xf32> to vector<1x32xf32>
    %c1_139 = arith.constant 1 : index
    %c0_140 = arith.constant 0 : index
    %c0_141 = arith.constant 0 : index
    %316 = vector.load %arg8[%c1_139, %c0_140, %c0_141] : memref<2x1x32xf32, #tpu.memory_space<vmem>>, vector<1x1x32xf32>
    %317 = vector.shape_cast %316 : vector<1x1x32xf32> to vector<1x32xf32>
    %cst_142 = arith.constant dense<0.000000e+00> : vector<16xf32>
    %318 = vector.multi_reduction <add>, %313, %cst_142 [1] : vector<16x32xf32> to vector<16xf32>
    %319 = vector.shape_cast %318 : vector<16xf32> to vector<16x1xf32>
    %cst_143 = arith.constant 3.200000e+01 : f32
    %320 = vector.broadcast %cst_143 : f32 to vector<16x1xf32>
    %321 = arith.divf %319, %320 : vector<16x1xf32>
    %322 = vector.broadcast %321 : vector<16x1xf32> to vector<16x32xf32>
    %323 = arith.subf %313, %322 : vector<16x32xf32>
    %324 = arith.mulf %323, %323 : vector<16x32xf32>
    %cst_144 = arith.constant dense<0.000000e+00> : vector<16xf32>
    %325 = vector.multi_reduction <add>, %324, %cst_144 [1] : vector<16x32xf32> to vector<16xf32>
    %326 = vector.shape_cast %325 : vector<16xf32> to vector<16x1xf32>
    %cst_145 = arith.constant 3.200000e+01 : f32
    %327 = vector.broadcast %cst_145 : f32 to vector<16x1xf32>
    %328 = arith.divf %326, %327 : vector<16x1xf32>
    %cst_146 = arith.constant 9.99999997E-7 : f32
    %329 = vector.broadcast %cst_146 : f32 to vector<16x1xf32>
    %330 = arith.addf %328, %329 : vector<16x1xf32>
    %331 = math.rsqrt %330 : vector<16x1xf32>
    %332 = vector.broadcast %331 : vector<16x1xf32> to vector<16x32xf32>
    %333 = arith.mulf %323, %332 : vector<16x32xf32>
    %334 = vector.broadcast %315 : vector<1x32xf32> to vector<16x32xf32>
    %335 = arith.mulf %333, %334 : vector<16x32xf32>
    %336 = vector.broadcast %317 : vector<1x32xf32> to vector<16x32xf32>
    %337 = arith.addf %335, %336 : vector<16x32xf32>
    %338 = arith.truncf %337 : vector<16x32xf32> to vector<16x32xbf16>
    %c1_147 = arith.constant 1 : index
    %c0_148 = arith.constant 0 : index
    %c0_149 = arith.constant 0 : index
    %339 = vector.load %arg9[%c1_147, %c0_148, %c0_149] : memref<2x32x96xbf16, #tpu.memory_space<vmem>>, vector<1x32x96xbf16>
    %340 = vector.shape_cast %339 : vector<1x32x96xbf16> to vector<32x96xbf16>
    %cst_150 = arith.constant dense<0.000000e+00> : vector<16x96xf32>
    %341 = tpu.matmul %338, %340, %cst_150 {dimension_numbers = #tpu.dot_dimension_numbers<[1], [0], [0], [1], [0, 0, 1, 1], [], []>} : vector<16x32xbf16>, vector<32x96xbf16>, vector<16x96xf32> -> vector<16x96xf32>
    %c1_151 = arith.constant 1 : index
    %c0_152 = arith.constant 0 : index
    %c0_153 = arith.constant 0 : index
    %342 = vector.load %arg10[%c1_151, %c0_152, %c0_153] : memref<2x1x96xf32, #tpu.memory_space<vmem>>, vector<1x1x96xf32>
    %343 = vector.shape_cast %342 : vector<1x1x96xf32> to vector<1x96xf32>
    %344 = vector.broadcast %343 : vector<1x96xf32> to vector<16x96xf32>
    %345 = arith.addf %341, %344 : vector<16x96xf32>
    %346 = arith.truncf %345 : vector<16x96xf32> to vector<16x96xbf16>
    %cst_154 = arith.constant 0.000000e+00 : f32
    %347 = vector.broadcast %cst_154 : f32 to vector<16x32xf32>
    %348 = vector.extract_strided_slice %346 {offsets = [0, 0], sizes = [16, 8], strides = [1, 1]} : vector<16x96xbf16> to vector<16x8xbf16>
    %349 = vector.extract_strided_slice %346 {offsets = [0, 32], sizes = [16, 8], strides = [1, 1]} : vector<16x96xbf16> to vector<16x8xbf16>
    %350 = vector.extract_strided_slice %346 {offsets = [0, 64], sizes = [16, 8], strides = [1, 1]} : vector<16x96xbf16> to vector<16x8xbf16>
    %cst_155 = arith.constant dense<0.000000e+00> : vector<16x16xf32>
    %351 = tpu.matmul %348, %349, %cst_155 {dimension_numbers = #tpu.dot_dimension_numbers<[1], [1], [0], [0], [0, 0, 1, 0], [], []>} : vector<16x8xbf16>, vector<16x8xbf16>, vector<16x16xf32> -> vector<16x16xf32>
    %352 = arith.addf %351, %156 : vector<16x16xf32>
    %cst_156 = arith.constant dense<0xFF800000> : vector<16xf32>
    %353 = vector.multi_reduction <maximumf>, %352, %cst_156 [1] : vector<16x16xf32> to vector<16xf32>
    %354 = vector.shape_cast %353 : vector<16xf32> to vector<16x1xf32>
    %355 = vector.broadcast %354 : vector<16x1xf32> to vector<16x16xf32>
    %356 = arith.subf %352, %355 : vector<16x16xf32>
    %357 = math.exp %356 : vector<16x16xf32>
    %cst_157 = arith.constant dense<0.000000e+00> : vector<16xf32>
    %358 = vector.multi_reduction <add>, %357, %cst_157 [1] : vector<16x16xf32> to vector<16xf32>
    %359 = vector.shape_cast %358 : vector<16xf32> to vector<16x1xf32>
    %360 = tpu.reciprocal %359 {approx = true} : vector<16x1xf32> -> vector<16x1xf32>
    %361 = vector.broadcast %360 : vector<16x1xf32> to vector<16x16xf32>
    %362 = arith.mulf %357, %361 : vector<16x16xf32>
    %363 = arith.truncf %362 : vector<16x16xf32> to vector<16x16xbf16>
    %cst_158 = arith.constant dense<0.000000e+00> : vector<16x8xf32>
    %364 = tpu.matmul %363, %350, %cst_158 {dimension_numbers = #tpu.dot_dimension_numbers<[1], [0], [0], [1], [0, 0, 1, 1], [], []>} : vector<16x16xbf16>, vector<16x8xbf16>, vector<16x8xf32> -> vector<16x8xf32>
    %365 = arith.truncf %364 : vector<16x8xf32> to vector<16x8xbf16>
    %c1_159 = arith.constant 1 : index
    %c0_160 = arith.constant 0 : index
    %c0_161 = arith.constant 0 : index
    %366 = vector.load %arg11[%c1_159, %c0_160, %c0_161] : memref<2x32x32xbf16, #tpu.memory_space<vmem>>, vector<1x8x32xbf16>
    %367 = vector.shape_cast %366 : vector<1x8x32xbf16> to vector<8x32xbf16>
    %cst_162 = arith.constant dense<0.000000e+00> : vector<16x32xf32>
    %368 = tpu.matmul %365, %367, %cst_162 {dimension_numbers = #tpu.dot_dimension_numbers<[1], [0], [0], [1], [0, 0, 1, 1], [], []>} : vector<16x8xbf16>, vector<8x32xbf16>, vector<16x32xf32> -> vector<16x32xf32>
    %369 = arith.addf %347, %368 : vector<16x32xf32>
    %370 = vector.extract_strided_slice %346 {offsets = [0, 8], sizes = [16, 8], strides = [1, 1]} : vector<16x96xbf16> to vector<16x8xbf16>
    %371 = vector.extract_strided_slice %346 {offsets = [0, 40], sizes = [16, 8], strides = [1, 1]} : vector<16x96xbf16> to vector<16x8xbf16>
    %372 = vector.extract_strided_slice %346 {offsets = [0, 72], sizes = [16, 8], strides = [1, 1]} : vector<16x96xbf16> to vector<16x8xbf16>
    %cst_163 = arith.constant dense<0.000000e+00> : vector<16x16xf32>
    %373 = tpu.matmul %370, %371, %cst_163 {dimension_numbers = #tpu.dot_dimension_numbers<[1], [1], [0], [0], [0, 0, 1, 0], [], []>} : vector<16x8xbf16>, vector<16x8xbf16>, vector<16x16xf32> -> vector<16x16xf32>
    %374 = arith.addf %373, %156 : vector<16x16xf32>
    %cst_164 = arith.constant dense<0xFF800000> : vector<16xf32>
    %375 = vector.multi_reduction <maximumf>, %374, %cst_164 [1] : vector<16x16xf32> to vector<16xf32>
    %376 = vector.shape_cast %375 : vector<16xf32> to vector<16x1xf32>
    %377 = vector.broadcast %376 : vector<16x1xf32> to vector<16x16xf32>
    %378 = arith.subf %374, %377 : vector<16x16xf32>
    %379 = math.exp %378 : vector<16x16xf32>
    %cst_165 = arith.constant dense<0.000000e+00> : vector<16xf32>
    %380 = vector.multi_reduction <add>, %379, %cst_165 [1] : vector<16x16xf32> to vector<16xf32>
    %381 = vector.shape_cast %380 : vector<16xf32> to vector<16x1xf32>
    %382 = tpu.reciprocal %381 {approx = true} : vector<16x1xf32> -> vector<16x1xf32>
    %383 = vector.broadcast %382 : vector<16x1xf32> to vector<16x16xf32>
    %384 = arith.mulf %379, %383 : vector<16x16xf32>
    %385 = arith.truncf %384 : vector<16x16xf32> to vector<16x16xbf16>
    %cst_166 = arith.constant dense<0.000000e+00> : vector<16x8xf32>
    %386 = tpu.matmul %385, %372, %cst_166 {dimension_numbers = #tpu.dot_dimension_numbers<[1], [0], [0], [1], [0, 0, 1, 1], [], []>} : vector<16x16xbf16>, vector<16x8xbf16>, vector<16x8xf32> -> vector<16x8xf32>
    %387 = arith.truncf %386 : vector<16x8xf32> to vector<16x8xbf16>
    %c1_167 = arith.constant 1 : index
    %c8_168 = arith.constant 8 : index
    %c0_169 = arith.constant 0 : index
    %388 = vector.load %arg11[%c1_167, %c8_168, %c0_169] : memref<2x32x32xbf16, #tpu.memory_space<vmem>>, vector<1x8x32xbf16>
    %389 = vector.shape_cast %388 : vector<1x8x32xbf16> to vector<8x32xbf16>
    %cst_170 = arith.constant dense<0.000000e+00> : vector<16x32xf32>
    %390 = tpu.matmul %387, %389, %cst_170 {dimension_numbers = #tpu.dot_dimension_numbers<[1], [0], [0], [1], [0, 0, 1, 1], [], []>} : vector<16x8xbf16>, vector<8x32xbf16>, vector<16x32xf32> -> vector<16x32xf32>
    %391 = arith.addf %369, %390 : vector<16x32xf32>
    %392 = vector.extract_strided_slice %346 {offsets = [0, 16], sizes = [16, 8], strides = [1, 1]} : vector<16x96xbf16> to vector<16x8xbf16>
    %393 = vector.extract_strided_slice %346 {offsets = [0, 48], sizes = [16, 8], strides = [1, 1]} : vector<16x96xbf16> to vector<16x8xbf16>
    %394 = vector.extract_strided_slice %346 {offsets = [0, 80], sizes = [16, 8], strides = [1, 1]} : vector<16x96xbf16> to vector<16x8xbf16>
    %cst_171 = arith.constant dense<0.000000e+00> : vector<16x16xf32>
    %395 = tpu.matmul %392, %393, %cst_171 {dimension_numbers = #tpu.dot_dimension_numbers<[1], [1], [0], [0], [0, 0, 1, 0], [], []>} : vector<16x8xbf16>, vector<16x8xbf16>, vector<16x16xf32> -> vector<16x16xf32>
    %396 = arith.addf %395, %156 : vector<16x16xf32>
    %cst_172 = arith.constant dense<0xFF800000> : vector<16xf32>
    %397 = vector.multi_reduction <maximumf>, %396, %cst_172 [1] : vector<16x16xf32> to vector<16xf32>
    %398 = vector.shape_cast %397 : vector<16xf32> to vector<16x1xf32>
    %399 = vector.broadcast %398 : vector<16x1xf32> to vector<16x16xf32>
    %400 = arith.subf %396, %399 : vector<16x16xf32>
    %401 = math.exp %400 : vector<16x16xf32>
    %cst_173 = arith.constant dense<0.000000e+00> : vector<16xf32>
    %402 = vector.multi_reduction <add>, %401, %cst_173 [1] : vector<16x16xf32> to vector<16xf32>
    %403 = vector.shape_cast %402 : vector<16xf32> to vector<16x1xf32>
    %404 = tpu.reciprocal %403 {approx = true} : vector<16x1xf32> -> vector<16x1xf32>
    %405 = vector.broadcast %404 : vector<16x1xf32> to vector<16x16xf32>
    %406 = arith.mulf %401, %405 : vector<16x16xf32>
    %407 = arith.truncf %406 : vector<16x16xf32> to vector<16x16xbf16>
    %cst_174 = arith.constant dense<0.000000e+00> : vector<16x8xf32>
    %408 = tpu.matmul %407, %394, %cst_174 {dimension_numbers = #tpu.dot_dimension_numbers<[1], [0], [0], [1], [0, 0, 1, 1], [], []>} : vector<16x16xbf16>, vector<16x8xbf16>, vector<16x8xf32> -> vector<16x8xf32>
    %409 = arith.truncf %408 : vector<16x8xf32> to vector<16x8xbf16>
    %c1_175 = arith.constant 1 : index
    %c16_176 = arith.constant 16 : index
    %c0_177 = arith.constant 0 : index
    %410 = vector.load %arg11[%c1_175, %c16_176, %c0_177] : memref<2x32x32xbf16, #tpu.memory_space<vmem>>, vector<1x8x32xbf16>
    %411 = vector.shape_cast %410 : vector<1x8x32xbf16> to vector<8x32xbf16>
    %cst_178 = arith.constant dense<0.000000e+00> : vector<16x32xf32>
    %412 = tpu.matmul %409, %411, %cst_178 {dimension_numbers = #tpu.dot_dimension_numbers<[1], [0], [0], [1], [0, 0, 1, 1], [], []>} : vector<16x8xbf16>, vector<8x32xbf16>, vector<16x32xf32> -> vector<16x32xf32>
    %413 = arith.addf %391, %412 : vector<16x32xf32>
    %414 = vector.extract_strided_slice %346 {offsets = [0, 24], sizes = [16, 8], strides = [1, 1]} : vector<16x96xbf16> to vector<16x8xbf16>
    %415 = vector.extract_strided_slice %346 {offsets = [0, 56], sizes = [16, 8], strides = [1, 1]} : vector<16x96xbf16> to vector<16x8xbf16>
    %416 = vector.extract_strided_slice %346 {offsets = [0, 88], sizes = [16, 8], strides = [1, 1]} : vector<16x96xbf16> to vector<16x8xbf16>
    %cst_179 = arith.constant dense<0.000000e+00> : vector<16x16xf32>
    %417 = tpu.matmul %414, %415, %cst_179 {dimension_numbers = #tpu.dot_dimension_numbers<[1], [1], [0], [0], [0, 0, 1, 0], [], []>} : vector<16x8xbf16>, vector<16x8xbf16>, vector<16x16xf32> -> vector<16x16xf32>
    %418 = arith.addf %417, %156 : vector<16x16xf32>
    %cst_180 = arith.constant dense<0xFF800000> : vector<16xf32>
    %419 = vector.multi_reduction <maximumf>, %418, %cst_180 [1] : vector<16x16xf32> to vector<16xf32>
    %420 = vector.shape_cast %419 : vector<16xf32> to vector<16x1xf32>
    %421 = vector.broadcast %420 : vector<16x1xf32> to vector<16x16xf32>
    %422 = arith.subf %418, %421 : vector<16x16xf32>
    %423 = math.exp %422 : vector<16x16xf32>
    %cst_181 = arith.constant dense<0.000000e+00> : vector<16xf32>
    %424 = vector.multi_reduction <add>, %423, %cst_181 [1] : vector<16x16xf32> to vector<16xf32>
    %425 = vector.shape_cast %424 : vector<16xf32> to vector<16x1xf32>
    %426 = tpu.reciprocal %425 {approx = true} : vector<16x1xf32> -> vector<16x1xf32>
    %427 = vector.broadcast %426 : vector<16x1xf32> to vector<16x16xf32>
    %428 = arith.mulf %423, %427 : vector<16x16xf32>
    %429 = arith.truncf %428 : vector<16x16xf32> to vector<16x16xbf16>
    %cst_182 = arith.constant dense<0.000000e+00> : vector<16x8xf32>
    %430 = tpu.matmul %429, %416, %cst_182 {dimension_numbers = #tpu.dot_dimension_numbers<[1], [0], [0], [1], [0, 0, 1, 1], [], []>} : vector<16x16xbf16>, vector<16x8xbf16>, vector<16x8xf32> -> vector<16x8xf32>
    %431 = arith.truncf %430 : vector<16x8xf32> to vector<16x8xbf16>
    %c1_183 = arith.constant 1 : index
    %c24_184 = arith.constant 24 : index
    %c0_185 = arith.constant 0 : index
    %432 = vector.load %arg11[%c1_183, %c24_184, %c0_185] : memref<2x32x32xbf16, #tpu.memory_space<vmem>>, vector<1x8x32xbf16>
    %433 = vector.shape_cast %432 : vector<1x8x32xbf16> to vector<8x32xbf16>
    %cst_186 = arith.constant dense<0.000000e+00> : vector<16x32xf32>
    %434 = tpu.matmul %431, %433, %cst_186 {dimension_numbers = #tpu.dot_dimension_numbers<[1], [0], [0], [1], [0, 0, 1, 1], [], []>} : vector<16x8xbf16>, vector<8x32xbf16>, vector<16x32xf32> -> vector<16x32xf32>
    %435 = arith.addf %413, %434 : vector<16x32xf32>
    %436 = arith.addf %313, %435 : vector<16x32xf32>
    %c1_187 = arith.constant 1 : index
    %c0_188 = arith.constant 0 : index
    %c0_189 = arith.constant 0 : index
    %437 = vector.load %arg12[%c1_187, %c0_188, %c0_189] : memref<2x1x32xf32, #tpu.memory_space<vmem>>, vector<1x1x32xf32>
    %438 = vector.shape_cast %437 : vector<1x1x32xf32> to vector<1x32xf32>
    %439 = vector.broadcast %438 : vector<1x32xf32> to vector<16x32xf32>
    %440 = arith.addf %436, %439 : vector<16x32xf32>
    %c1_190 = arith.constant 1 : index
    %c0_191 = arith.constant 0 : index
    %c0_192 = arith.constant 0 : index
    %441 = vector.load %arg13[%c1_190, %c0_191, %c0_192] : memref<2x1x32xf32, #tpu.memory_space<vmem>>, vector<1x1x32xf32>
    %442 = vector.shape_cast %441 : vector<1x1x32xf32> to vector<1x32xf32>
    %c1_193 = arith.constant 1 : index
    %c0_194 = arith.constant 0 : index
    %c0_195 = arith.constant 0 : index
    %443 = vector.load %arg14[%c1_193, %c0_194, %c0_195] : memref<2x1x32xf32, #tpu.memory_space<vmem>>, vector<1x1x32xf32>
    %444 = vector.shape_cast %443 : vector<1x1x32xf32> to vector<1x32xf32>
    %cst_196 = arith.constant dense<0.000000e+00> : vector<16xf32>
    %445 = vector.multi_reduction <add>, %440, %cst_196 [1] : vector<16x32xf32> to vector<16xf32>
    %446 = vector.shape_cast %445 : vector<16xf32> to vector<16x1xf32>
    %cst_197 = arith.constant 3.200000e+01 : f32
    %447 = vector.broadcast %cst_197 : f32 to vector<16x1xf32>
    %448 = arith.divf %446, %447 : vector<16x1xf32>
    %449 = vector.broadcast %448 : vector<16x1xf32> to vector<16x32xf32>
    %450 = arith.subf %440, %449 : vector<16x32xf32>
    %451 = arith.mulf %450, %450 : vector<16x32xf32>
    %cst_198 = arith.constant dense<0.000000e+00> : vector<16xf32>
    %452 = vector.multi_reduction <add>, %451, %cst_198 [1] : vector<16x32xf32> to vector<16xf32>
    %453 = vector.shape_cast %452 : vector<16xf32> to vector<16x1xf32>
    %cst_199 = arith.constant 3.200000e+01 : f32
    %454 = vector.broadcast %cst_199 : f32 to vector<16x1xf32>
    %455 = arith.divf %453, %454 : vector<16x1xf32>
    %cst_200 = arith.constant 9.99999997E-7 : f32
    %456 = vector.broadcast %cst_200 : f32 to vector<16x1xf32>
    %457 = arith.addf %455, %456 : vector<16x1xf32>
    %458 = math.rsqrt %457 : vector<16x1xf32>
    %459 = vector.broadcast %458 : vector<16x1xf32> to vector<16x32xf32>
    %460 = arith.mulf %450, %459 : vector<16x32xf32>
    %461 = vector.broadcast %442 : vector<1x32xf32> to vector<16x32xf32>
    %462 = arith.mulf %460, %461 : vector<16x32xf32>
    %463 = vector.broadcast %444 : vector<1x32xf32> to vector<16x32xf32>
    %464 = arith.addf %462, %463 : vector<16x32xf32>
    %465 = arith.truncf %464 : vector<16x32xf32> to vector<16x32xbf16>
    %c1_201 = arith.constant 1 : index
    %c0_202 = arith.constant 0 : index
    %c0_203 = arith.constant 0 : index
    %466 = vector.load %arg15[%c1_201, %c0_202, %c0_203] : memref<2x32x64xbf16, #tpu.memory_space<vmem>>, vector<1x32x64xbf16>
    %467 = vector.shape_cast %466 : vector<1x32x64xbf16> to vector<32x64xbf16>
    %cst_204 = arith.constant dense<0.000000e+00> : vector<16x64xf32>
    %468 = tpu.matmul %465, %467, %cst_204 {dimension_numbers = #tpu.dot_dimension_numbers<[1], [0], [0], [1], [0, 0, 1, 1], [], []>} : vector<16x32xbf16>, vector<32x64xbf16>, vector<16x64xf32> -> vector<16x64xf32>
    %c1_205 = arith.constant 1 : index
    %c0_206 = arith.constant 0 : index
    %c0_207 = arith.constant 0 : index
    %469 = vector.load %arg16[%c1_205, %c0_206, %c0_207] : memref<2x1x64xf32, #tpu.memory_space<vmem>>, vector<1x1x64xf32>
    %470 = vector.shape_cast %469 : vector<1x1x64xf32> to vector<1x64xf32>
    %471 = vector.broadcast %470 : vector<1x64xf32> to vector<16x64xf32>
    %472 = arith.addf %468, %471 : vector<16x64xf32>
    %cst_208 = arith.constant 5.000000e-01 : f32
    %473 = vector.broadcast %cst_208 : f32 to vector<16x64xf32>
    %474 = arith.mulf %473, %472 : vector<16x64xf32>
    %cst_209 = arith.constant 4.471500e-02 : f32
    %475 = vector.broadcast %cst_209 : f32 to vector<16x64xf32>
    %476 = arith.mulf %475, %472 : vector<16x64xf32>
    %477 = arith.mulf %476, %472 : vector<16x64xf32>
    %478 = arith.mulf %477, %472 : vector<16x64xf32>
    %479 = arith.addf %472, %478 : vector<16x64xf32>
    %cst_210 = arith.constant 0.797884583 : f32
    %480 = vector.broadcast %cst_210 : f32 to vector<16x64xf32>
    %481 = arith.mulf %480, %479 : vector<16x64xf32>
    %482 = math.tanh %481 : vector<16x64xf32>
    %cst_211 = arith.constant 1.000000e+00 : f32
    %483 = vector.broadcast %cst_211 : f32 to vector<16x64xf32>
    %484 = arith.addf %483, %482 : vector<16x64xf32>
    %485 = arith.mulf %474, %484 : vector<16x64xf32>
    %486 = arith.truncf %485 : vector<16x64xf32> to vector<16x64xbf16>
    %c1_212 = arith.constant 1 : index
    %c0_213 = arith.constant 0 : index
    %c0_214 = arith.constant 0 : index
    %487 = vector.load %arg17[%c1_212, %c0_213, %c0_214] : memref<2x64x32xbf16, #tpu.memory_space<vmem>>, vector<1x64x32xbf16>
    %488 = vector.shape_cast %487 : vector<1x64x32xbf16> to vector<64x32xbf16>
    %cst_215 = arith.constant dense<0.000000e+00> : vector<16x32xf32>
    %489 = tpu.matmul %486, %488, %cst_215 {dimension_numbers = #tpu.dot_dimension_numbers<[1], [0], [0], [1], [0, 0, 1, 1], [], []>} : vector<16x64xbf16>, vector<64x32xbf16>, vector<16x32xf32> -> vector<16x32xf32>
    %c1_216 = arith.constant 1 : index
    %c0_217 = arith.constant 0 : index
    %c0_218 = arith.constant 0 : index
    %490 = vector.load %arg18[%c1_216, %c0_217, %c0_218] : memref<2x1x32xf32, #tpu.memory_space<vmem>>, vector<1x1x32xf32>
    %491 = vector.shape_cast %490 : vector<1x1x32xf32> to vector<1x32xf32>
    %492 = vector.broadcast %491 : vector<1x32xf32> to vector<16x32xf32>
    %493 = arith.addf %489, %492 : vector<16x32xf32>
    %494 = arith.addf %440, %493 : vector<16x32xf32>
    %c0_219 = arith.constant 0 : index
    %c0_220 = arith.constant 0 : index
    %495 = vector.load %arg19[%c0_219, %c0_220] : memref<1x32xf32, #tpu.memory_space<vmem>>, vector<1x32xf32>
    %c0_221 = arith.constant 0 : index
    %c0_222 = arith.constant 0 : index
    %496 = vector.load %arg20[%c0_221, %c0_222] : memref<1x32xf32, #tpu.memory_space<vmem>>, vector<1x32xf32>
    %cst_223 = arith.constant dense<0.000000e+00> : vector<16xf32>
    %497 = vector.multi_reduction <add>, %494, %cst_223 [1] : vector<16x32xf32> to vector<16xf32>
    %498 = vector.shape_cast %497 : vector<16xf32> to vector<16x1xf32>
    %cst_224 = arith.constant 3.200000e+01 : f32
    %499 = vector.broadcast %cst_224 : f32 to vector<16x1xf32>
    %500 = arith.divf %498, %499 : vector<16x1xf32>
    %501 = vector.broadcast %500 : vector<16x1xf32> to vector<16x32xf32>
    %502 = arith.subf %494, %501 : vector<16x32xf32>
    %503 = arith.mulf %502, %502 : vector<16x32xf32>
    %cst_225 = arith.constant dense<0.000000e+00> : vector<16xf32>
    %504 = vector.multi_reduction <add>, %503, %cst_225 [1] : vector<16x32xf32> to vector<16xf32>
    %505 = vector.shape_cast %504 : vector<16xf32> to vector<16x1xf32>
    %cst_226 = arith.constant 3.200000e+01 : f32
    %506 = vector.broadcast %cst_226 : f32 to vector<16x1xf32>
    %507 = arith.divf %505, %506 : vector<16x1xf32>
    %cst_227 = arith.constant 9.99999997E-7 : f32
    %508 = vector.broadcast %cst_227 : f32 to vector<16x1xf32>
    %509 = arith.addf %507, %508 : vector<16x1xf32>
    %510 = math.rsqrt %509 : vector<16x1xf32>
    %511 = vector.broadcast %510 : vector<16x1xf32> to vector<16x32xf32>
    %512 = arith.mulf %502, %511 : vector<16x32xf32>
    %513 = vector.broadcast %495 : vector<1x32xf32> to vector<16x32xf32>
    %514 = arith.mulf %512, %513 : vector<16x32xf32>
    %515 = vector.broadcast %496 : vector<1x32xf32> to vector<16x32xf32>
    %516 = arith.addf %514, %515 : vector<16x32xf32>
    %c0_228 = arith.constant 0 : index
    %c0_229 = arith.constant 0 : index
    %517 = vector.load %arg21[%c0_228, %c0_229] : memref<1x32xf32, #tpu.memory_space<vmem>>, vector<1x32xf32>
    %cst_230 = arith.constant dense<0.000000e+00> : vector<1x16xf32>
    %518 = tpu.matmul %517, %516, %cst_230 {dimension_numbers = #tpu.dot_dimension_numbers<[1], [1], [0], [0], [0, 0, 1, 0], [], []>} : vector<1x32xf32>, vector<16x32xf32>, vector<1x16xf32> -> vector<1x16xf32>
    %c0_231 = arith.constant 0 : index
    %c0_232 = arith.constant 0 : index
    %519 = vector.load %arg22[%c0_231, %c0_232] : memref<1x1xf32, #tpu.memory_space<vmem>>, vector<1x1xf32>
    %520 = vector.broadcast %519 : vector<1x1xf32> to vector<1x16xf32>
    %521 = arith.addf %518, %520 : vector<1x16xf32>
    %522 = arith.negf %521 : vector<1x16xf32>
    %523 = math.exp %522 : vector<1x16xf32>
    %cst_233 = arith.constant 1.000000e+00 : f32
    %524 = vector.broadcast %cst_233 : f32 to vector<1x16xf32>
    %525 = arith.addf %524, %523 : vector<1x16xf32>
    %526 = arith.divf %524, %525 : vector<1x16xf32>
    %c0_234 = arith.constant 0 : index
    %c0_235 = arith.constant 0 : index
    %527 = vector.load %arg6[%c0_234, %c0_235] : memref<1x16xf32, #tpu.memory_space<vmem>>, vector<1x16xf32>
    %528 = arith.mulf %526, %527 : vector<1x16xf32>
    %c0_236 = arith.constant 0 : index
    %c0_237 = arith.constant 0 : index
    %529 = vector.load %arg23[%c0_236, %c0_237] : memref<1x16xf32, #tpu.memory_space<vmem>>, vector<1x16xf32>
    tpu.vector_store %arg23[%c0_236, %c0_237], %528 {strides = array<i32>} : memref<1x16xf32, #tpu.memory_space<vmem>>, vector<1x16xf32>,
    return
  }
  func.func @transform_0(%arg0: i32, %arg1: memref<2x8xi32, #tpu.memory_space<smem>>) -> (i32, i32, i32) {
    %c0_i32 = arith.constant 0 : i32
    %c0_i32_0 = arith.constant 0 : i32
    %c0_i32_1 = arith.constant 0 : i32
    %c0_i32_2 = arith.constant 0 : i32
    return %c0_i32, %c0_i32_0, %c0_i32_1 : i32, i32, i32
  }
  func.func @transform_1(%arg0: i32, %arg1: memref<2x8xi32, #tpu.memory_space<smem>>) -> (i32, i32) {
    %c0_i32 = arith.constant 0 : i32
    %c0_i32_0 = arith.constant 0 : i32
    %c0_i32_1 = arith.constant 0 : i32
    return %c0_i32, %c0_i32_0 : i32, i32
  }
  func.func @transform_2(%arg0: i32, %arg1: memref<2x8xi32, #tpu.memory_space<smem>>) -> (i32, i32) {
    %c0_i32 = arith.constant 0 : i32
    %c0_i32_0 = arith.constant 0 : i32
    %c0_i32_1 = arith.constant 0 : i32
    return %c0_i32, %c0_i32_0 : i32, i32
  }
  func.func @transform_3(%arg0: i32, %arg1: memref<2x8xi32, #tpu.memory_space<smem>>) -> (i32, i32) {
    %c0_i32 = arith.constant 0 : i32
    %c0_i32_0 = arith.constant 0 : i32
    %c0_i32_1 = arith.constant 0 : i32
    return %c0_i32, %c0_i32_0 : i32, i32
  }
  func.func @transform_4(%arg0: i32, %arg1: memref<2x8xi32, #tpu.memory_space<smem>>) -> (i32, i32) {
    %c0_i32 = arith.constant 0 : i32
    %c0_i32_0 = arith.constant 0 : i32
    %c0_i32_1 = arith.constant 0 : i32
    return %c0_i32, %c0_i32_0 : i32, i32
  }
  func.func @transform_5(%arg0: i32, %arg1: memref<2x8xi32, #tpu.memory_space<smem>>) -> (i32, i32, i32) {
    %c0_i32 = arith.constant 0 : i32
    %c0_i32_0 = arith.constant 0 : i32
    %c0_i32_1 = arith.constant 0 : i32
    %c0_i32_2 = arith.constant 0 : i32
    return %c0_i32, %c0_i32_0, %c0_i32_1 : i32, i32, i32
  }
  func.func @transform_6(%arg0: i32, %arg1: memref<2x8xi32, #tpu.memory_space<smem>>) -> (i32, i32, i32) {
    %c0_i32 = arith.constant 0 : i32
    %c0_i32_0 = arith.constant 0 : i32
    %c0_i32_1 = arith.constant 0 : i32
    %c0_i32_2 = arith.constant 0 : i32
    return %c0_i32, %c0_i32_0, %c0_i32_1 : i32, i32, i32
  }
  func.func @transform_7(%arg0: i32, %arg1: memref<2x8xi32, #tpu.memory_space<smem>>) -> (i32, i32, i32) {
    %c0_i32 = arith.constant 0 : i32
    %c0_i32_0 = arith.constant 0 : i32
    %c0_i32_1 = arith.constant 0 : i32
    %c0_i32_2 = arith.constant 0 : i32
    return %c0_i32, %c0_i32_0, %c0_i32_1 : i32, i32, i32
  }
  func.func @transform_8(%arg0: i32, %arg1: memref<2x8xi32, #tpu.memory_space<smem>>) -> (i32, i32, i32) {
    %c0_i32 = arith.constant 0 : i32
    %c0_i32_0 = arith.constant 0 : i32
    %c0_i32_1 = arith.constant 0 : i32
    %c0_i32_2 = arith.constant 0 : i32
    return %c0_i32, %c0_i32_0, %c0_i32_1 : i32, i32, i32
  }
  func.func @transform_9(%arg0: i32, %arg1: memref<2x8xi32, #tpu.memory_space<smem>>) -> (i32, i32, i32) {
    %c0_i32 = arith.constant 0 : i32
    %c0_i32_0 = arith.constant 0 : i32
    %c0_i32_1 = arith.constant 0 : i32
    %c0_i32_2 = arith.constant 0 : i32
    return %c0_i32, %c0_i32_0, %c0_i32_1 : i32, i32, i32
  }
  func.func @transform_10(%arg0: i32, %arg1: memref<2x8xi32, #tpu.memory_space<smem>>) -> (i32, i32, i32) {
    %c0_i32 = arith.constant 0 : i32
    %c0_i32_0 = arith.constant 0 : i32
    %c0_i32_1 = arith.constant 0 : i32
    %c0_i32_2 = arith.constant 0 : i32
    return %c0_i32, %c0_i32_0, %c0_i32_1 : i32, i32, i32
  }
  func.func @transform_11(%arg0: i32, %arg1: memref<2x8xi32, #tpu.memory_space<smem>>) -> (i32, i32, i32) {
    %c0_i32 = arith.constant 0 : i32
    %c0_i32_0 = arith.constant 0 : i32
    %c0_i32_1 = arith.constant 0 : i32
    %c0_i32_2 = arith.constant 0 : i32
    return %c0_i32, %c0_i32_0, %c0_i32_1 : i32, i32, i32
  }
  func.func @transform_12(%arg0: i32, %arg1: memref<2x8xi32, #tpu.memory_space<smem>>) -> (i32, i32, i32) {
    %c0_i32 = arith.constant 0 : i32
    %c0_i32_0 = arith.constant 0 : i32
    %c0_i32_1 = arith.constant 0 : i32
    %c0_i32_2 = arith.constant 0 : i32
    return %c0_i32, %c0_i32_0, %c0_i32_1 : i32, i32, i32
  }
  func.func @transform_13(%arg0: i32, %arg1: memref<2x8xi32, #tpu.memory_space<smem>>) -> (i32, i32, i32) {
    %c0_i32 = arith.constant 0 : i32
    %c0_i32_0 = arith.constant 0 : i32
    %c0_i32_1 = arith.constant 0 : i32
    %c0_i32_2 = arith.constant 0 : i32
    return %c0_i32, %c0_i32_0, %c0_i32_1 : i32, i32, i32
  }
  func.func @transform_14(%arg0: i32, %arg1: memref<2x8xi32, #tpu.memory_space<smem>>) -> (i32, i32, i32) {
    %c0_i32 = arith.constant 0 : i32
    %c0_i32_0 = arith.constant 0 : i32
    %c0_i32_1 = arith.constant 0 : i32
    %c0_i32_2 = arith.constant 0 : i32
    return %c0_i32, %c0_i32_0, %c0_i32_1 : i32, i32, i32
  }
  func.func @transform_15(%arg0: i32, %arg1: memref<2x8xi32, #tpu.memory_space<smem>>) -> (i32, i32, i32) {
    %c0_i32 = arith.constant 0 : i32
    %c0_i32_0 = arith.constant 0 : i32
    %c0_i32_1 = arith.constant 0 : i32
    %c0_i32_2 = arith.constant 0 : i32
    return %c0_i32, %c0_i32_0, %c0_i32_1 : i32, i32, i32
  }
  func.func @transform_16(%arg0: i32, %arg1: memref<2x8xi32, #tpu.memory_space<smem>>) -> (i32, i32, i32) {
    %c0_i32 = arith.constant 0 : i32
    %c0_i32_0 = arith.constant 0 : i32
    %c0_i32_1 = arith.constant 0 : i32
    %c0_i32_2 = arith.constant 0 : i32
    return %c0_i32, %c0_i32_0, %c0_i32_1 : i32, i32, i32
  }
  func.func @transform_17(%arg0: i32, %arg1: memref<2x8xi32, #tpu.memory_space<smem>>) -> (i32, i32) {
    %c0_i32 = arith.constant 0 : i32
    %c0_i32_0 = arith.constant 0 : i32
    %c0_i32_1 = arith.constant 0 : i32
    return %c0_i32, %c0_i32_0 : i32, i32
  }
  func.func @transform_18(%arg0: i32, %arg1: memref<2x8xi32, #tpu.memory_space<smem>>) -> (i32, i32) {
    %c0_i32 = arith.constant 0 : i32
    %c0_i32_0 = arith.constant 0 : i32
    %c0_i32_1 = arith.constant 0 : i32
    return %c0_i32, %c0_i32_0 : i32, i32
  }
  func.func @transform_19(%arg0: i32, %arg1: memref<2x8xi32, #tpu.memory_space<smem>>) -> (i32, i32) {
    %c0_i32 = arith.constant 0 : i32
    %c0_i32_0 = arith.constant 0 : i32
    %c0_i32_1 = arith.constant 0 : i32
    return %c0_i32, %c0_i32_0 : i32, i32
  }
  func.func @transform_20(%arg0: i32, %arg1: memref<2x8xi32, #tpu.memory_space<smem>>) -> (i32, i32) {
    %c0_i32 = arith.constant 0 : i32
    %c0_i32_0 = arith.constant 0 : i32
    %c0_i32_1 = arith.constant 0 : i32
    return %c0_i32, %c0_i32_0 : i32, i32
  }
  func.func @transform_21(%arg0: i32, %arg1: memref<2x8xi32, #tpu.memory_space<smem>>) -> (i32, i32) {
    %c0_i32 = arith.constant 0 : i32
    %c0_i32_0 = arith.constant 0 : i32
    %c0_i32_1 = arith.constant 0 : i32
    return %c0_i32, %c0_i32_0 : i32, i32
  }
}

</mosaic_0001>

<llo_original>
// kernel: _lambda_.1
$region0: #{_lambda_.1}
  #allocation0 [shape = 'u32[]', space=smem, size = 0x4, offset = 0x4, fixed_abs, tag = 'smem constant byte address 0x4 - core index']
  #allocation1 [shape = 'u32[144,128]{1,0:T(1,128)}', space=vmem, size = 0x12000, scoped, tag = 'internal scratch']
  #allocation2 [shape = 's32[1]{0}', space=sflag, size = 0x4, scoped, tag = 'scoped memory for _lambda_.1']
  #allocation3 [shape = 'u8[1024]{0}', space=smem, size = 0x400, scoped, tag = 'prefetched SMEM operand 0']
  #allocation4 [shape = 'f32[1,1]{1,0:T(1,128)S(1)}', space=vmem, size = 0x200, scoped, tag = 'scoped memory for _lambda_.1']
  %s0 = inlined_call_operand.vmem [shape: s32[2,8], index: 0, kind: input, shape index: {}]
  %s1 = inlined_call_operand.vmem [shape: f32[2,16,32], index: 1, kind: input, shape index: {}]
  %s2 = inlined_call_operand.vmem [shape: f32[16,1], index: 2, kind: input, shape index: {}]
  %s3 = inlined_call_operand.vmem [shape: f32[8,32], index: 3, kind: input, shape index: {}]
  %s4 = inlined_call_operand.vmem [shape: f32[16,16], index: 4, kind: input, shape index: {}]
  %s5 = inlined_call_operand.vmem [shape: f32[1,16], index: 5, kind: input, shape index: {}]
  %s6 = inlined_call_operand.vmem [shape: f32[2,1,32], index: 6, kind: input, shape index: {}, may-alias: {6,12}]
  %s7 = inlined_call_operand.vmem [shape: f32[2,1,32], index: 7, kind: input, shape index: {}, may-alias: {7,11,13,17}]
  %s8 = inlined_call_operand.vmem [shape: bf16[2,32,96], index: 8, kind: input, shape index: {}]
  %s9 = inlined_call_operand.vmem [shape: f32[2,1,96], index: 9, kind: input, shape index: {}]
  %s10 = inlined_call_operand.vmem [shape: bf16[2,32,32], index: 10, kind: input, shape index: {}]
  %s11 = inlined_call_operand.vmem [shape: f32[2,1,32], index: 11, kind: input, shape index: {}, may-alias: {7,11,13,17}]
  %s12 = inlined_call_operand.vmem [shape: f32[2,1,32], index: 12, kind: input, shape index: {}, may-alias: {6,12}]
  %s13 = inlined_call_operand.vmem [shape: f32[2,1,32], index: 13, kind: input, shape index: {}, may-alias: {7,11,13,17}]
  %s14 = inlined_call_operand.hbm [shape: bf16[2,32,64], index: 14, kind: input, shape index: {}]
  %s15 = inlined_call_operand.vmem [shape: f32[2,1,64], index: 15, kind: input, shape index: {}]
  %s16 = inlined_call_operand.vmem [shape: bf16[2,64,32], index: 16, kind: input, shape index: {}]
  %s17 = inlined_call_operand.vmem [shape: f32[2,1,32], index: 17, kind: input, shape index: {}, may-alias: {7,11,13,17}]
  %s18 = inlined_call_operand.vmem [shape: f32[1,32], index: 18, kind: input, shape index: {}]
  %s19 = inlined_call_operand.vmem [shape: f32[1,32], index: 19, kind: input, shape index: {}]
  %s20 = inlined_call_operand.vmem [shape: f32[1,32], index: 20, kind: input, shape index: {}]
  %s21 = inlined_call_operand.<no memory space> [shape: f32[1,1], index: 21, kind: input, shape index: {}]
  %s22 = inlined_call_operand.vmem [shape: f32[1,16], index: 22, kind: output, shape index: {}]
  %s23 = sld [smem:[#allocation0]]
  $region98: #{_lambda_.1} parent=0
    _
  %s25 = ssub.s32 1, %s23
  %s26 = scalar_select 0, %s25, %s23
  %s27 = sshll.u32 %s0, 4
  %s28 = int_to_ptr.vmem [resolvable:$true] %s27
  %30 = dma.vmem_to_smem %s28, 32, [#allocation3], [#allocation2]
  %v31 = vstv %s21
  %32 = vst [vmem:[#allocation4] sm:$0x1] %v31
  %33 = dma.done [#allocation2], 32
  %34 = sfence
  $region1: #{_lambda_.1} parent=0
    #allocation5 [shape = 'u8[16384]{0}', space=vmem, size = 0x4000, scoped, tag = 'input window, operand 14, single buffered']
    #allocation6 [shape = 's32[1]{0}', space=sflag, size = 0x4, scoped, tag = 'scoped memory for _lambda_.1']
    %35 = vsyncpa [#allocation6], 0
    // Predicated region
    $region2: #{_lambda_.1} parent=1 // pred_check
      _
    $region3: #{_lambda_.1} parent=1 // pred_check_branch
      %37 = sbr.rel (0) target = $region5
    $region4: #{_lambda_.1} parent=1 // pred_region
      _
    $region5: #{_lambda_.1} parent=1 // pred_fallthru
      _
    // Predicated region
    $region6: #{_lambda_.1} parent=1 // pred_check
      _
    $region7: #{_lambda_.1} parent=1 // pred_check_branch
      %39 = sbr.rel (0) target = $region9
    $region8: #{_lambda_.1} parent=1 // pred_region
      _
    $region9: #{_lambda_.1} parent=1 // pred_fallthru
      _
    // Predicated region
    $region10: #{_lambda_.1} parent=1 // pred_check
      _
    $region11: #{_lambda_.1} parent=1 // pred_check_branch
      %41 = sbr.rel (0) target = $region13
    $region12: #{_lambda_.1} parent=1 // pred_region
      _
    $region13: #{_lambda_.1} parent=1 // pred_fallthru
      _
    // Predicated region
    $region14: #{_lambda_.1} parent=1 // pred_check
      _
    $region15: #{_lambda_.1} parent=1 // pred_check_branch
      %43 = sbr.rel (0) target = $region17
    $region16: #{_lambda_.1} parent=1 // pred_region
      _
    $region17: #{_lambda_.1} parent=1 // pred_fallthru
      _
    // Predicated region
    $region18: #{_lambda_.1} parent=1 // pred_check
      _
    $region19: #{_lambda_.1} parent=1 // pred_check_branch
      %45 = sbr.rel (0) target = $region21
    $region20: #{_lambda_.1} parent=1 // pred_region
      _
    $region21: #{_lambda_.1} parent=1 // pred_fallthru
      _
    // Predicated region
    $region22: #{_lambda_.1} parent=1 // pred_check
      _
    $region23: #{_lambda_.1} parent=1 // pred_check_branch
      %47 = sbr.rel (0) target = $region25
    $region24: #{_lambda_.1} parent=1 // pred_region
      _
    $region25: #{_lambda_.1} parent=1 // pred_fallthru
      _
    // Predicated region
    $region26: #{_lambda_.1} parent=1 // pred_check
      _
    $region27: #{_lambda_.1} parent=1 // pred_check_branch
      %49 = sbr.rel (0) target = $region29
    $region28: #{_lambda_.1} parent=1 // pred_region
      _
    $region29: #{_lambda_.1} parent=1 // pred_fallthru
      _
    // Predicated region
    $region30: #{_lambda_.1} parent=1 // pred_check
      _
    $region31: #{_lambda_.1} parent=1 // pred_check_branch
      %51 = sbr.rel (0) target = $region33
    $region32: #{_lambda_.1} parent=1 // pred_region
      _
    $region33: #{_lambda_.1} parent=1 // pred_fallthru
      _
    // Predicated region
    $region34: #{_lambda_.1} parent=1 // pred_check
      _
    $region35: #{_lambda_.1} parent=1 // pred_check_branch
      %53 = sbr.rel (0) target = $region37
    $region36: #{_lambda_.1} parent=1 // pred_region
      _
    $region37: #{_lambda_.1} parent=1 // pred_fallthru
      _
    // Predicated region
    $region38: #{_lambda_.1} parent=1 // pred_check
      _
    $region39: #{_lambda_.1} parent=1 // pred_check_branch
      %55 = sbr.rel (0) target = $region41
    $region40: #{_lambda_.1} parent=1 // pred_region
      _
    $region41: #{_lambda_.1} parent=1 // pred_fallthru
      _
    // Predicated region
    $region42: #{_lambda_.1} parent=1 // pred_check
      _
    $region43: #{_lambda_.1} parent=1 // pred_check_branch
      %57 = sbr.rel (0) target = $region45
    $region44: #{_lambda_.1} parent=1 // pred_region
      _
    $region45: #{_lambda_.1} parent=1 // pred_fallthru
      _
    // Predicated region
    $region46: #{_lambda_.1} parent=1 // pred_check
      _
    $region47: #{_lambda_.1} parent=1 // pred_check_branch
      %59 = sbr.rel (0) target = $region49
    $region48: #{_lambda_.1} parent=1 // pred_region
      _
    $region49: #{_lambda_.1} parent=1 // pred_fallthru
      _
    // Predicated region
    $region50: #{_lambda_.1} parent=1 // pred_check
      _
    $region51: #{_lambda_.1} parent=1 // pred_check_branch
      %61 = sbr.rel (0) target = $region53
    $region52: #{_lambda_.1} parent=1 // pred_region
      _
    $region53: #{_lambda_.1} parent=1 // pred_fallthru
      _
    // Predicated region
    $region54: #{_lambda_.1} parent=1 // pred_check
      _
    $region55: #{_lambda_.1} parent=1 // pred_check_branch
      %63 = sbr.rel (0) target = $region57
    $region56: #{_lambda_.1} parent=1 // pred_region
      %s65 = ssub.s32 512, 512
      %66 = vsyncadd [#allocation6], %s65
      %s67 = sshll.u32 [#allocation5], 4
      %s68 = int_to_ptr.vmem [resolvable:$true] %s67
      %73 = dma.hbm_to_vmem [thread:$0]  %s14, 512, %s68, [#allocation6], 64, 64, 4
    $region57: #{_lambda_.1} parent=1 // pred_fallthru
      _
    // Predicated region
    $region58: #{_lambda_.1} parent=1 // pred_check
      _
    $region59: #{_lambda_.1} parent=1 // pred_check_branch
      %75 = sbr.rel (0) target = $region61
    $region60: #{_lambda_.1} parent=1 // pred_region
      _
    $region61: #{_lambda_.1} parent=1 // pred_fallthru
      _
    // Predicated region
    $region62: #{_lambda_.1} parent=1 // pred_check
      _
    $region63: #{_lambda_.1} parent=1 // pred_check_branch
      %77 = sbr.rel (0) target = $region65
    $region64: #{_lambda_.1} parent=1 // pred_region
      _
    $region65: #{_lambda_.1} parent=1 // pred_fallthru
      _
    // Predicated region
    $region66: #{_lambda_.1} parent=1 // pred_check
      _
    $region67: #{_lambda_.1} parent=1 // pred_check_branch
      %79 = sbr.rel (0) target = $region69
    $region68: #{_lambda_.1} parent=1 // pred_region
      _
    $region69: #{_lambda_.1} parent=1 // pred_fallthru
      _
    // Predicated region
    $region70: #{_lambda_.1} parent=1 // pred_check
      _
    $region71: #{_lambda_.1} parent=1 // pred_check_branch
      %81 = sbr.rel (0) target = $region73
    $region72: #{_lambda_.1} parent=1 // pred_region
      _
    $region73: #{_lambda_.1} parent=1 // pred_fallthru
      _
    // Predicated region
    $region74: #{_lambda_.1} parent=1 // pred_check
      _
    $region75: #{_lambda_.1} parent=1 // pred_check_branch
      %83 = sbr.rel (0) target = $region77
    $region76: #{_lambda_.1} parent=1 // pred_region
      _
    $region77: #{_lambda_.1} parent=1 // pred_fallthru
      _
    // Predicated region
    $region78: #{_lambda_.1} parent=1 // pred_check
      _
    $region79: #{_lambda_.1} parent=1 // pred_check_branch
      %85 = sbr.rel (0) target = $region81
    $region80: #{_lambda_.1} parent=1 // pred_region
      _
    $region81: #{_lambda_.1} parent=1 // pred_fallthru
      _
    // Predicated region
    $region82: #{_lambda_.1} parent=1 // pred_check
      _
    $region83: #{_lambda_.1} parent=1 // pred_check_branch
      %87 = sbr.rel (0) target = $region85
    $region84: #{_lambda_.1} parent=1 // pred_region
      _
    $region85: #{_lambda_.1} parent=1 // pred_fallthru
      _
    // Predicated region
    $region86: #{_lambda_.1} parent=1 // pred_check
      _
    $region87: #{_lambda_.1} parent=1 // pred_check_branch
      %89 = sbr.rel (0) target = $region89
    $region88: #{_lambda_.1} parent=1 // pred_region
      %90 = dma.done [#allocation6], 512
    $region89: #{_lambda_.1} parent=1 // pred_fallthru
      _
    %v92 = vlaneseq
    %v93 = vshrl.u32 %v92, 7
    %v94 = vadd.s32 %v93, 8
    %v95 = vld [vmem:[%s1] sm:$0xff]
    %v96 = vld [vmem:[%s1 + $0x8] sm:$0xff]
    %s97 = sld [smem:[#allocation3]]
    %v98 = vstv %s97
    %vm99 = vcmp.eq.s32.totalorder %v93, %v98
    %vm100 = vcmp.eq.s32.totalorder %v94, %v98
    %v101 = vsel %vm99, 1, 0
    %v102 = vsel %vm100, 1, 0
    %vm103 = vcmp.eq.s32.totalorder %v101, 1
    %vm104 = vcmp.eq.s32.totalorder %v102, 1
    %v105 = vsel %vm103, %v95, 0.0
    %v106 = vsel %vm104, %v96, 0.0
    %vm107 = vcmask 261120
    %v108 = vsel %vm107, %v105, 0.0
    %v109 = vsel %vm107, %v106, 0.0
    %v110 = vadd.f32 %v108, %v109
    %v111 = vrot.slane %v110, 4
    %v112 = vadd.f32 %v110, %v111
    %v113 = vrot.slane %v112, 2
    %v114 = vadd.f32 %v112, %v113
    %v115 = vrot.slane %v114, 1
    %v116 = vadd.f32 %v114, %v115
    %s117 = sld [smem:[#allocation3 + $0x1]]
    %v118 = vstv %s117
    %vm119 = vcmp.eq.s32.totalorder %v93, %v118
    %vm120 = vcmp.eq.s32.totalorder %v94, %v118
    %v121 = vsel %vm119, 1, 0
    %v122 = vsel %vm120, 1, 0
    %vm123 = vcmp.eq.s32.totalorder %v121, 1
    %vm124 = vcmp.eq.s32.totalorder %v122, 1
    %v125 = vsel %vm123, %v95, 0.0
    %v126 = vsel %vm124, %v96, 0.0
    %v127 = vsel %vm107, %v125, 0.0
    %v128 = vsel %vm107, %v126, 0.0
    %v129 = vadd.f32 %v127, %v128
    %v130 = vrot.slane %v129, 4
    %v131 = vadd.f32 %v129, %v130
    %v132 = vrot.slane %v131, 2
    %v133 = vadd.f32 %v131, %v132
    %v134 = vrot.slane %v133, 1
    %v135 = vadd.f32 %v133, %v134
    %s136 = sld [smem:[#allocation3 + $0x2]]
    %v137 = vstv %s136
    %vm138 = vcmp.eq.s32.totalorder %v93, %v137
    %vm139 = vcmp.eq.s32.totalorder %v94, %v137
    %v140 = vsel %vm138, 1, 0
    %v141 = vsel %vm139, 1, 0
    %vm142 = vcmp.eq.s32.totalorder %v140, 1
    %vm143 = vcmp.eq.s32.totalorder %v141, 1
    %v144 = vsel %vm142, %v95, 0.0
    %v145 = vsel %vm143, %v96, 0.0
    %v146 = vsel %vm107, %v144, 0.0
    %v147 = vsel %vm107, %v145, 0.0
    %v148 = vadd.f32 %v146, %v147
    %v149 = vrot.slane %v148, 4
    %v150 = vadd.f32 %v148, %v149
    %v151 = vrot.slane %v150, 2
    %v152 = vadd.f32 %v150, %v151
    %v153 = vrot.slane %v152, 1
    %v154 = vadd.f32 %v152, %v153
    %s155 = sld [smem:[#allocation3 + $0x3]]
    %v156 = vstv %s155
    %vm157 = vcmp.eq.s32.totalorder %v93, %v156
    %vm158 = vcmp.eq.s32.totalorder %v94, %v156
    %v159 = vsel %vm157, 1, 0
    %v160 = vsel %vm158, 1, 0
    %vm161 = vcmp.eq.s32.totalorder %v159, 1
    %vm162 = vcmp.eq.s32.totalorder %v160, 1
    %v163 = vsel %vm161, %v95, 0.0
    %v164 = vsel %vm162, %v96, 0.0
    %v165 = vsel %vm107, %v163, 0.0
    %v166 = vsel %vm107, %v164, 0.0
    %v167 = vadd.f32 %v165, %v166
    %v168 = vrot.slane %v167, 4
    %v169 = vadd.f32 %v167, %v168
    %v170 = vrot.slane %v169, 2
    %v171 = vadd.f32 %v169, %v170
    %v172 = vrot.slane %v171, 1
    %v173 = vadd.f32 %v171, %v172
    %s174 = sld [smem:[#allocation3 + $0x4]]
    %v175 = vstv %s174
    %vm176 = vcmp.eq.s32.totalorder %v93, %v175
    %vm177 = vcmp.eq.s32.totalorder %v94, %v175
    %v178 = vsel %vm176, 1, 0
    %v179 = vsel %vm177, 1, 0
    %vm180 = vcmp.eq.s32.totalorder %v178, 1
    %vm181 = vcmp.eq.s32.totalorder %v179, 1
    %v182 = vsel %vm180, %v95, 0.0
    %v183 = vsel %vm181, %v96, 0.0
    %v184 = vsel %vm107, %v182, 0.0
    %v185 = vsel %vm107, %v183, 0.0
    %v186 = vadd.f32 %v184, %v185
    %v187 = vrot.slane %v186, 4
    %v188 = vadd.f32 %v186, %v187
    %v189 = vrot.slane %v188, 2
    %v190 = vadd.f32 %v188, %v189
    %v191 = vrot.slane %v190, 1
    %v192 = vadd.f32 %v190, %v191
    %s193 = sld [smem:[#allocation3 + $0x5]]
    %v194 = vstv %s193
    %vm195 = vcmp.eq.s32.totalorder %v93, %v194
    %vm196 = vcmp.eq.s32.totalorder %v94, %v194
    %v197 = vsel %vm195, 1, 0
    %v198 = vsel %vm196, 1, 0
    %vm199 = vcmp.eq.s32.totalorder %v197, 1
    %vm200 = vcmp.eq.s32.totalorder %v198, 1
    %v201 = vsel %vm199, %v95, 0.0
    %v202 = vsel %vm200, %v96, 0.0
    %v203 = vsel %vm107, %v201, 0.0
    %v204 = vsel %vm107, %v202, 0.0
    %v205 = vadd.f32 %v203, %v204
    %v206 = vrot.slane %v205, 4
    %v207 = vadd.f32 %v205, %v206
    %v208 = vrot.slane %v207, 2
    %v209 = vadd.f32 %v207, %v208
    %v210 = vrot.slane %v209, 1
    %v211 = vadd.f32 %v209, %v210
    %s212 = sld [smem:[#allocation3 + $0x6]]
    %v213 = vstv %s212
    %vm214 = vcmp.eq.s32.totalorder %v93, %v213
    %vm215 = vcmp.eq.s32.totalorder %v94, %v213
    %v216 = vsel %vm214, 1, 0
    %v217 = vsel %vm215, 1, 0
    %vm218 = vcmp.eq.s32.totalorder %v216, 1
    %vm219 = vcmp.eq.s32.totalorder %v217, 1
    %v220 = vsel %vm218, %v95, 0.0
    %v221 = vsel %vm219, %v96, 0.0
    %v222 = vsel %vm107, %v220, 0.0
    %v223 = vsel %vm107, %v221, 0.0
    %v224 = vadd.f32 %v222, %v223
    %v225 = vrot.slane %v224, 4
    %v226 = vadd.f32 %v224, %v225
    %v227 = vrot.slane %v226, 2
    %v228 = vadd.f32 %v226, %v227
    %v229 = vrot.slane %v228, 1
    %v230 = vadd.f32 %v228, %v229
    %s231 = sld [smem:[#allocation3 + $0x7]]
    %v232 = vstv %s231
    %vm233 = vcmp.eq.s32.totalorder %v93, %v232
    %vm234 = vcmp.eq.s32.totalorder %v94, %v232
    %v235 = vsel %vm233, 1, 0
    %v236 = vsel %vm234, 1, 0
    %vm237 = vcmp.eq.s32.totalorder %v235, 1
    %vm238 = vcmp.eq.s32.totalorder %v236, 1
    %v239 = vsel %vm237, %v95, 0.0
    %v240 = vsel %vm238, %v96, 0.0
    %v241 = vsel %vm107, %v239, 0.0
    %v242 = vsel %vm107, %v240, 0.0
    %v243 = vadd.f32 %v241, %v242
    %v244 = vrot.slane %v243, 4
    %v245 = vadd.f32 %v243, %v244
    %v246 = vrot.slane %v245, 2
    %v247 = vadd.f32 %v245, %v246
    %v248 = vrot.slane %v247, 1
    %v249 = vadd.f32 %v247, %v248
    %s250 = scalar_lea.vmem %s1, 16
    %v251 = vld [vmem:[%s250] sm:$0xff]
    %v252 = vld [vmem:[%s250 + $0x8] sm:$0xff]
    %s253 = sld [smem:[#allocation3 + $0x80]]
    %v254 = vstv %s253
    %vm255 = vcmp.eq.s32.totalorder %v93, %v254
    %vm256 = vcmp.eq.s32.totalorder %v94, %v254
    %v257 = vsel %vm255, 1, 0
    %v258 = vsel %vm256, 1, 0
    %vm259 = vcmp.eq.s32.totalorder %v257, 1
    %vm260 = vcmp.eq.s32.totalorder %v258, 1
    %v261 = vsel %vm259, %v251, 0.0
    %v262 = vsel %vm260, %v252, 0.0
    %v263 = vsel %vm107, %v261, 0.0
    %v264 = vsel %vm107, %v262, 0.0
    %v265 = vadd.f32 %v263, %v264
    %v266 = vrot.slane %v265, 4
    %v267 = vadd.f32 %v265, %v266
    %v268 = vrot.slane %v267, 2
    %v269 = vadd.f32 %v267, %v268
    %v270 = vrot.slane %v269, 1
    %v271 = vadd.f32 %v269, %v270
    %s272 = sld [smem:[#allocation3 + $0x81]]
    %v273 = vstv %s272
    %vm274 = vcmp.eq.s32.totalorder %v93, %v273
    %vm275 = vcmp.eq.s32.totalorder %v94, %v273
    %v276 = vsel %vm274, 1, 0
    %v277 = vsel %vm275, 1, 0
    %vm278 = vcmp.eq.s32.totalorder %v276, 1
    %vm279 = vcmp.eq.s32.totalorder %v277, 1
    %v280 = vsel %vm278, %v251, 0.0
    %v281 = vsel %vm279, %v252, 0.0
    %v282 = vsel %vm107, %v280, 0.0
    %v283 = vsel %vm107, %v281, 0.0
    %v284 = vadd.f32 %v282, %v283
    %v285 = vrot.slane %v284, 4
    %v286 = vadd.f32 %v284, %v285
    %v287 = vrot.slane %v286, 2
    %v288 = vadd.f32 %v286, %v287
    %v289 = vrot.slane %v288, 1
    %v290 = vadd.f32 %v288, %v289
    %s291 = sld [smem:[#allocation3 + $0x82]]
    %v292 = vstv %s291
    %vm293 = vcmp.eq.s32.totalorder %v93, %v292
    %vm294 = vcmp.eq.s32.totalorder %v94, %v292
    %v295 = vsel %vm293, 1, 0
    %v296 = vsel %vm294, 1, 0
    %vm297 = vcmp.eq.s32.totalorder %v295, 1
    %vm298 = vcmp.eq.s32.totalorder %v296, 1
    %v299 = vsel %vm297, %v251, 0.0
    %v300 = vsel %vm298, %v252, 0.0
    %v301 = vsel %vm107, %v299, 0.0
    %v302 = vsel %vm107, %v300, 0.0
    %v303 = vadd.f32 %v301, %v302
    %v304 = vrot.slane %v303, 4
    %v305 = vadd.f32 %v303, %v304
    %v306 = vrot.slane %v305, 2
    %v307 = vadd.f32 %v305, %v306
    %v308 = vrot.slane %v307, 1
    %v309 = vadd.f32 %v307, %v308
    %s310 = sld [smem:[#allocation3 + $0x83]]
    %v311 = vstv %s310
    %vm312 = vcmp.eq.s32.totalorder %v93, %v311
    %vm313 = vcmp.eq.s32.totalorder %v94, %v311
    %v314 = vsel %vm312, 1, 0
    %v315 = vsel %vm313, 1, 0
    %vm316 = vcmp.eq.s32.totalorder %v314, 1
    %vm317 = vcmp.eq.s32.totalorder %v315, 1
    %v318 = vsel %vm316, %v251, 0.0
    %v319 = vsel %vm317, %v252, 0.0
    %v320 = vsel %vm107, %v318, 0.0
    %v321 = vsel %vm107, %v319, 0.0
    %v322 = vadd.f32 %v320, %v321
    %v323 = vrot.slane %v322, 4
    %v324 = vadd.f32 %v322, %v323
    %v325 = vrot.slane %v324, 2
    %v326 = vadd.f32 %v324, %v325
    %v327 = vrot.slane %v326, 1
    %v328 = vadd.f32 %v326, %v327
    %s329 = sld [smem:[#allocation3 + $0x84]]
    %v330 = vstv %s329
    %vm331 = vcmp.eq.s32.totalorder %v93, %v330
    %vm332 = vcmp.eq.s32.totalorder %v94, %v330
    %v333 = vsel %vm331, 1, 0
    %v334 = vsel %vm332, 1, 0
    %vm335 = vcmp.eq.s32.totalorder %v333, 1
    %vm336 = vcmp.eq.s32.totalorder %v334, 1
    %v337 = vsel %vm335, %v251, 0.0
    %v338 = vsel %vm336, %v252, 0.0
    %v339 = vsel %vm107, %v337, 0.0
    %v340 = vsel %vm107, %v338, 0.0
    %v341 = vadd.f32 %v339, %v340
    %v342 = vrot.slane %v341, 4
    %v343 = vadd.f32 %v341, %v342
    %v344 = vrot.slane %v343, 2
    %v345 = vadd.f32 %v343, %v344
    %v346 = vrot.slane %v345, 1
    %v347 = vadd.f32 %v345, %v346
    %s348 = sld [smem:[#allocation3 + $0x85]]
    %v349 = vstv %s348
    %vm350 = vcmp.eq.s32.totalorder %v93, %v349
    %vm351 = vcmp.eq.s32.totalorder %v94, %v349
    %v352 = vsel %vm350, 1, 0
    %v353 = vsel %vm351, 1, 0
    %vm354 = vcmp.eq.s32.totalorder %v352, 1
    %vm355 = vcmp.eq.s32.totalorder %v353, 1
    %v356 = vsel %vm354, %v251, 0.0
    %v357 = vsel %vm355, %v252, 0.0
    %v358 = vsel %vm107, %v356, 0.0
    %v359 = vsel %vm107, %v357, 0.0
    %v360 = vadd.f32 %v358, %v359
    %v361 = vrot.slane %v360, 4
    %v362 = vadd.f32 %v360, %v361
    %v363 = vrot.slane %v362, 2
    %v364 = vadd.f32 %v362, %v363
    %v365 = vrot.slane %v364, 1
    %v366 = vadd.f32 %v364, %v365
    %s367 = sld [smem:[#allocation3 + $0x86]]
    %v368 = vstv %s367
    %vm369 = vcmp.eq.s32.totalorder %v93, %v368
    %vm370 = vcmp.eq.s32.totalorder %v94, %v368
    %v371 = vsel %vm369, 1, 0
    %v372 = vsel %vm370, 1, 0
    %vm373 = vcmp.eq.s32.totalorder %v371, 1
    %vm374 = vcmp.eq.s32.totalorder %v372, 1
    %v375 = vsel %vm373, %v251, 0.0
    %v376 = vsel %vm374, %v252, 0.0
    %v377 = vsel %vm107, %v375, 0.0
    %v378 = vsel %vm107, %v376, 0.0
    %v379 = vadd.f32 %v377, %v378
    %v380 = vrot.slane %v379, 4
    %v381 = vadd.f32 %v379, %v380
    %v382 = vrot.slane %v381, 2
    %v383 = vadd.f32 %v381, %v382
    %v384 = vrot.slane %v383, 1
    %v385 = vadd.f32 %v383, %v384
    %s386 = sld [smem:[#allocation3 + $0x87]]
    %v387 = vstv %s386
    %vm388 = vcmp.eq.s32.totalorder %v93, %v387
    %vm389 = vcmp.eq.s32.totalorder %v94, %v387
    %v390 = vsel %vm388, 1, 0
    %v391 = vsel %vm389, 1, 0
    %vm392 = vcmp.eq.s32.totalorder %v390, 1
    %vm393 = vcmp.eq.s32.totalorder %v391, 1
    %v394 = vsel %vm392, %v251, 0.0
    %v395 = vsel %vm393, %v252, 0.0
    %v396 = vsel %vm107, %v394, 0.0
    %v397 = vsel %vm107, %v395, 0.0
    %v398 = vadd.f32 %v396, %v397
    %v399 = vrot.slane %v398, 4
    %v400 = vadd.f32 %v398, %v399
    %v401 = vrot.slane %v400, 2
    %v402 = vadd.f32 %v400, %v401
    %v403 = vrot.slane %v402, 1
    %v404 = vadd.f32 %v402, %v403
    %vm405 = vcmask 1040384
    %v406 = vsel %vm405, %v116, %v135
    %vm407 = vcmask 1041408
    %v408 = vsel %vm407, %v406, %v154
    %vm409 = vcmask 1042432
    %v410 = vsel %vm409, %v408, %v173
    %vm411 = vcmask 1043456
    %v412 = vsel %vm411, %v410, %v192
    %vm413 = vcmask 1044480
    %v414 = vsel %vm413, %v412, %v211
    %vm415 = vcmask 1045504
    %v416 = vsel %vm415, %v414, %v230
    %vm417 = vcmask 1046528
    %v418 = vsel %vm417, %v416, %v249
    %v419 = vsel %vm405, %v271, %v290
    %v420 = vsel %vm407, %v419, %v309
    %v421 = vsel %vm409, %v420, %v328
    %v422 = vsel %vm411, %v421, %v347
    %v423 = vsel %vm413, %v422, %v366
    %v424 = vsel %vm415, %v423, %v385
    %v425 = vsel %vm417, %v424, %v404
    %v426 = vld [vmem:[%s2] sm:$0xff]
    %v427 = vld [vmem:[%s2 + $0x8] sm:$0xff]
    %429 = vset.pattern.permute.xlu0 0
    %430 = vperm.xlu0 %429, %v426
    %v431 = vpop.permute.xlu0 %430
    %434 = vset.pattern.permute.xlu0 0
    %435 = vperm.xlu0 %434, %v427
    %v436 = vpop.permute.xlu0 %435
    %v438 = vmul.f32 %v418, %v431
    %v439 = vmul.f32 %v425, %v436
    %v440 = vld [vmem:[%s3] sm:$0xff]
    %v441 = vadd.f32 %v438, %v440
    %v442 = vadd.f32 %v439, %v440
    %v443 = vld [vmem:[%s4] sm:$0xff]
    %v444 = vld [vmem:[%s4 + $0x8] sm:$0xff]
    %v445 = vpack.c.bf16 %v442, %v441
    %v446 = vld [vmem:[%s8] sm:$0xf]
    %v447 = vld [vmem:[%s8 + $0x4] sm:$0xf]
    %v448 = vld [vmem:[%s8 + $0x8] sm:$0xf]
    %v449 = vld [vmem:[%s8 + $0xc] sm:$0xf]
    %v450 = vld [vmem:[%s9] sm:$0x1]
    %v452 = vlaneseq
    %v453 = vshrl.u32 %v452, 7
    %v454 = vsub.s32 0, %v453
    %v455 = vrot.slane %v450, %v454
    %v461 = vunpack.c.l.b16 %v446
    %v462 = vunpack.c.l.b16 %v447
    %v463 = vunpack.c.l.b16 %v448
    %v464 = vunpack.c.l.b16 %v449
    %v465 = vpack.c.b16 %v462, %v461
    %v466 = vpack.c.b16 %v464, %v463
    %v470 = vsel %vm107, %v445, 0
    %472 = vmatprep.subr.bf16.mxu0 0
    %473 = vmatpush1.bf16.msra.mxu0 0
    %474 = vmatprep.subr.bf16.mxu0 0
    %475 = vmatpush1.bf16.msra.mxu0 0
    %476 = vmatprep.subr.bf16.mxu0 0
    %477 = vmatpush1.bf16.msra.mxu0 0
    %478 = vmatprep.subr.bf16.mxu0 0
    %479 = vmatpush1.bf16.msra.mxu0 0
    %480 = vmatprep.subr.bf16.mxu0 0
    %481 = vmatpush1.bf16.msra.mxu0 0
    %482 = vmatprep.subr.bf16.mxu0 0
    %483 = vmatpush1.bf16.msra.mxu0 0
    %484 = vmatprep.subr.bf16.mxu0 0
    %485 = vmatpush1.bf16.msra.mxu0 %v466
    %486 = vmatprep.subr.bf16.mxu0 0
    %487 = vmatpush1.bf16.msra.mxu0 %v465
    %488 = vmatprep.subr.bf16.mxu0 0
    %489 = vmatpush2.bf16.msra.mxu0 0
    %490 = vmatprep.subr.bf16.mxu0 0
    %491 = vmatpush2.bf16.msra.mxu0 0
    %492 = vmatprep.subr.bf16.mxu0 0
    %493 = vmatpush2.bf16.msra.mxu0 0
    %494 = vmatprep.subr.bf16.mxu0 0
    %495 = vmatpush2.bf16.msra.mxu0 0
    %496 = vmatprep.subr.bf16.mxu0 0
    %497 = vmatpush2.bf16.msra.mxu0 0
    %498 = vmatprep.subr.bf16.mxu0 0
    %499 = vmatpush2.bf16.msra.mxu0 0
    %500 = vmatprep.subr.bf16.mxu0 0
    %501 = vmatpush2.bf16.msra.mxu0 0
    %502 = vmatprep.subr.bf16.mxu0 0
    %503 = vmatpush2.bf16.msra.mxu0 0
    %504 = vmatprep.mubr.bf16.mxu0 0
    %505 = vmatmul.mubr.bf16.gmra.mxu0 %v470
    %v506 = vpop.f32.mrf.mxu0
    %v507 = vadd.f32 %v455, %v506
    %v508 = vpop.f32.mrf.mxu0
    %v509 = vpop.f32.mrf.mxu0
    %v510 = vadd.f32 %v455, %v509
    %v511 = vpop.f32.mrf.mxu0
    %512 = vdwg.mxu0
    %v513 = vpack.c.bf16 %v510, %v507
    %515 = vrot.lane.b32.xlu0 %v513, 96
    %v516 = vpop.permute.xlu0 %515
    %vm517 = vcmask 64512
    %v519 = vsel %vm517, %v513, 0
    %v522 = vsel %vm517, %v516, 0
    %524 = vmatprep.subr.bf16.mxu0 0
    %525 = vmatpush1.bf16.xpose.msra.mxu0 0
    %526 = vmatprep.subr.bf16.mxu0 0
    %527 = vmatpush1.bf16.xpose.msra.mxu0 0
    %528 = vmatprep.subr.bf16.mxu0 0
    %529 = vmatpush1.bf16.xpose.msra.mxu0 0
    %530 = vmatprep.subr.bf16.mxu0 0
    %531 = vmatpush1.bf16.xpose.msra.mxu0 0
    %532 = vmatprep.subr.bf16.mxu0 0
    %533 = vmatpush1.bf16.xpose.msra.mxu0 0
    %534 = vmatprep.subr.bf16.mxu0 0
    %535 = vmatpush1.bf16.xpose.msra.mxu0 0
    %536 = vmatprep.subr.bf16.mxu0 0
    %537 = vmatpush1.bf16.xpose.msra.mxu0 0
    %538 = vmatprep.subr.bf16.mxu0 0
    %539 = vmatpush1.bf16.xpose.msra.mxu0 %v522
    %540 = vmatprep.subr.bf16.mxu0 0
    %541 = vmatpush2.bf16.xpose.msra.mxu0 0
    %542 = vmatprep.subr.bf16.mxu0 0
    %543 = vmatpush2.bf16.xpose.msra.mxu0 0
    %544 = vmatprep.subr.bf16.mxu0 0
    %545 = vmatpush2.bf16.xpose.msra.mxu0 0
    %546 = vmatprep.subr.bf16.mxu0 0
    %547 = vmatpush2.bf16.xpose.msra.mxu0 0
    %548 = vmatprep.subr.bf16.mxu0 0
    %549 = vmatpush2.bf16.xpose.msra.mxu0 0
    %550 = vmatprep.subr.bf16.mxu0 0
    %551 = vmatpush2.bf16.xpose.msra.mxu0 0
    %552 = vmatprep.subr.bf16.mxu0 0
    %553 = vmatpush2.bf16.xpose.msra.mxu0 0
    %554 = vmatprep.subr.bf16.mxu0 0
    %555 = vmatpush2.bf16.xpose.msra.mxu0 0
    %556 = vmatprep.mubr.bf16.mxu0 0
    %557 = vmatmul.mubr.bf16.gmra.mxu0 %v519
    %v558 = vpop.f32.mrf.mxu0
    %v559 = vadd.f32 %v443, %v558
    %v560 = vpop.f32.mrf.mxu0
    %v561 = vpop.f32.mrf.mxu0
    %v562 = vadd.f32 %v444, %v561
    %v563 = vpop.f32.mrf.mxu0
    %564 = vdwg.mxu0
    %vm565 = vcmask 130048
    %v566 = vsel %vm565, %v559, -inf
    %567 = vmax.xlane.f32.xlu0 %v566
    %v568 = vpop.xlane.xlu0 %567
    %v569 = vsel %vm565, %v562, -inf
    %570 = vmax.xlane.f32.xlu0 %v569
    %v571 = vpop.xlane.xlu0 %570
    %v572 = vsub.f32 %v559, %v568
    %v573 = vsub.f32 %v562, %v571
    %v574 = vmul.f32 %v572, 1.442695
    %v575 = vpow.pop %v574
    %v576 = vmul.f32 %v573, 1.442695
    %v577 = vpow.pop %v576
    %v578 = vsel %vm565, %v575, 0.0
    %579 = vadd.xlane.f32.xlu0 %v578
    %v580 = vpop.xlane.xlu0 %579
    %v581 = vsel %vm565, %v577, 0.0
    %582 = vadd.xlane.f32.xlu0 %v581
    %v583 = vpop.xlane.xlu0 %582
    %v584 = vrcp.pop %v580
    %v585 = vrcp.pop %v583
    %v586 = vmul.f32 %v575, %v584
    %v587 = vmul.f32 %v577, %v585
    %v588 = vpack.c.bf16 %v587, %v586
    %589 = vrot.lane.b32.xlu0 %v513, 64
    %v590 = vpop.permute.xlu0 %589
    %v593 = vsel %vm565, %v588, 0
    %595 = vmatprep.subr.bf16.mxu0 0
    %596 = vmatpush1.bf16.msra.mxu0 0
    %597 = vmatprep.subr.bf16.mxu0 0
    %598 = vmatpush1.bf16.msra.mxu0 0
    %599 = vmatprep.subr.bf16.mxu0 0
    %600 = vmatpush1.bf16.msra.mxu0 0
    %601 = vmatprep.subr.bf16.mxu0 0
    %602 = vmatpush1.bf16.msra.mxu0 0
    %603 = vmatprep.subr.bf16.mxu0 0
    %604 = vmatpush1.bf16.msra.mxu0 0
    %605 = vmatprep.subr.bf16.mxu0 0
    %606 = vmatpush1.bf16.msra.mxu0 0
    %607 = vmatprep.subr.bf16.mxu0 0
    %608 = vmatpush1.bf16.msra.mxu0 0
    %609 = vmatprep.subr.bf16.mxu0 0
    %610 = vmatpush1.bf16.msra.mxu0 %v590
    %611 = vmatprep.subr.bf16.mxu0 0
    %612 = vmatpush2.bf16.msra.mxu0 0
    %613 = vmatprep.subr.bf16.mxu0 0
    %614 = vmatpush2.bf16.msra.mxu0 0
    %615 = vmatprep.subr.bf16.mxu0 0
    %616 = vmatpush2.bf16.msra.mxu0 0
    %617 = vmatprep.subr.bf16.mxu0 0
    %618 = vmatpush2.bf16.msra.mxu0 0
    %619 = vmatprep.subr.bf16.mxu0 0
    %620 = vmatpush2.bf16.msra.mxu0 0
    %621 = vmatprep.subr.bf16.mxu0 0
    %622 = vmatpush2.bf16.msra.mxu0 0
    %623 = vmatprep.subr.bf16.mxu0 0
    %624 = vmatpush2.bf16.msra.mxu0 0
    %625 = vmatprep.subr.bf16.mxu0 0
    %626 = vmatpush2.bf16.msra.mxu0 0
    %627 = vmatprep.mubr.bf16.mxu0 0
    %628 = vmatmul.mubr.bf16.gmra.mxu0 %v593
    %v629 = vpop.f32.mrf.mxu0
    %v630 = vadd.f32 0.0, %v629
    %v631 = vpop.f32.mrf.mxu0
    %v632 = vpop.f32.mrf.mxu0
    %v633 = vadd.f32 0.0, %v632
    %v634 = vpop.f32.mrf.mxu0
    %635 = vdwg.mxu0
    %v636 = vpack.c.bf16 %v633, %v630
    %v637 = vld [vmem:[%s10] sm:$0xf]
    %638 = vrot.lane.b32.xlu0 %v513, 120
    %v639 = vpop.permute.xlu0 %638
    %640 = vrot.lane.b32.xlu0 %v513, 88
    %v641 = vpop.permute.xlu0 %640
    %v643 = vsel %vm517, %v639, 0
    %v646 = vsel %vm517, %v641, 0
    %648 = vmatprep.subr.bf16.mxu0 0
    %649 = vmatpush1.bf16.xpose.msra.mxu0 0
    %650 = vmatprep.subr.bf16.mxu0 0
    %651 = vmatpush1.bf16.xpose.msra.mxu0 0
    %652 = vmatprep.subr.bf16.mxu0 0
    %653 = vmatpush1.bf16.xpose.msra.mxu0 0
    %654 = vmatprep.subr.bf16.mxu0 0
    %655 = vmatpush1.bf16.xpose.msra.mxu0 0
    %656 = vmatprep.subr.bf16.mxu0 0
    %657 = vmatpush1.bf16.xpose.msra.mxu0 0
    %658 = vmatprep.subr.bf16.mxu0 0
    %659 = vmatpush1.bf16.xpose.msra.mxu0 0
    %660 = vmatprep.subr.bf16.mxu0 0
    %661 = vmatpush1.bf16.xpose.msra.mxu0 0
    %662 = vmatprep.subr.bf16.mxu0 0
    %663 = vmatpush1.bf16.xpose.msra.mxu0 %v646
    %664 = vmatprep.subr.bf16.mxu0 0
    %665 = vmatpush2.bf16.xpose.msra.mxu0 0
    %666 = vmatprep.subr.bf16.mxu0 0
    %667 = vmatpush2.bf16.xpose.msra.mxu0 0
    %668 = vmatprep.subr.bf16.mxu0 0
    %669 = vmatpush2.bf16.xpose.msra.mxu0 0
    %670 = vmatprep.subr.bf16.mxu0 0
    %671 = vmatpush2.bf16.xpose.msra.mxu0 0
    %672 = vmatprep.subr.bf16.mxu0 0
    %673 = vmatpush2.bf16.xpose.msra.mxu0 0
    %674 = vmatprep.subr.bf16.mxu0 0
    %675 = vmatpush2.bf16.xpose.msra.mxu0 0
    %676 = vmatprep.subr.bf16.mxu0 0
    %677 = vmatpush2.bf16.xpose.msra.mxu0 0
    %678 = vmatprep.subr.bf16.mxu0 0
    %679 = vmatpush2.bf16.xpose.msra.mxu0 0
    %680 = vmatprep.mubr.bf16.mxu0 0
    %681 = vmatmul.mubr.bf16.gmra.mxu0 %v643
    %v682 = vpop.f32.mrf.mxu0
    %v683 = vadd.f32 %v443, %v682
    %v684 = vpop.f32.mrf.mxu0
    %v685 = vpop.f32.mrf.mxu0
    %v686 = vadd.f32 %v444, %v685
    %v687 = vpop.f32.mrf.mxu0
    %688 = vdwg.mxu0
    %v689 = vsel %vm565, %v683, -inf
    %690 = vmax.xlane.f32.xlu0 %v689
    %v691 = vpop.xlane.xlu0 %690
    %v692 = vsel %vm565, %v686, -inf
    %693 = vmax.xlane.f32.xlu0 %v692
    %v694 = vpop.xlane.xlu0 %693
    %v695 = vsub.f32 %v683, %v691
    %v696 = vsub.f32 %v686, %v694
    %v697 = vmul.f32 %v695, 1.442695
    %v698 = vpow.pop %v697
    %v699 = vmul.f32 %v696, 1.442695
    %v700 = vpow.pop %v699
    %v701 = vsel %vm565, %v698, 0.0
    %702 = vadd.xlane.f32.xlu0 %v701
    %v703 = vpop.xlane.xlu0 %702
    %v704 = vsel %vm565, %v700, 0.0
    %705 = vadd.xlane.f32.xlu0 %v704
    %v706 = vpop.xlane.xlu0 %705
    %v707 = vrcp.pop %v703
    %v708 = vrcp.pop %v706
    %v709 = vmul.f32 %v698, %v707
    %v710 = vmul.f32 %v700, %v708
    %v711 = vpack.c.bf16 %v710, %v709
    %712 = vrot.lane.b32.xlu0 %v513, 56
    %v713 = vpop.permute.xlu0 %712
    %v716 = vsel %vm565, %v711, 0
    %718 = vmatprep.subr.bf16.mxu0 0
    %719 = vmatpush1.bf16.msra.mxu0 0
    %720 = vmatprep.subr.bf16.mxu0 0
    %721 = vmatpush1.bf16.msra.mxu0 0
    %722 = vmatprep.subr.bf16.mxu0 0
    %723 = vmatpush1.bf16.msra.mxu0 0
    %724 = vmatprep.subr.bf16.mxu0 0
    %725 = vmatpush1.bf16.msra.mxu0 0
    %726 = vmatprep.subr.bf16.mxu0 0
    %727 = vmatpush1.bf16.msra.mxu0 0
    %728 = vmatprep.subr.bf16.mxu0 0
    %729 = vmatpush1.bf16.msra.mxu0 0
    %730 = vmatprep.subr.bf16.mxu0 0
    %731 = vmatpush1.bf16.msra.mxu0 0
    %732 = vmatprep.subr.bf16.mxu0 0
    %733 = vmatpush1.bf16.msra.mxu0 %v713
    %734 = vmatprep.subr.bf16.mxu0 0
    %735 = vmatpush2.bf16.msra.mxu0 0
    %736 = vmatprep.subr.bf16.mxu0 0
    %737 = vmatpush2.bf16.msra.mxu0 0
    %738 = vmatprep.subr.bf16.mxu0 0
    %739 = vmatpush2.bf16.msra.mxu0 0
    %740 = vmatprep.subr.bf16.mxu0 0
    %741 = vmatpush2.bf16.msra.mxu0 0
    %742 = vmatprep.subr.bf16.mxu0 0
    %743 = vmatpush2.bf16.msra.mxu0 0
    %744 = vmatprep.subr.bf16.mxu0 0
    %745 = vmatpush2.bf16.msra.mxu0 0
    %746 = vmatprep.subr.bf16.mxu0 0
    %747 = vmatpush2.bf16.msra.mxu0 0
    %748 = vmatprep.subr.bf16.mxu0 0
    %749 = vmatpush2.bf16.msra.mxu0 0
    %750 = vmatprep.mubr.bf16.mxu0 0
    %751 = vmatmul.mubr.bf16.gmra.mxu0 %v716
    %v752 = vpop.f32.mrf.mxu0
    %v753 = vadd.f32 0.0, %v752
    %v754 = vpop.f32.mrf.mxu0
    %v755 = vpop.f32.mrf.mxu0
    %v756 = vadd.f32 0.0, %v755
    %v757 = vpop.f32.mrf.mxu0
    %758 = vdwg.mxu0
    %v759 = vpack.c.bf16 %v756, %v753
    %v760 = vld [vmem:[%s10 + $0x4] sm:$0xf]
    %v762 = vsel %vm517, %v759, 0
    %v765 = vsel %vm411, %v760, 0
    %767 = vmatprep.subr.bf16.mxu0 0
    %768 = vmatpush1.bf16.msra.mxu0 0
    %769 = vmatprep.subr.bf16.mxu0 0
    %770 = vmatpush1.bf16.msra.mxu0 0
    %771 = vmatprep.subr.bf16.mxu0 0
    %772 = vmatpush1.bf16.msra.mxu0 0
    %773 = vmatprep.subr.bf16.mxu0 0
    %774 = vmatpush1.bf16.msra.mxu0 0
    %775 = vmatprep.subr.bf16.mxu0 0
    %776 = vmatpush1.bf16.msra.mxu0 0
    %777 = vmatprep.subr.bf16.mxu0 0
    %778 = vmatpush1.bf16.msra.mxu0 0
    %779 = vmatprep.subr.bf16.mxu0 0
    %780 = vmatpush1.bf16.msra.mxu0 0
    %781 = vmatprep.subr.bf16.mxu0 0
    %782 = vmatpush1.bf16.msra.mxu0 %v765
    %783 = vmatprep.subr.bf16.mxu0 0
    %784 = vmatpush2.bf16.msra.mxu0 0
    %785 = vmatprep.subr.bf16.mxu0 0
    %786 = vmatpush2.bf16.msra.mxu0 0
    %787 = vmatprep.subr.bf16.mxu0 0
    %788 = vmatpush2.bf16.msra.mxu0 0
    %789 = vmatprep.subr.bf16.mxu0 0
    %790 = vmatpush2.bf16.msra.mxu0 0
    %791 = vmatprep.subr.bf16.mxu0 0
    %792 = vmatpush2.bf16.msra.mxu0 0
    %793 = vmatprep.subr.bf16.mxu0 0
    %794 = vmatpush2.bf16.msra.mxu0 0
    %795 = vmatprep.subr.bf16.mxu0 0
    %796 = vmatpush2.bf16.msra.mxu0 0
    %797 = vmatprep.subr.bf16.mxu0 0
    %798 = vmatpush2.bf16.msra.mxu0 0
    %799 = vmatprep.mubr.bf16.mxu0 0
    %800 = vmatmul.mubr.bf16.gmra.mxu0 %v762
    %v801 = vpop.f32.mrf.mxu0
    %v802 = vadd.f32 0.0, %v801
    %v803 = vpop.f32.mrf.mxu0
    %v804 = vpop.f32.mrf.mxu0
    %v805 = vadd.f32 0.0, %v804
    %v806 = vpop.f32.mrf.mxu0
    %807 = vdwg.mxu0
    %v809 = vsel %vm517, %v636, 0
    %v812 = vsel %vm411, %v637, 0
    %814 = vmatprep.subr.bf16.mxu0 0
    %815 = vmatpush1.bf16.msra.mxu0 0
    %816 = vmatprep.subr.bf16.mxu0 0
    %817 = vmatpush1.bf16.msra.mxu0 0
    %818 = vmatprep.subr.bf16.mxu0 0
    %819 = vmatpush1.bf16.msra.mxu0 0
    %820 = vmatprep.subr.bf16.mxu0 0
    %821 = vmatpush1.bf16.msra.mxu0 0
    %822 = vmatprep.subr.bf16.mxu0 0
    %823 = vmatpush1.bf16.msra.mxu0 0
    %824 = vmatprep.subr.bf16.mxu0 0
    %825 = vmatpush1.bf16.msra.mxu0 0
    %826 = vmatprep.subr.bf16.mxu0 0
    %827 = vmatpush1.bf16.msra.mxu0 0
    %828 = vmatprep.subr.bf16.mxu0 0
    %829 = vmatpush1.bf16.msra.mxu0 %v812
    %830 = vmatprep.subr.bf16.mxu0 0
    %831 = vmatpush2.bf16.msra.mxu0 0
    %832 = vmatprep.subr.bf16.mxu0 0
    %833 = vmatpush2.bf16.msra.mxu0 0
    %834 = vmatprep.subr.bf16.mxu0 0
    %835 = vmatpush2.bf16.msra.mxu0 0
    %836 = vmatprep.subr.bf16.mxu0 0
    %837 = vmatpush2.bf16.msra.mxu0 0
    %838 = vmatprep.subr.bf16.mxu0 0
    %839 = vmatpush2.bf16.msra.mxu0 0
    %840 = vmatprep.subr.bf16.mxu0 0
    %841 = vmatpush2.bf16.msra.mxu0 0
    %842 = vmatprep.subr.bf16.mxu0 0
    %843 = vmatpush2.bf16.msra.mxu0 0
    %844 = vmatprep.subr.bf16.mxu0 0
    %845 = vmatpush2.bf16.msra.mxu0 0
    %846 = vmatprep.mubr.bf16.mxu0 0
    %847 = vmatmul.mubr.bf16.gmra.mxu0 %v809
    %v848 = vpop.f32.mrf.mxu0
    %v849 = vadd.f32 %v802, %v848
    %v850 = vpop.f32.mrf.mxu0
    %v851 = vpop.f32.mrf.mxu0
    %v852 = vadd.f32 %v805, %v851
    %v853 = vpop.f32.mrf.mxu0
    %854 = vdwg.mxu0
    %855 = vrot.lane.b32.xlu0 %v513, 112
    %v856 = vpop.permute.xlu0 %855
    %857 = vrot.lane.b32.xlu0 %v513, 80
    %v858 = vpop.permute.xlu0 %857
    %v860 = vsel %vm517, %v856, 0
    %v863 = vsel %vm517, %v858, 0
    %865 = vmatprep.subr.bf16.mxu0 0
    %866 = vmatpush1.bf16.xpose.msra.mxu0 0
    %867 = vmatprep.subr.bf16.mxu0 0
    %868 = vmatpush1.bf16.xpose.msra.mxu0 0
    %869 = vmatprep.subr.bf16.mxu0 0
    %870 = vmatpush1.bf16.xpose.msra.mxu0 0
    %871 = vmatprep.subr.bf16.mxu0 0
    %872 = vmatpush1.bf16.xpose.msra.mxu0 0
    %873 = vmatprep.subr.bf16.mxu0 0
    %874 = vmatpush1.bf16.xpose.msra.mxu0 0
    %875 = vmatprep.subr.bf16.mxu0 0
    %876 = vmatpush1.bf16.xpose.msra.mxu0 0
    %877 = vmatprep.subr.bf16.mxu0 0
    %878 = vmatpush1.bf16.xpose.msra.mxu0 0
    %879 = vmatprep.subr.bf16.mxu0 0
    %880 = vmatpush1.bf16.xpose.msra.mxu0 %v863
    %881 = vmatprep.subr.bf16.mxu0 0
    %882 = vmatpush2.bf16.xpose.msra.mxu0 0
    %883 = vmatprep.subr.bf16.mxu0 0
    %884 = vmatpush2.bf16.xpose.msra.mxu0 0
    %885 = vmatprep.subr.bf16.mxu0 0
    %886 = vmatpush2.bf16.xpose.msra.mxu0 0
    %887 = vmatprep.subr.bf16.mxu0 0
    %888 = vmatpush2.bf16.xpose.msra.mxu0 0
    %889 = vmatprep.subr.bf16.mxu0 0
    %890 = vmatpush2.bf16.xpose.msra.mxu0 0
    %891 = vmatprep.subr.bf16.mxu0 0
    %892 = vmatpush2.bf16.xpose.msra.mxu0 0
    %893 = vmatprep.subr.bf16.mxu0 0
    %894 = vmatpush2.bf16.xpose.msra.mxu0 0
    %895 = vmatprep.subr.bf16.mxu0 0
    %896 = vmatpush2.bf16.xpose.msra.mxu0 0
    %897 = vmatprep.mubr.bf16.mxu0 0
    %898 = vmatmul.mubr.bf16.gmra.mxu0 %v860
    %v899 = vpop.f32.mrf.mxu0
    %v900 = vadd.f32 %v443, %v899
    %v901 = vpop.f32.mrf.mxu0
    %v902 = vpop.f32.mrf.mxu0
    %v903 = vadd.f32 %v444, %v902
    %v904 = vpop.f32.mrf.mxu0
    %905 = vdwg.mxu0
    %v906 = vsel %vm565, %v900, -inf
    %907 = vmax.xlane.f32.xlu0 %v906
    %v908 = vpop.xlane.xlu0 %907
    %v909 = vsel %vm565, %v903, -inf
    %910 = vmax.xlane.f32.xlu0 %v909
    %v911 = vpop.xlane.xlu0 %910
    %v912 = vsub.f32 %v900, %v908
    %v913 = vsub.f32 %v903, %v911
    %v914 = vmul.f32 %v912, 1.442695
    %v915 = vpow.pop %v914
    %v916 = vmul.f32 %v913, 1.442695
    %v917 = vpow.pop %v916
    %v918 = vsel %vm565, %v915, 0.0
    %919 = vadd.xlane.f32.xlu0 %v918
    %v920 = vpop.xlane.xlu0 %919
    %v921 = vsel %vm565, %v917, 0.0
    %922 = vadd.xlane.f32.xlu0 %v921
    %v923 = vpop.xlane.xlu0 %922
    %v924 = vrcp.pop %v920
    %v925 = vrcp.pop %v923
    %v926 = vmul.f32 %v915, %v924
    %v927 = vmul.f32 %v917, %v925
    %v928 = vpack.c.bf16 %v927, %v926
    %929 = vrot.lane.b32.xlu0 %v513, 48
    %v930 = vpop.permute.xlu0 %929
    %v933 = vsel %vm565, %v928, 0
    %935 = vmatprep.subr.bf16.mxu0 0
    %936 = vmatpush1.bf16.msra.mxu0 0
    %937 = vmatprep.subr.bf16.mxu0 0
    %938 = vmatpush1.bf16.msra.mxu0 0
    %939 = vmatprep.subr.bf16.mxu0 0
    %940 = vmatpush1.bf16.msra.mxu0 0
    %941 = vmatprep.subr.bf16.mxu0 0
    %942 = vmatpush1.bf16.msra.mxu0 0
    %943 = vmatprep.subr.bf16.mxu0 0
    %944 = vmatpush1.bf16.msra.mxu0 0
    %945 = vmatprep.subr.bf16.mxu0 0
    %946 = vmatpush1.bf16.msra.mxu0 0
    %947 = vmatprep.subr.bf16.mxu0 0
    %948 = vmatpush1.bf16.msra.mxu0 0
    %949 = vmatprep.subr.bf16.mxu0 0
    %950 = vmatpush1.bf16.msra.mxu0 %v930
    %951 = vmatprep.subr.bf16.mxu0 0
    %952 = vmatpush2.bf16.msra.mxu0 0
    %953 = vmatprep.subr.bf16.mxu0 0
    %954 = vmatpush2.bf16.msra.mxu0 0
    %955 = vmatprep.subr.bf16.mxu0 0
    %956 = vmatpush2.bf16.msra.mxu0 0
    %957 = vmatprep.subr.bf16.mxu0 0
    %958 = vmatpush2.bf16.msra.mxu0 0
    %959 = vmatprep.subr.bf16.mxu0 0
    %960 = vmatpush2.bf16.msra.mxu0 0
    %961 = vmatprep.subr.bf16.mxu0 0
    %962 = vmatpush2.bf16.msra.mxu0 0
    %963 = vmatprep.subr.bf16.mxu0 0
    %964 = vmatpush2.bf16.msra.mxu0 0
    %965 = vmatprep.subr.bf16.mxu0 0
    %966 = vmatpush2.bf16.msra.mxu0 0
    %967 = vmatprep.mubr.bf16.mxu0 0
    %968 = vmatmul.mubr.bf16.gmra.mxu0 %v933
    %v969 = vpop.f32.mrf.mxu0
    %v970 = vadd.f32 0.0, %v969
    %v971 = vpop.f32.mrf.mxu0
    %v972 = vpop.f32.mrf.mxu0
    %v973 = vadd.f32 0.0, %v972
    %v974 = vpop.f32.mrf.mxu0
    %975 = vdwg.mxu0
    %v976 = vpack.c.bf16 %v973, %v970
    %v977 = vld [vmem:[%s10 + $0x8] sm:$0xf]
    %v979 = vsel %vm517, %v976, 0
    %v982 = vsel %vm411, %v977, 0
    %984 = vmatprep.subr.bf16.mxu0 0
    %985 = vmatpush1.bf16.msra.mxu0 0
    %986 = vmatprep.subr.bf16.mxu0 0
    %987 = vmatpush1.bf16.msra.mxu0 0
    %988 = vmatprep.subr.bf16.mxu0 0
    %989 = vmatpush1.bf16.msra.mxu0 0
    %990 = vmatprep.subr.bf16.mxu0 0
    %991 = vmatpush1.bf16.msra.mxu0 0
    %992 = vmatprep.subr.bf16.mxu0 0
    %993 = vmatpush1.bf16.msra.mxu0 0
    %994 = vmatprep.subr.bf16.mxu0 0
    %995 = vmatpush1.bf16.msra.mxu0 0
    %996 = vmatprep.subr.bf16.mxu0 0
    %997 = vmatpush1.bf16.msra.mxu0 0
    %998 = vmatprep.subr.bf16.mxu0 0
    %999 = vmatpush1.bf16.msra.mxu0 %v982
    %1000 = vmatprep.subr.bf16.mxu0 0
    %1001 = vmatpush2.bf16.msra.mxu0 0
    %1002 = vmatprep.subr.bf16.mxu0 0
    %1003 = vmatpush2.bf16.msra.mxu0 0
    %1004 = vmatprep.subr.bf16.mxu0 0
    %1005 = vmatpush2.bf16.msra.mxu0 0
    %1006 = vmatprep.subr.bf16.mxu0 0
    %1007 = vmatpush2.bf16.msra.mxu0 0
    %1008 = vmatprep.subr.bf16.mxu0 0
    %1009 = vmatpush2.bf16.msra.mxu0 0
    %1010 = vmatprep.subr.bf16.mxu0 0
    %1011 = vmatpush2.bf16.msra.mxu0 0
    %1012 = vmatprep.subr.bf16.mxu0 0
    %1013 = vmatpush2.bf16.msra.mxu0 0
    %1014 = vmatprep.subr.bf16.mxu0 0
    %1015 = vmatpush2.bf16.msra.mxu0 0
    %1016 = vmatprep.mubr.bf16.mxu0 0
    %1017 = vmatmul.mubr.bf16.gmra.mxu0 %v979
    %v1018 = vpop.f32.mrf.mxu0
    %v1019 = vadd.f32 0.0, %v1018
    %v1020 = vpop.f32.mrf.mxu0
    %v1021 = vpop.f32.mrf.mxu0
    %v1022 = vadd.f32 0.0, %v1021
    %v1023 = vpop.f32.mrf.mxu0
    %1024 = vdwg.mxu0
    %v1025 = vadd.f32 %v849, %v1019
    %v1026 = vadd.f32 %v852, %v1022
    %1027 = vrot.lane.b32.xlu0 %v513, 104
    %v1028 = vpop.permute.xlu0 %1027
    %1029 = vrot.lane.b32.xlu0 %v513, 72
    %v1030 = vpop.permute.xlu0 %1029
    %v1032 = vsel %vm517, %v1028, 0
    %v1035 = vsel %vm517, %v1030, 0
    %1037 = vmatprep.subr.bf16.mxu0 0
    %1038 = vmatpush1.bf16.xpose.msra.mxu0 0
    %1039 = vmatprep.subr.bf16.mxu0 0
    %1040 = vmatpush1.bf16.xpose.msra.mxu0 0
    %1041 = vmatprep.subr.bf16.mxu0 0
    %1042 = vmatpush1.bf16.xpose.msra.mxu0 0
    %1043 = vmatprep.subr.bf16.mxu0 0
    %1044 = vmatpush1.bf16.xpose.msra.mxu0 0
    %1045 = vmatprep.subr.bf16.mxu0 0
    %1046 = vmatpush1.bf16.xpose.msra.mxu0 0
    %1047 = vmatprep.subr.bf16.mxu0 0
    %1048 = vmatpush1.bf16.xpose.msra.mxu0 0
    %1049 = vmatprep.subr.bf16.mxu0 0
    %1050 = vmatpush1.bf16.xpose.msra.mxu0 0
    %1051 = vmatprep.subr.bf16.mxu0 0
    %1052 = vmatpush1.bf16.xpose.msra.mxu0 %v1035
    %1053 = vmatprep.subr.bf16.mxu0 0
    %1054 = vmatpush2.bf16.xpose.msra.mxu0 0
    %1055 = vmatprep.subr.bf16.mxu0 0
    %1056 = vmatpush2.bf16.xpose.msra.mxu0 0
    %1057 = vmatprep.subr.bf16.mxu0 0
    %1058 = vmatpush2.bf16.xpose.msra.mxu0 0
    %1059 = vmatprep.subr.bf16.mxu0 0
    %1060 = vmatpush2.bf16.xpose.msra.mxu0 0
    %1061 = vmatprep.subr.bf16.mxu0 0
    %1062 = vmatpush2.bf16.xpose.msra.mxu0 0
    %1063 = vmatprep.subr.bf16.mxu0 0
    %1064 = vmatpush2.bf16.xpose.msra.mxu0 0
    %1065 = vmatprep.subr.bf16.mxu0 0
    %1066 = vmatpush2.bf16.xpose.msra.mxu0 0
    %1067 = vmatprep.subr.bf16.mxu0 0
    %1068 = vmatpush2.bf16.xpose.msra.mxu0 0
    %1069 = vmatprep.mubr.bf16.mxu0 0
    %1070 = vmatmul.mubr.bf16.gmra.mxu0 %v1032
    %v1071 = vpop.f32.mrf.mxu0
    %v1072 = vadd.f32 %v443, %v1071
    %v1073 = vpop.f32.mrf.mxu0
    %v1074 = vpop.f32.mrf.mxu0
    %v1075 = vadd.f32 %v444, %v1074
    %v1076 = vpop.f32.mrf.mxu0
    %1077 = vdwg.mxu0
    %v1078 = vsel %vm565, %v1072, -inf
    %1079 = vmax.xlane.f32.xlu0 %v1078
    %v1080 = vpop.xlane.xlu0 %1079
    %v1081 = vsel %vm565, %v1075, -inf
    %1082 = vmax.xlane.f32.xlu0 %v1081
    %v1083 = vpop.xlane.xlu0 %1082
    %v1084 = vsub.f32 %v1072, %v1080
    %v1085 = vsub.f32 %v1075, %v1083
    %v1086 = vmul.f32 %v1084, 1.442695
    %v1087 = vpow.pop %v1086
    %v1088 = vmul.f32 %v1085, 1.442695
    %v1089 = vpow.pop %v1088
    %v1090 = vsel %vm565, %v1087, 0.0
    %1091 = vadd.xlane.f32.xlu0 %v1090
    %v1092 = vpop.xlane.xlu0 %1091
    %v1093 = vsel %vm565, %v1089, 0.0
    %1094 = vadd.xlane.f32.xlu0 %v1093
    %v1095 = vpop.xlane.xlu0 %1094
    %v1096 = vrcp.pop %v1092
    %v1097 = vrcp.pop %v1095
    %v1098 = vmul.f32 %v1087, %v1096
    %v1099 = vmul.f32 %v1089, %v1097
    %v1100 = vpack.c.bf16 %v1099, %v1098
    %1101 = vrot.lane.b32.xlu0 %v513, 40
    %v1102 = vpop.permute.xlu0 %1101
    %v1105 = vsel %vm565, %v1100, 0
    %1107 = vmatprep.subr.bf16.mxu0 0
    %1108 = vmatpush1.bf16.msra.mxu0 0
    %1109 = vmatprep.subr.bf16.mxu0 0
    %1110 = vmatpush1.bf16.msra.mxu0 0
    %1111 = vmatprep.subr.bf16.mxu0 0
    %1112 = vmatpush1.bf16.msra.mxu0 0
    %1113 = vmatprep.subr.bf16.mxu0 0
    %1114 = vmatpush1.bf16.msra.mxu0 0
    %1115 = vmatprep.subr.bf16.mxu0 0
    %1116 = vmatpush1.bf16.msra.mxu0 0
    %1117 = vmatprep.subr.bf16.mxu0 0
    %1118 = vmatpush1.bf16.msra.mxu0 0
    %1119 = vmatprep.subr.bf16.mxu0 0
    %1120 = vmatpush1.bf16.msra.mxu0 0
    %1121 = vmatprep.subr.bf16.mxu0 0
    %1122 = vmatpush1.bf16.msra.mxu0 %v1102
    %1123 = vmatprep.subr.bf16.mxu0 0
    %1124 = vmatpush2.bf16.msra.mxu0 0
    %1125 = vmatprep.subr.bf16.mxu0 0
    %1126 = vmatpush2.bf16.msra.mxu0 0
    %1127 = vmatprep.subr.bf16.mxu0 0
    %1128 = vmatpush2.bf16.msra.mxu0 0
    %1129 = vmatprep.subr.bf16.mxu0 0
    %1130 = vmatpush2.bf16.msra.mxu0 0
    %1131 = vmatprep.subr.bf16.mxu0 0
    %1132 = vmatpush2.bf16.msra.mxu0 0
    %1133 = vmatprep.subr.bf16.mxu0 0
    %1134 = vmatpush2.bf16.msra.mxu0 0
    %1135 = vmatprep.subr.bf16.mxu0 0
    %1136 = vmatpush2.bf16.msra.mxu0 0
    %1137 = vmatprep.subr.bf16.mxu0 0
    %1138 = vmatpush2.bf16.msra.mxu0 0
    %1139 = vmatprep.mubr.bf16.mxu0 0
    %1140 = vmatmul.mubr.bf16.gmra.mxu0 %v1105
    %v1141 = vpop.f32.mrf.mxu0
    %v1142 = vadd.f32 0.0, %v1141
    %v1143 = vpop.f32.mrf.mxu0
    %v1144 = vpop.f32.mrf.mxu0
    %v1145 = vadd.f32 0.0, %v1144
    %v1146 = vpop.f32.mrf.mxu0
    %1147 = vdwg.mxu0
    %v1148 = vpack.c.bf16 %v1145, %v1142
    %v1149 = vld [vmem:[%s10 + $0xc] sm:$0xf]
    %v1151 = vsel %vm517, %v1148, 0
    %v1154 = vsel %vm411, %v1149, 0
    %1156 = vmatprep.subr.bf16.mxu0 0
    %1157 = vmatpush1.bf16.msra.mxu0 0
    %1158 = vmatprep.subr.bf16.mxu0 0
    %1159 = vmatpush1.bf16.msra.mxu0 0
    %1160 = vmatprep.subr.bf16.mxu0 0
    %1161 = vmatpush1.bf16.msra.mxu0 0
    %1162 = vmatprep.subr.bf16.mxu0 0
    %1163 = vmatpush1.bf16.msra.mxu0 0
    %1164 = vmatprep.subr.bf16.mxu0 0
    %1165 = vmatpush1.bf16.msra.mxu0 0
    %1166 = vmatprep.subr.bf16.mxu0 0
    %1167 = vmatpush1.bf16.msra.mxu0 0
    %1168 = vmatprep.subr.bf16.mxu0 0
    %1169 = vmatpush1.bf16.msra.mxu0 0
    %1170 = vmatprep.subr.bf16.mxu0 0
    %1171 = vmatpush1.bf16.msra.mxu0 %v1154
    %1172 = vmatprep.subr.bf16.mxu0 0
    %1173 = vmatpush2.bf16.msra.mxu0 0
    %1174 = vmatprep.subr.bf16.mxu0 0
    %1175 = vmatpush2.bf16.msra.mxu0 0
    %1176 = vmatprep.subr.bf16.mxu0 0
    %1177 = vmatpush2.bf16.msra.mxu0 0
    %1178 = vmatprep.subr.bf16.mxu0 0
    %1179 = vmatpush2.bf16.msra.mxu0 0
    %1180 = vmatprep.subr.bf16.mxu0 0
    %1181 = vmatpush2.bf16.msra.mxu0 0
    %1182 = vmatprep.subr.bf16.mxu0 0
    %1183 = vmatpush2.bf16.msra.mxu0 0
    %1184 = vmatprep.subr.bf16.mxu0 0
    %1185 = vmatpush2.bf16.msra.mxu0 0
    %1186 = vmatprep.subr.bf16.mxu0 0
    %1187 = vmatpush2.bf16.msra.mxu0 0
    %1188 = vmatprep.mubr.bf16.mxu0 0
    %1189 = vmatmul.mubr.bf16.gmra.mxu0 %v1151
    %v1190 = vpop.f32.mrf.mxu0
    %v1191 = vadd.f32 0.0, %v1190
    %v1192 = vpop.f32.mrf.mxu0
    %v1193 = vpop.f32.mrf.mxu0
    %v1194 = vadd.f32 0.0, %v1193
    %v1195 = vpop.f32.mrf.mxu0
    %1196 = vdwg.mxu0
    %v1197 = vadd.f32 %v1025, %v1191
    %v1198 = vadd.f32 %v1026, %v1194
    %v1199 = vadd.f32 %v441, %v1197
    %v1200 = vadd.f32 %v442, %v1198
    %v1201 = vld [vmem:[%s11] sm:$0x1]
    %v1203 = vlaneseq
    %v1204 = vshrl.u32 %v1203, 7
    %v1205 = vsub.s32 0, %v1204
    %v1206 = vrot.slane %v1201, %v1205
    %v1208 = vadd.f32 %v1199, %v1206
    %v1209 = vadd.f32 %v1200, %v1206
    %v1210 = vld [vmem:[%s12] sm:$0x1]
    %v1211 = vld [vmem:[%s13] sm:$0x1]
    %v1212 = vsel %vm107, %v1208, 0.0
    %1213 = vadd.xlane.f32.xlu0 %v1212
    %v1214 = vpop.xlane.xlu0 %1213
    %v1215 = vsel %vm107, %v1209, 0.0
    %1216 = vadd.xlane.f32.xlu0 %v1215
    %v1217 = vpop.xlane.xlu0 %1216
    %v1218 = vrcp.pop 32.0
    %v1219 = vmul.f32 %v1214, %v1218
    %v1220 = vmul.f32 %v1217, %v1218
    %v1221 = vsub.f32 %v1208, %v1219
    %v1222 = vsub.f32 %v1209, %v1220
    %v1223 = vmul.f32 %v1221, %v1221
    %v1224 = vmul.f32 %v1222, %v1222
    %v1225 = vsel %vm107, %v1223, 0.0
    %1226 = vadd.xlane.f32.xlu0 %v1225
    %v1227 = vpop.xlane.xlu0 %1226
    %v1228 = vsel %vm107, %v1224, 0.0
    %1229 = vadd.xlane.f32.xlu0 %v1228
    %v1230 = vpop.xlane.xlu0 %1229
    %v1231 = vmul.f32 %v1227, %v1218
    %v1232 = vmul.f32 %v1230, %v1218
    %v1233 = vadd.f32 %v1231, 1e-06
    %v1234 = vadd.f32 %v1232, 1e-06
    %v1235 = vrsqrt.pop %v1233
    %v1236 = vrsqrt.pop %v1234
    %v1237 = vmul.f32 %v1221, %v1235
    %v1238 = vmul.f32 %v1222, %v1236
    %v1240 = vlaneseq
    %v1241 = vshrl.u32 %v1240, 7
    %v1242 = vsub.s32 0, %v1241
    %v1243 = vrot.slane %v1210, %v1242
    %v1245 = vmul.f32 %v1237, %v1243
    %v1246 = vmul.f32 %v1238, %v1243
    %v1248 = vlaneseq
    %v1249 = vshrl.u32 %v1248, 7
    %v1250 = vsub.s32 0, %v1249
    %v1251 = vrot.slane %v1211, %v1250
    %v1253 = vadd.f32 %v1245, %v1251
    %v1254 = vadd.f32 %v1246, %v1251
    %v1255 = vpack.c.bf16 %v1254, %v1253
    %v1256 = vld [vmem:[#allocation5] sm:$0xf]
    %v1257 = vld [vmem:[#allocation5 + $0x4] sm:$0xf]
    %v1258 = vld [vmem:[#allocation5 + $0x8] sm:$0xf]
    %v1259 = vld [vmem:[#allocation5 + $0xc] sm:$0xf]
    %v1260 = vld [vmem:[%s15] sm:$0x1]
    %v1262 = vlaneseq
    %v1263 = vshrl.u32 %v1262, 7
    %v1264 = vsub.s32 0, %v1263
    %v1265 = vrot.slane %v1260, %v1264
    %v1271 = vunpack.c.l.b16 %v1256
    %v1272 = vunpack.c.l.b16 %v1257
    %v1273 = vunpack.c.l.b16 %v1258
    %v1274 = vunpack.c.l.b16 %v1259
    %v1275 = vpack.c.b16 %v1272, %v1271
    %v1276 = vpack.c.b16 %v1274, %v1273
    %v1280 = vsel %vm107, %v1255, 0
    %1282 = vmatprep.subr.bf16.mxu0 0
    %1283 = vmatpush1.bf16.msra.mxu0 0
    %1284 = vmatprep.subr.bf16.mxu0 0
    %1285 = vmatpush1.bf16.msra.mxu0 0
    %1286 = vmatprep.subr.bf16.mxu0 0
    %1287 = vmatpush1.bf16.msra.mxu0 0
    %1288 = vmatprep.subr.bf16.mxu0 0
    %1289 = vmatpush1.bf16.msra.mxu0 0
    %1290 = vmatprep.subr.bf16.mxu0 0
    %1291 = vmatpush1.bf16.msra.mxu0 0
    %1292 = vmatprep.subr.bf16.mxu0 0
    %1293 = vmatpush1.bf16.msra.mxu0 0
    %1294 = vmatprep.subr.bf16.mxu0 0
    %1295 = vmatpush1.bf16.msra.mxu0 %v1276
    %1296 = vmatprep.subr.bf16.mxu0 0
    %1297 = vmatpush1.bf16.msra.mxu0 %v1275
    %1298 = vmatprep.subr.bf16.mxu0 0
    %1299 = vmatpush2.bf16.msra.mxu0 0
    %1300 = vmatprep.subr.bf16.mxu0 0
    %1301 = vmatpush2.bf16.msra.mxu0 0
    %1302 = vmatprep.subr.bf16.mxu0 0
    %1303 = vmatpush2.bf16.msra.mxu0 0
    %1304 = vmatprep.subr.bf16.mxu0 0
    %1305 = vmatpush2.bf16.msra.mxu0 0
    %1306 = vmatprep.subr.bf16.mxu0 0
    %1307 = vmatpush2.bf16.msra.mxu0 0
    %1308 = vmatprep.subr.bf16.mxu0 0
    %1309 = vmatpush2.bf16.msra.mxu0 0
    %1310 = vmatprep.subr.bf16.mxu0 0
    %1311 = vmatpush2.bf16.msra.mxu0 0
    %1312 = vmatprep.subr.bf16.mxu0 0
    %1313 = vmatpush2.bf16.msra.mxu0 0
    %1314 = vmatprep.mubr.bf16.mxu0 0
    %1315 = vmatmul.mubr.bf16.gmra.mxu0 %v1280
    %v1316 = vpop.f32.mrf.mxu0
    %v1317 = vadd.f32 %v1265, %v1316
    %v1318 = vpop.f32.mrf.mxu0
    %v1319 = vpop.f32.mrf.mxu0
    %v1320 = vadd.f32 %v1265, %v1319
    %v1321 = vpop.f32.mrf.mxu0
    %1322 = vdwg.mxu0
    %v1323 = vmul.f32 %v1317, 0.5
    %v1324 = vmul.f32 %v1320, 0.5
    %v1325 = vmul.f32 %v1317, 0.044715
    %v1326 = vmul.f32 %v1320, 0.044715
    %v1327 = vmul.f32 %v1325, %v1317
    %v1328 = vmul.f32 %v1326, %v1320
    %v1329 = vmul.f32 %v1327, %v1317
    %v1330 = vmul.f32 %v1328, %v1320
    %v1331 = vadd.f32 %v1317, %v1329
    %v1332 = vadd.f32 %v1320, %v1330
    %v1333 = vmul.f32 %v1331, 0.7978846
    %v1334 = vmul.f32 %v1332, 0.7978846
    %v1335 = vtanh.pop %v1333
    %v1336 = vtanh.pop %v1334
    %v1337 = vadd.f32 %v1335, 1.0
    %v1338 = vadd.f32 %v1336, 1.0
    %v1339 = vmul.f32 %v1323, %v1337
    %v1340 = vmul.f32 %v1324, %v1338
    %v1341 = vpack.c.bf16 %v1340, %v1339
    %v1342 = vld [vmem:[%s16] sm:$0xf]
    %v1343 = vld [vmem:[%s16 + $0x4] sm:$0xf]
    %v1344 = vld [vmem:[%s16 + $0x8] sm:$0xf]
    %v1345 = vld [vmem:[%s16 + $0xc] sm:$0xf]
    %v1346 = vld [vmem:[%s16 + $0x10] sm:$0xf]
    %v1347 = vld [vmem:[%s16 + $0x14] sm:$0xf]
    %v1348 = vld [vmem:[%s16 + $0x18] sm:$0xf]
    %v1349 = vld [vmem:[%s16 + $0x1c] sm:$0xf]
    %v1350 = vld [vmem:[%s17] sm:$0x1]
    %v1352 = vlaneseq
    %v1353 = vshrl.u32 %v1352, 7
    %v1354 = vsub.s32 0, %v1353
    %v1355 = vrot.slane %v1350, %v1354
    %v1365 = vunpack.c.l.b16 %v1342
    %v1366 = vunpack.c.l.b16 %v1343
    %v1367 = vunpack.c.l.b16 %v1344
    %v1368 = vunpack.c.l.b16 %v1345
    %v1369 = vunpack.c.l.b16 %v1346
    %v1370 = vunpack.c.l.b16 %v1347
    %v1371 = vunpack.c.l.b16 %v1348
    %v1372 = vunpack.c.l.b16 %v1349
    %v1373 = vpack.c.b16 %v1366, %v1365
    %v1374 = vpack.c.b16 %v1368, %v1367
    %v1375 = vpack.c.b16 %v1370, %v1369
    %v1376 = vpack.c.b16 %v1372, %v1371
    %vm1381 = vcmask 523264
    %v1383 = vsel %vm1381, %v1341, 0
    %1385 = vmatprep.subr.bf16.mxu0 0
    %1386 = vmatpush1.bf16.msra.mxu0 0
    %1387 = vmatprep.subr.bf16.mxu0 0
    %1388 = vmatpush1.bf16.msra.mxu0 0
    %1389 = vmatprep.subr.bf16.mxu0 0
    %1390 = vmatpush1.bf16.msra.mxu0 0
    %1391 = vmatprep.subr.bf16.mxu0 0
    %1392 = vmatpush1.bf16.msra.mxu0 0
    %1393 = vmatprep.subr.bf16.mxu0 0
    %1394 = vmatpush1.bf16.msra.mxu0 %v1376
    %1395 = vmatprep.subr.bf16.mxu0 0
    %1396 = vmatpush1.bf16.msra.mxu0 %v1375
    %1397 = vmatprep.subr.bf16.mxu0 0
    %1398 = vmatpush1.bf16.msra.mxu0 %v1374
    %1399 = vmatprep.subr.bf16.mxu0 0
    %1400 = vmatpush1.bf16.msra.mxu0 %v1373
    %1401 = vmatprep.subr.bf16.mxu0 0
    %1402 = vmatpush2.bf16.msra.mxu0 0
    %1403 = vmatprep.subr.bf16.mxu0 0
    %1404 = vmatpush2.bf16.msra.mxu0 0
    %1405 = vmatprep.subr.bf16.mxu0 0
    %1406 = vmatpush2.bf16.msra.mxu0 0
    %1407 = vmatprep.subr.bf16.mxu0 0
    %1408 = vmatpush2.bf16.msra.mxu0 0
    %1409 = vmatprep.subr.bf16.mxu0 0
    %1410 = vmatpush2.bf16.msra.mxu0 0
    %1411 = vmatprep.subr.bf16.mxu0 0
    %1412 = vmatpush2.bf16.msra.mxu0 0
    %1413 = vmatprep.subr.bf16.mxu0 0
    %1414 = vmatpush2.bf16.msra.mxu0 0
    %1415 = vmatprep.subr.bf16.mxu0 0
    %1416 = vmatpush2.bf16.msra.mxu0 0
    %1417 = vmatprep.mubr.bf16.mxu0 0
    %1418 = vmatmul.mubr.bf16.gmra.mxu0 %v1383
    %v1419 = vpop.f32.mrf.mxu0
    %v1420 = vadd.f32 %v1355, %v1419
    %v1421 = vpop.f32.mrf.mxu0
    %v1422 = vpop.f32.mrf.mxu0
    %v1423 = vadd.f32 %v1355, %v1422
    %v1424 = vpop.f32.mrf.mxu0
    %1425 = vdwg.mxu0
    %v1426 = vadd.f32 %v1208, %v1420
    %v1427 = vadd.f32 %v1209, %v1423
    %s1428 = scalar_lea.vmem %s6, 1
    %v1429 = vld [vmem:[%s1428] sm:$0x1]
    %s1430 = scalar_lea.vmem %s7, 1
    %v1431 = vld [vmem:[%s1430] sm:$0x1]
    %v1432 = vsel %vm107, %v1426, 0.0
    %1433 = vadd.xlane.f32.xlu0 %v1432
    %v1434 = vpop.xlane.xlu0 %1433
    %v1435 = vsel %vm107, %v1427, 0.0
    %1436 = vadd.xlane.f32.xlu0 %v1435
    %v1437 = vpop.xlane.xlu0 %1436
    %v1438 = vmul.f32 %v1434, %v1218
    %v1439 = vmul.f32 %v1437, %v1218
    %v1440 = vsub.f32 %v1426, %v1438
    %v1441 = vsub.f32 %v1427, %v1439
    %v1442 = vmul.f32 %v1440, %v1440
    %v1443 = vmul.f32 %v1441, %v1441
    %v1444 = vsel %vm107, %v1442, 0.0
    %1445 = vadd.xlane.f32.xlu0 %v1444
    %v1446 = vpop.xlane.xlu0 %1445
    %v1447 = vsel %vm107, %v1443, 0.0
    %1448 = vadd.xlane.f32.xlu0 %v1447
    %v1449 = vpop.xlane.xlu0 %1448
    %v1450 = vmul.f32 %v1446, %v1218
    %v1451 = vmul.f32 %v1449, %v1218
    %v1452 = vadd.f32 %v1450, 1e-06
    %v1453 = vadd.f32 %v1451, 1e-06
    %v1454 = vrsqrt.pop %v1452
    %v1455 = vrsqrt.pop %v1453
    %v1456 = vmul.f32 %v1440, %v1454
    %v1457 = vmul.f32 %v1441, %v1455
    %v1459 = vlaneseq
    %v1460 = vshrl.u32 %v1459, 7
    %v1461 = vsub.s32 0, %v1460
    %v1462 = vrot.slane %v1429, %v1461
    %v1464 = vmul.f32 %v1456, %v1462
    %v1465 = vmul.f32 %v1457, %v1462
    %v1467 = vlaneseq
    %v1468 = vshrl.u32 %v1467, 7
    %v1469 = vsub.s32 0, %v1468
    %v1470 = vrot.slane %v1431, %v1469
    %v1472 = vadd.f32 %v1464, %v1470
    %v1473 = vadd.f32 %v1465, %v1470
    %v1474 = vpack.c.bf16 %v1473, %v1472
    %s1475 = scalar_lea.vmem %s8, 16
    %v1476 = vld [vmem:[%s1475] sm:$0xf]
    %v1477 = vld [vmem:[%s1475 + $0x4] sm:$0xf]
    %v1478 = vld [vmem:[%s1475 + $0x8] sm:$0xf]
    %v1479 = vld [vmem:[%s1475 + $0xc] sm:$0xf]
    %s1480 = scalar_lea.vmem %s9, 1
    %v1481 = vld [vmem:[%s1480] sm:$0x1]
    %v1483 = vlaneseq
    %v1484 = vshrl.u32 %v1483, 7
    %v1485 = vsub.s32 0, %v1484
    %v1486 = vrot.slane %v1481, %v1485
    %v1492 = vunpack.c.l.b16 %v1476
    %v1493 = vunpack.c.l.b16 %v1477
    %v1494 = vunpack.c.l.b16 %v1478
    %v1495 = vunpack.c.l.b16 %v1479
    %v1496 = vpack.c.b16 %v1493, %v1492
    %v1497 = vpack.c.b16 %v1495, %v1494
    %v1501 = vsel %vm107, %v1474, 0
    %1503 = vmatprep.subr.bf16.mxu0 0
    %1504 = vmatpush1.bf16.msra.mxu0 0
    %1505 = vmatprep.subr.bf16.mxu0 0
    %1506 = vmatpush1.bf16.msra.mxu0 0
    %1507 = vmatprep.subr.bf16.mxu0 0
    %1508 = vmatpush1.bf16.msra.mxu0 0
    %1509 = vmatprep.subr.bf16.mxu0 0
    %1510 = vmatpush1.bf16.msra.mxu0 0
    %1511 = vmatprep.subr.bf16.mxu0 0
    %1512 = vmatpush1.bf16.msra.mxu0 0
    %1513 = vmatprep.subr.bf16.mxu0 0
    %1514 = vmatpush1.bf16.msra.mxu0 0
    %1515 = vmatprep.subr.bf16.mxu0 0
    %1516 = vmatpush1.bf16.msra.mxu0 %v1497
    %1517 = vmatprep.subr.bf16.mxu0 0
    %1518 = vmatpush1.bf16.msra.mxu0 %v1496
    %1519 = vmatprep.subr.bf16.mxu0 0
    %1520 = vmatpush2.bf16.msra.mxu0 0
    %1521 = vmatprep.subr.bf16.mxu0 0
    %1522 = vmatpush2.bf16.msra.mxu0 0
    %1523 = vmatprep.subr.bf16.mxu0 0
    %1524 = vmatpush2.bf16.msra.mxu0 0
    %1525 = vmatprep.subr.bf16.mxu0 0
    %1526 = vmatpush2.bf16.msra.mxu0 0
    %1527 = vmatprep.subr.bf16.mxu0 0
    %1528 = vmatpush2.bf16.msra.mxu0 0
    %1529 = vmatprep.subr.bf16.mxu0 0
    %1530 = vmatpush2.bf16.msra.mxu0 0
    %1531 = vmatprep.subr.bf16.mxu0 0
    %1532 = vmatpush2.bf16.msra.mxu0 0
    %1533 = vmatprep.subr.bf16.mxu0 0
    %1534 = vmatpush2.bf16.msra.mxu0 0
    %1535 = vmatprep.mubr.bf16.mxu0 0
    %1536 = vmatmul.mubr.bf16.gmra.mxu0 %v1501
    %v1537 = vpop.f32.mrf.mxu0
    %v1538 = vadd.f32 %v1486, %v1537
    %v1539 = vpop.f32.mrf.mxu0
    %v1540 = vpop.f32.mrf.mxu0
    %v1541 = vadd.f32 %v1486, %v1540
    %v1542 = vpop.f32.mrf.mxu0
    %1543 = vdwg.mxu0
    %v1544 = vpack.c.bf16 %v1541, %v1538
    %1546 = vrot.lane.b32.xlu0 %v1544, 96
    %v1547 = vpop.permute.xlu0 %1546
    %v1549 = vsel %vm517, %v1544, 0
    %v1552 = vsel %vm517, %v1547, 0
    %1554 = vmatprep.subr.bf16.mxu0 0
    %1555 = vmatpush1.bf16.xpose.msra.mxu0 0
    %1556 = vmatprep.subr.bf16.mxu0 0
    %1557 = vmatpush1.bf16.xpose.msra.mxu0 0
    %1558 = vmatprep.subr.bf16.mxu0 0
    %1559 = vmatpush1.bf16.xpose.msra.mxu0 0
    %1560 = vmatprep.subr.bf16.mxu0 0
    %1561 = vmatpush1.bf16.xpose.msra.mxu0 0
    %1562 = vmatprep.subr.bf16.mxu0 0
    %1563 = vmatpush1.bf16.xpose.msra.mxu0 0
    %1564 = vmatprep.subr.bf16.mxu0 0
    %1565 = vmatpush1.bf16.xpose.msra.mxu0 0
    %1566 = vmatprep.subr.bf16.mxu0 0
    %1567 = vmatpush1.bf16.xpose.msra.mxu0 0
    %1568 = vmatprep.subr.bf16.mxu0 0
    %1569 = vmatpush1.bf16.xpose.msra.mxu0 %v1552
    %1570 = vmatprep.subr.bf16.mxu0 0
    %1571 = vmatpush2.bf16.xpose.msra.mxu0 0
    %1572 = vmatprep.subr.bf16.mxu0 0
    %1573 = vmatpush2.bf16.xpose.msra.mxu0 0
    %1574 = vmatprep.subr.bf16.mxu0 0
    %1575 = vmatpush2.bf16.xpose.msra.mxu0 0
    %1576 = vmatprep.subr.bf16.mxu0 0
    %1577 = vmatpush2.bf16.xpose.msra.mxu0 0
    %1578 = vmatprep.subr.bf16.mxu0 0
    %1579 = vmatpush2.bf16.xpose.msra.mxu0 0
    %1580 = vmatprep.subr.bf16.mxu0 0
    %1581 = vmatpush2.bf16.xpose.msra.mxu0 0
    %1582 = vmatprep.subr.bf16.mxu0 0
    %1583 = vmatpush2.bf16.xpose.msra.mxu0 0
    %1584 = vmatprep.subr.bf16.mxu0 0
    %1585 = vmatpush2.bf16.xpose.msra.mxu0 0
    %1586 = vmatprep.mubr.bf16.mxu0 0
    %1587 = vmatmul.mubr.bf16.gmra.mxu0 %v1549
    %v1588 = vpop.f32.mrf.mxu0
    %v1589 = vadd.f32 %v443, %v1588
    %v1590 = vpop.f32.mrf.mxu0
    %v1591 = vpop.f32.mrf.mxu0
    %v1592 = vadd.f32 %v444, %v1591
    %v1593 = vpop.f32.mrf.mxu0
    %1594 = vdwg.mxu0
    %v1595 = vsel %vm565, %v1589, -inf
    %1596 = vmax.xlane.f32.xlu0 %v1595
    %v1597 = vpop.xlane.xlu0 %1596
    %v1598 = vsel %vm565, %v1592, -inf
    %1599 = vmax.xlane.f32.xlu0 %v1598
    %v1600 = vpop.xlane.xlu0 %1599
    %v1601 = vsub.f32 %v1589, %v1597
    %v1602 = vsub.f32 %v1592, %v1600
    %v1603 = vmul.f32 %v1601, 1.442695
    %v1604 = vpow.pop %v1603
    %v1605 = vmul.f32 %v1602, 1.442695
    %v1606 = vpow.pop %v1605
    %v1607 = vsel %vm565, %v1604, 0.0
    %1608 = vadd.xlane.f32.xlu0 %v1607
    %v1609 = vpop.xlane.xlu0 %1608
    %v1610 = vsel %vm565, %v1606, 0.0
    %1611 = vadd.xlane.f32.xlu0 %v1610
    %v1612 = vpop.xlane.xlu0 %1611
    %v1613 = vrcp.pop %v1609
    %v1614 = vrcp.pop %v1612
    %v1615 = vmul.f32 %v1604, %v1613
    %v1616 = vmul.f32 %v1606, %v1614
    %v1617 = vpack.c.bf16 %v1616, %v1615
    %1618 = vrot.lane.b32.xlu0 %v1544, 64
    %v1619 = vpop.permute.xlu0 %1618
    %v1622 = vsel %vm565, %v1617, 0
    %1624 = vmatprep.subr.bf16.mxu0 0
    %1625 = vmatpush1.bf16.msra.mxu0 0
    %1626 = vmatprep.subr.bf16.mxu0 0
    %1627 = vmatpush1.bf16.msra.mxu0 0
    %1628 = vmatprep.subr.bf16.mxu0 0
    %1629 = vmatpush1.bf16.msra.mxu0 0
    %1630 = vmatprep.subr.bf16.mxu0 0
    %1631 = vmatpush1.bf16.msra.mxu0 0
    %1632 = vmatprep.subr.bf16.mxu0 0
    %1633 = vmatpush1.bf16.msra.mxu0 0
    %1634 = vmatprep.subr.bf16.mxu0 0
    %1635 = vmatpush1.bf16.msra.mxu0 0
    %1636 = vmatprep.subr.bf16.mxu0 0
    %1637 = vmatpush1.bf16.msra.mxu0 0
    %1638 = vmatprep.subr.bf16.mxu0 0
    %1639 = vmatpush1.bf16.msra.mxu0 %v1619
    %1640 = vmatprep.subr.bf16.mxu0 0
    %1641 = vmatpush2.bf16.msra.mxu0 0
    %1642 = vmatprep.subr.bf16.mxu0 0
    %1643 = vmatpush2.bf16.msra.mxu0 0
    %1644 = vmatprep.subr.bf16.mxu0 0
    %1645 = vmatpush2.bf16.msra.mxu0 0
    %1646 = vmatprep.subr.bf16.mxu0 0
    %1647 = vmatpush2.bf16.msra.mxu0 0
    %1648 = vmatprep.subr.bf16.mxu0 0
    %1649 = vmatpush2.bf16.msra.mxu0 0
    %1650 = vmatprep.subr.bf16.mxu0 0
    %1651 = vmatpush2.bf16.msra.mxu0 0
    %1652 = vmatprep.subr.bf16.mxu0 0
    %1653 = vmatpush2.bf16.msra.mxu0 0
    %1654 = vmatprep.subr.bf16.mxu0 0
    %1655 = vmatpush2.bf16.msra.mxu0 0
    %1656 = vmatprep.mubr.bf16.mxu0 0
    %1657 = vmatmul.mubr.bf16.gmra.mxu0 %v1622
    %v1658 = vpop.f32.mrf.mxu0
    %v1659 = vadd.f32 0.0, %v1658
    %v1660 = vpop.f32.mrf.mxu0
    %v1661 = vpop.f32.mrf.mxu0
    %v1662 = vadd.f32 0.0, %v1661
    %v1663 = vpop.f32.mrf.mxu0
    %1664 = vdwg.mxu0
    %v1665 = vpack.c.bf16 %v1662, %v1659
    %s1666 = scalar_lea.vmem %s10, 16
    %v1667 = vld [vmem:[%s1666] sm:$0xf]
    %1668 = vrot.lane.b32.xlu0 %v1544, 120
    %v1669 = vpop.permute.xlu0 %1668
    %1670 = vrot.lane.b32.xlu0 %v1544, 88
    %v1671 = vpop.permute.xlu0 %1670
    %v1673 = vsel %vm517, %v1669, 0
    %v1676 = vsel %vm517, %v1671, 0
    %1678 = vmatprep.subr.bf16.mxu0 0
    %1679 = vmatpush1.bf16.xpose.msra.mxu0 0
    %1680 = vmatprep.subr.bf16.mxu0 0
    %1681 = vmatpush1.bf16.xpose.msra.mxu0 0
    %1682 = vmatprep.subr.bf16.mxu0 0
    %1683 = vmatpush1.bf16.xpose.msra.mxu0 0
    %1684 = vmatprep.subr.bf16.mxu0 0
    %1685 = vmatpush1.bf16.xpose.msra.mxu0 0
    %1686 = vmatprep.subr.bf16.mxu0 0
    %1687 = vmatpush1.bf16.xpose.msra.mxu0 0
    %1688 = vmatprep.subr.bf16.mxu0 0
    %1689 = vmatpush1.bf16.xpose.msra.mxu0 0
    %1690 = vmatprep.subr.bf16.mxu0 0
    %1691 = vmatpush1.bf16.xpose.msra.mxu0 0
    %1692 = vmatprep.subr.bf16.mxu0 0
    %1693 = vmatpush1.bf16.xpose.msra.mxu0 %v1676
    %1694 = vmatprep.subr.bf16.mxu0 0
    %1695 = vmatpush2.bf16.xpose.msra.mxu0 0
    %1696 = vmatprep.subr.bf16.mxu0 0
    %1697 = vmatpush2.bf16.xpose.msra.mxu0 0
    %1698 = vmatprep.subr.bf16.mxu0 0
    %1699 = vmatpush2.bf16.xpose.msra.mxu0 0
    %1700 = vmatprep.subr.bf16.mxu0 0
    %1701 = vmatpush2.bf16.xpose.msra.mxu0 0
    %1702 = vmatprep.subr.bf16.mxu0 0
    %1703 = vmatpush2.bf16.xpose.msra.mxu0 0
    %1704 = vmatprep.subr.bf16.mxu0 0
    %1705 = vmatpush2.bf16.xpose.msra.mxu0 0
    %1706 = vmatprep.subr.bf16.mxu0 0
    %1707 = vmatpush2.bf16.xpose.msra.mxu0 0
    %1708 = vmatprep.subr.bf16.mxu0 0
    %1709 = vmatpush2.bf16.xpose.msra.mxu0 0
    %1710 = vmatprep.mubr.bf16.mxu0 0
    %1711 = vmatmul.mubr.bf16.gmra.mxu0 %v1673
    %v1712 = vpop.f32.mrf.mxu0
    %v1713 = vadd.f32 %v443, %v1712
    %v1714 = vpop.f32.mrf.mxu0
    %v1715 = vpop.f32.mrf.mxu0
    %v1716 = vadd.f32 %v444, %v1715
    %v1717 = vpop.f32.mrf.mxu0
    %1718 = vdwg.mxu0
    %v1719 = vsel %vm565, %v1713, -inf
    %1720 = vmax.xlane.f32.xlu0 %v1719
    %v1721 = vpop.xlane.xlu0 %1720
    %v1722 = vsel %vm565, %v1716, -inf
    %1723 = vmax.xlane.f32.xlu0 %v1722
    %v1724 = vpop.xlane.xlu0 %1723
    %v1725 = vsub.f32 %v1713, %v1721
    %v1726 = vsub.f32 %v1716, %v1724
    %v1727 = vmul.f32 %v1725, 1.442695
    %v1728 = vpow.pop %v1727
    %v1729 = vmul.f32 %v1726, 1.442695
    %v1730 = vpow.pop %v1729
    %v1731 = vsel %vm565, %v1728, 0.0
    %1732 = vadd.xlane.f32.xlu0 %v1731
    %v1733 = vpop.xlane.xlu0 %1732
    %v1734 = vsel %vm565, %v1730, 0.0
    %1735 = vadd.xlane.f32.xlu0 %v1734
    %v1736 = vpop.xlane.xlu0 %1735
    %v1737 = vrcp.pop %v1733
    %v1738 = vrcp.pop %v1736
    %v1739 = vmul.f32 %v1728, %v1737
    %v1740 = vmul.f32 %v1730, %v1738
    %v1741 = vpack.c.bf16 %v1740, %v1739
    %1742 = vrot.lane.b32.xlu0 %v1544, 56
    %v1743 = vpop.permute.xlu0 %1742
    %v1746 = vsel %vm565, %v1741, 0
    %1748 = vmatprep.subr.bf16.mxu0 0
    %1749 = vmatpush1.bf16.msra.mxu0 0
    %1750 = vmatprep.subr.bf16.mxu0 0
    %1751 = vmatpush1.bf16.msra.mxu0 0
    %1752 = vmatprep.subr.bf16.mxu0 0
    %1753 = vmatpush1.bf16.msra.mxu0 0
    %1754 = vmatprep.subr.bf16.mxu0 0
    %1755 = vmatpush1.bf16.msra.mxu0 0
    %1756 = vmatprep.subr.bf16.mxu0 0
    %1757 = vmatpush1.bf16.msra.mxu0 0
    %1758 = vmatprep.subr.bf16.mxu0 0
    %1759 = vmatpush1.bf16.msra.mxu0 0
    %1760 = vmatprep.subr.bf16.mxu0 0
    %1761 = vmatpush1.bf16.msra.mxu0 0
    %1762 = vmatprep.subr.bf16.mxu0 0
    %1763 = vmatpush1.bf16.msra.mxu0 %v1743
    %1764 = vmatprep.subr.bf16.mxu0 0
    %1765 = vmatpush2.bf16.msra.mxu0 0
    %1766 = vmatprep.subr.bf16.mxu0 0
    %1767 = vmatpush2.bf16.msra.mxu0 0
    %1768 = vmatprep.subr.bf16.mxu0 0
    %1769 = vmatpush2.bf16.msra.mxu0 0
    %1770 = vmatprep.subr.bf16.mxu0 0
    %1771 = vmatpush2.bf16.msra.mxu0 0
    %1772 = vmatprep.subr.bf16.mxu0 0
    %1773 = vmatpush2.bf16.msra.mxu0 0
    %1774 = vmatprep.subr.bf16.mxu0 0
    %1775 = vmatpush2.bf16.msra.mxu0 0
    %1776 = vmatprep.subr.bf16.mxu0 0
    %1777 = vmatpush2.bf16.msra.mxu0 0
    %1778 = vmatprep.subr.bf16.mxu0 0
    %1779 = vmatpush2.bf16.msra.mxu0 0
    %1780 = vmatprep.mubr.bf16.mxu0 0
    %1781 = vmatmul.mubr.bf16.gmra.mxu0 %v1746
    %v1782 = vpop.f32.mrf.mxu0
    %v1783 = vadd.f32 0.0, %v1782
    %v1784 = vpop.f32.mrf.mxu0
    %v1785 = vpop.f32.mrf.mxu0
    %v1786 = vadd.f32 0.0, %v1785
    %v1787 = vpop.f32.mrf.mxu0
    %1788 = vdwg.mxu0
    %v1789 = vpack.c.bf16 %v1786, %v1783
    %v1790 = vld [vmem:[%s1666 + $0x4] sm:$0xf]
    %v1792 = vsel %vm517, %v1789, 0
    %v1795 = vsel %vm411, %v1790, 0
    %1797 = vmatprep.subr.bf16.mxu0 0
    %1798 = vmatpush1.bf16.msra.mxu0 0
    %1799 = vmatprep.subr.bf16.mxu0 0
    %1800 = vmatpush1.bf16.msra.mxu0 0
    %1801 = vmatprep.subr.bf16.mxu0 0
    %1802 = vmatpush1.bf16.msra.mxu0 0
    %1803 = vmatprep.subr.bf16.mxu0 0
    %1804 = vmatpush1.bf16.msra.mxu0 0
    %1805 = vmatprep.subr.bf16.mxu0 0
    %1806 = vmatpush1.bf16.msra.mxu0 0
    %1807 = vmatprep.subr.bf16.mxu0 0
    %1808 = vmatpush1.bf16.msra.mxu0 0
    %1809 = vmatprep.subr.bf16.mxu0 0
    %1810 = vmatpush1.bf16.msra.mxu0 0
    %1811 = vmatprep.subr.bf16.mxu0 0
    %1812 = vmatpush1.bf16.msra.mxu0 %v1795
    %1813 = vmatprep.subr.bf16.mxu0 0
    %1814 = vmatpush2.bf16.msra.mxu0 0
    %1815 = vmatprep.subr.bf16.mxu0 0
    %1816 = vmatpush2.bf16.msra.mxu0 0
    %1817 = vmatprep.subr.bf16.mxu0 0
    %1818 = vmatpush2.bf16.msra.mxu0 0
    %1819 = vmatprep.subr.bf16.mxu0 0
    %1820 = vmatpush2.bf16.msra.mxu0 0
    %1821 = vmatprep.subr.bf16.mxu0 0
    %1822 = vmatpush2.bf16.msra.mxu0 0
    %1823 = vmatprep.subr.bf16.mxu0 0
    %1824 = vmatpush2.bf16.msra.mxu0 0
    %1825 = vmatprep.subr.bf16.mxu0 0
    %1826 = vmatpush2.bf16.msra.mxu0 0
    %1827 = vmatprep.subr.bf16.mxu0 0
    %1828 = vmatpush2.bf16.msra.mxu0 0
    %1829 = vmatprep.mubr.bf16.mxu0 0
    %1830 = vmatmul.mubr.bf16.gmra.mxu0 %v1792
    %v1831 = vpop.f32.mrf.mxu0
    %v1832 = vadd.f32 0.0, %v1831
    %v1833 = vpop.f32.mrf.mxu0
    %v1834 = vpop.f32.mrf.mxu0
    %v1835 = vadd.f32 0.0, %v1834
    %v1836 = vpop.f32.mrf.mxu0
    %1837 = vdwg.mxu0
    %v1839 = vsel %vm517, %v1665, 0
    %v1842 = vsel %vm411, %v1667, 0
    %1844 = vmatprep.subr.bf16.mxu0 0
    %1845 = vmatpush1.bf16.msra.mxu0 0
    %1846 = vmatprep.subr.bf16.mxu0 0
    %1847 = vmatpush1.bf16.msra.mxu0 0
    %1848 = vmatprep.subr.bf16.mxu0 0
    %1849 = vmatpush1.bf16.msra.mxu0 0
    %1850 = vmatprep.subr.bf16.mxu0 0
    %1851 = vmatpush1.bf16.msra.mxu0 0
    %1852 = vmatprep.subr.bf16.mxu0 0
    %1853 = vmatpush1.bf16.msra.mxu0 0
    %1854 = vmatprep.subr.bf16.mxu0 0
    %1855 = vmatpush1.bf16.msra.mxu0 0
    %1856 = vmatprep.subr.bf16.mxu0 0
    %1857 = vmatpush1.bf16.msra.mxu0 0
    %1858 = vmatprep.subr.bf16.mxu0 0
    %1859 = vmatpush1.bf16.msra.mxu0 %v1842
    %1860 = vmatprep.subr.bf16.mxu0 0
    %1861 = vmatpush2.bf16.msra.mxu0 0
    %1862 = vmatprep.subr.bf16.mxu0 0
    %1863 = vmatpush2.bf16.msra.mxu0 0
    %1864 = vmatprep.subr.bf16.mxu0 0
    %1865 = vmatpush2.bf16.msra.mxu0 0
    %1866 = vmatprep.subr.bf16.mxu0 0
    %1867 = vmatpush2.bf16.msra.mxu0 0
    %1868 = vmatprep.subr.bf16.mxu0 0
    %1869 = vmatpush2.bf16.msra.mxu0 0
    %1870 = vmatprep.subr.bf16.mxu0 0
    %1871 = vmatpush2.bf16.msra.mxu0 0
    %1872 = vmatprep.subr.bf16.mxu0 0
    %1873 = vmatpush2.bf16.msra.mxu0 0
    %1874 = vmatprep.subr.bf16.mxu0 0
    %1875 = vmatpush2.bf16.msra.mxu0 0
    %1876 = vmatprep.mubr.bf16.mxu0 0
    %1877 = vmatmul.mubr.bf16.gmra.mxu0 %v1839
    %v1878 = vpop.f32.mrf.mxu0
    %v1879 = vadd.f32 %v1832, %v1878
    %v1880 = vpop.f32.mrf.mxu0
    %v1881 = vpop.f32.mrf.mxu0
    %v1882 = vadd.f32 %v1835, %v1881
    %v1883 = vpop.f32.mrf.mxu0
    %1884 = vdwg.mxu0
    %1885 = vrot.lane.b32.xlu0 %v1544, 112
    %v1886 = vpop.permute.xlu0 %1885
    %1887 = vrot.lane.b32.xlu0 %v1544, 80
    %v1888 = vpop.permute.xlu0 %1887
    %v1890 = vsel %vm517, %v1886, 0
    %v1893 = vsel %vm517, %v1888, 0
    %1895 = vmatprep.subr.bf16.mxu0 0
    %1896 = vmatpush1.bf16.xpose.msra.mxu0 0
    %1897 = vmatprep.subr.bf16.mxu0 0
    %1898 = vmatpush1.bf16.xpose.msra.mxu0 0
    %1899 = vmatprep.subr.bf16.mxu0 0
    %1900 = vmatpush1.bf16.xpose.msra.mxu0 0
    %1901 = vmatprep.subr.bf16.mxu0 0
    %1902 = vmatpush1.bf16.xpose.msra.mxu0 0
    %1903 = vmatprep.subr.bf16.mxu0 0
    %1904 = vmatpush1.bf16.xpose.msra.mxu0 0
    %1905 = vmatprep.subr.bf16.mxu0 0
    %1906 = vmatpush1.bf16.xpose.msra.mxu0 0
    %1907 = vmatprep.subr.bf16.mxu0 0
    %1908 = vmatpush1.bf16.xpose.msra.mxu0 0
    %1909 = vmatprep.subr.bf16.mxu0 0
    %1910 = vmatpush1.bf16.xpose.msra.mxu0 %v1893
    %1911 = vmatprep.subr.bf16.mxu0 0
    %1912 = vmatpush2.bf16.xpose.msra.mxu0 0
    %1913 = vmatprep.subr.bf16.mxu0 0
    %1914 = vmatpush2.bf16.xpose.msra.mxu0 0
    %1915 = vmatprep.subr.bf16.mxu0 0
    %1916 = vmatpush2.bf16.xpose.msra.mxu0 0
    %1917 = vmatprep.subr.bf16.mxu0 0
    %1918 = vmatpush2.bf16.xpose.msra.mxu0 0
    %1919 = vmatprep.subr.bf16.mxu0 0
    %1920 = vmatpush2.bf16.xpose.msra.mxu0 0
    %1921 = vmatprep.subr.bf16.mxu0 0
    %1922 = vmatpush2.bf16.xpose.msra.mxu0 0
    %1923 = vmatprep.subr.bf16.mxu0 0
    %1924 = vmatpush2.bf16.xpose.msra.mxu0 0
    %1925 = vmatprep.subr.bf16.mxu0 0
    %1926 = vmatpush2.bf16.xpose.msra.mxu0 0
    %1927 = vmatprep.mubr.bf16.mxu0 0
    %1928 = vmatmul.mubr.bf16.gmra.mxu0 %v1890
    %v1929 = vpop.f32.mrf.mxu0
    %v1930 = vadd.f32 %v443, %v1929
    %v1931 = vpop.f32.mrf.mxu0
    %v1932 = vpop.f32.mrf.mxu0
    %v1933 = vadd.f32 %v444, %v1932
    %v1934 = vpop.f32.mrf.mxu0
    %1935 = vdwg.mxu0
    %v1936 = vsel %vm565, %v1930, -inf
    %1937 = vmax.xlane.f32.xlu0 %v1936
    %v1938 = vpop.xlane.xlu0 %1937
    %v1939 = vsel %vm565, %v1933, -inf
    %1940 = vmax.xlane.f32.xlu0 %v1939
    %v1941 = vpop.xlane.xlu0 %1940
    %v1942 = vsub.f32 %v1930, %v1938
    %v1943 = vsub.f32 %v1933, %v1941
    %v1944 = vmul.f32 %v1942, 1.442695
    %v1945 = vpow.pop %v1944
    %v1946 = vmul.f32 %v1943, 1.442695
    %v1947 = vpow.pop %v1946
    %v1948 = vsel %vm565, %v1945, 0.0
    %1949 = vadd.xlane.f32.xlu0 %v1948
    %v1950 = vpop.xlane.xlu0 %1949
    %v1951 = vsel %vm565, %v1947, 0.0
    %1952 = vadd.xlane.f32.xlu0 %v1951
    %v1953 = vpop.xlane.xlu0 %1952
    %v1954 = vrcp.pop %v1950
    %v1955 = vrcp.pop %v1953
    %v1956 = vmul.f32 %v1945, %v1954
    %v1957 = vmul.f32 %v1947, %v1955
    %v1958 = vpack.c.bf16 %v1957, %v1956
    %1959 = vrot.lane.b32.xlu0 %v1544, 48
    %v1960 = vpop.permute.xlu0 %1959
    %v1963 = vsel %vm565, %v1958, 0
    %1965 = vmatprep.subr.bf16.mxu0 0
    %1966 = vmatpush1.bf16.msra.mxu0 0
    %1967 = vmatprep.subr.bf16.mxu0 0
    %1968 = vmatpush1.bf16.msra.mxu0 0
    %1969 = vmatprep.subr.bf16.mxu0 0
    %1970 = vmatpush1.bf16.msra.mxu0 0
    %1971 = vmatprep.subr.bf16.mxu0 0
    %1972 = vmatpush1.bf16.msra.mxu0 0
    %1973 = vmatprep.subr.bf16.mxu0 0
    %1974 = vmatpush1.bf16.msra.mxu0 0
    %1975 = vmatprep.subr.bf16.mxu0 0
    %1976 = vmatpush1.bf16.msra.mxu0 0
    %1977 = vmatprep.subr.bf16.mxu0 0
    %1978 = vmatpush1.bf16.msra.mxu0 0
    %1979 = vmatprep.subr.bf16.mxu0 0
    %1980 = vmatpush1.bf16.msra.mxu0 %v1960
    %1981 = vmatprep.subr.bf16.mxu0 0
    %1982 = vmatpush2.bf16.msra.mxu0 0
    %1983 = vmatprep.subr.bf16.mxu0 0
    %1984 = vmatpush2.bf16.msra.mxu0 0
    %1985 = vmatprep.subr.bf16.mxu0 0
    %1986 = vmatpush2.bf16.msra.mxu0 0
    %1987 = vmatprep.subr.bf16.mxu0 0
    %1988 = vmatpush2.bf16.msra.mxu0 0
    %1989 = vmatprep.subr.bf16.mxu0 0
    %1990 = vmatpush2.bf16.msra.mxu0 0
    %1991 = vmatprep.subr.bf16.mxu0 0
    %1992 = vmatpush2.bf16.msra.mxu0 0
    %1993 = vmatprep.subr.bf16.mxu0 0
    %1994 = vmatpush2.bf16.msra.mxu0 0
    %1995 = vmatprep.subr.bf16.mxu0 0
    %1996 = vmatpush2.bf16.msra.mxu0 0
    %1997 = vmatprep.mubr.bf16.mxu0 0
    %1998 = vmatmul.mubr.bf16.gmra.mxu0 %v1963
    %v1999 = vpop.f32.mrf.mxu0
    %v2000 = vadd.f32 0.0, %v1999
    %v2001 = vpop.f32.mrf.mxu0
    %v2002 = vpop.f32.mrf.mxu0
    %v2003 = vadd.f32 0.0, %v2002
    %v2004 = vpop.f32.mrf.mxu0
    %2005 = vdwg.mxu0
    %v2006 = vpack.c.bf16 %v2003, %v2000
    %v2007 = vld [vmem:[%s1666 + $0x8] sm:$0xf]
    %v2009 = vsel %vm517, %v2006, 0
    %v2012 = vsel %vm411, %v2007, 0
    %2014 = vmatprep.subr.bf16.mxu0 0
    %2015 = vmatpush1.bf16.msra.mxu0 0
    %2016 = vmatprep.subr.bf16.mxu0 0
    %2017 = vmatpush1.bf16.msra.mxu0 0
    %2018 = vmatprep.subr.bf16.mxu0 0
    %2019 = vmatpush1.bf16.msra.mxu0 0
    %2020 = vmatprep.subr.bf16.mxu0 0
    %2021 = vmatpush1.bf16.msra.mxu0 0
    %2022 = vmatprep.subr.bf16.mxu0 0
    %2023 = vmatpush1.bf16.msra.mxu0 0
    %2024 = vmatprep.subr.bf16.mxu0 0
    %2025 = vmatpush1.bf16.msra.mxu0 0
    %2026 = vmatprep.subr.bf16.mxu0 0
    %2027 = vmatpush1.bf16.msra.mxu0 0
    %2028 = vmatprep.subr.bf16.mxu0 0
    %2029 = vmatpush1.bf16.msra.mxu0 %v2012
    %2030 = vmatprep.subr.bf16.mxu0 0
    %2031 = vmatpush2.bf16.msra.mxu0 0
    %2032 = vmatprep.subr.bf16.mxu0 0
    %2033 = vmatpush2.bf16.msra.mxu0 0
    %2034 = vmatprep.subr.bf16.mxu0 0
    %2035 = vmatpush2.bf16.msra.mxu0 0
    %2036 = vmatprep.subr.bf16.mxu0 0
    %2037 = vmatpush2.bf16.msra.mxu0 0
    %2038 = vmatprep.subr.bf16.mxu0 0
    %2039 = vmatpush2.bf16.msra.mxu0 0
    %2040 = vmatprep.subr.bf16.mxu0 0
    %2041 = vmatpush2.bf16.msra.mxu0 0
    %2042 = vmatprep.subr.bf16.mxu0 0
    %2043 = vmatpush2.bf16.msra.mxu0 0
    %2044 = vmatprep.subr.bf16.mxu0 0
    %2045 = vmatpush2.bf16.msra.mxu0 0
    %2046 = vmatprep.mubr.bf16.mxu0 0
    %2047 = vmatmul.mubr.bf16.gmra.mxu0 %v2009
    %v2048 = vpop.f32.mrf.mxu0
    %v2049 = vadd.f32 0.0, %v2048
    %v2050 = vpop.f32.mrf.mxu0
    %v2051 = vpop.f32.mrf.mxu0
    %v2052 = vadd.f32 0.0, %v2051
    %v2053 = vpop.f32.mrf.mxu0
    %2054 = vdwg.mxu0
    %v2055 = vadd.f32 %v1879, %v2049
    %v2056 = vadd.f32 %v1882, %v2052
    %2057 = vrot.lane.b32.xlu0 %v1544, 104
    %v2058 = vpop.permute.xlu0 %2057
    %2059 = vrot.lane.b32.xlu0 %v1544, 72
    %v2060 = vpop.permute.xlu0 %2059
    %v2062 = vsel %vm517, %v2058, 0
    %v2065 = vsel %vm517, %v2060, 0
    %2067 = vmatprep.subr.bf16.mxu0 0
    %2068 = vmatpush1.bf16.xpose.msra.mxu0 0
    %2069 = vmatprep.subr.bf16.mxu0 0
    %2070 = vmatpush1.bf16.xpose.msra.mxu0 0
    %2071 = vmatprep.subr.bf16.mxu0 0
    %2072 = vmatpush1.bf16.xpose.msra.mxu0 0
    %2073 = vmatprep.subr.bf16.mxu0 0
    %2074 = vmatpush1.bf16.xpose.msra.mxu0 0
    %2075 = vmatprep.subr.bf16.mxu0 0
    %2076 = vmatpush1.bf16.xpose.msra.mxu0 0
    %2077 = vmatprep.subr.bf16.mxu0 0
    %2078 = vmatpush1.bf16.xpose.msra.mxu0 0
    %2079 = vmatprep.subr.bf16.mxu0 0
    %2080 = vmatpush1.bf16.xpose.msra.mxu0 0
    %2081 = vmatprep.subr.bf16.mxu0 0
    %2082 = vmatpush1.bf16.xpose.msra.mxu0 %v2065
    %2083 = vmatprep.subr.bf16.mxu0 0
    %2084 = vmatpush2.bf16.xpose.msra.mxu0 0
    %2085 = vmatprep.subr.bf16.mxu0 0
    %2086 = vmatpush2.bf16.xpose.msra.mxu0 0
    %2087 = vmatprep.subr.bf16.mxu0 0
    %2088 = vmatpush2.bf16.xpose.msra.mxu0 0
    %2089 = vmatprep.subr.bf16.mxu0 0
    %2090 = vmatpush2.bf16.xpose.msra.mxu0 0
    %2091 = vmatprep.subr.bf16.mxu0 0
    %2092 = vmatpush2.bf16.xpose.msra.mxu0 0
    %2093 = vmatprep.subr.bf16.mxu0 0
    %2094 = vmatpush2.bf16.xpose.msra.mxu0 0
    %2095 = vmatprep.subr.bf16.mxu0 0
    %2096 = vmatpush2.bf16.xpose.msra.mxu0 0
    %2097 = vmatprep.subr.bf16.mxu0 0
    %2098 = vmatpush2.bf16.xpose.msra.mxu0 0
    %2099 = vmatprep.mubr.bf16.mxu0 0
    %2100 = vmatmul.mubr.bf16.gmra.mxu0 %v2062
    %v2101 = vpop.f32.mrf.mxu0
    %v2102 = vadd.f32 %v443, %v2101
    %v2103 = vpop.f32.mrf.mxu0
    %v2104 = vpop.f32.mrf.mxu0
    %v2105 = vadd.f32 %v444, %v2104
    %v2106 = vpop.f32.mrf.mxu0
    %2107 = vdwg.mxu0
    %v2108 = vsel %vm565, %v2102, -inf
    %2109 = vmax.xlane.f32.xlu0 %v2108
    %v2110 = vpop.xlane.xlu0 %2109
    %v2111 = vsel %vm565, %v2105, -inf
    %2112 = vmax.xlane.f32.xlu0 %v2111
    %v2113 = vpop.xlane.xlu0 %2112
    %v2114 = vsub.f32 %v2102, %v2110
    %v2115 = vsub.f32 %v2105, %v2113
    %v2116 = vmul.f32 %v2114, 1.442695
    %v2117 = vpow.pop %v2116
    %v2118 = vmul.f32 %v2115, 1.442695
    %v2119 = vpow.pop %v2118
    %v2120 = vsel %vm565, %v2117, 0.0
    %2121 = vadd.xlane.f32.xlu0 %v2120
    %v2122 = vpop.xlane.xlu0 %2121
    %v2123 = vsel %vm565, %v2119, 0.0
    %2124 = vadd.xlane.f32.xlu0 %v2123
    %v2125 = vpop.xlane.xlu0 %2124
    %v2126 = vrcp.pop %v2122
    %v2127 = vrcp.pop %v2125
    %v2128 = vmul.f32 %v2117, %v2126
    %v2129 = vmul.f32 %v2119, %v2127
    %v2130 = vpack.c.bf16 %v2129, %v2128
    %2131 = vrot.lane.b32.xlu0 %v1544, 40
    %v2132 = vpop.permute.xlu0 %2131
    %v2135 = vsel %vm565, %v2130, 0
    %2137 = vmatprep.subr.bf16.mxu0 0
    %2138 = vmatpush1.bf16.msra.mxu0 0
    %2139 = vmatprep.subr.bf16.mxu0 0
    %2140 = vmatpush1.bf16.msra.mxu0 0
    %2141 = vmatprep.subr.bf16.mxu0 0
    %2142 = vmatpush1.bf16.msra.mxu0 0
    %2143 = vmatprep.subr.bf16.mxu0 0
    %2144 = vmatpush1.bf16.msra.mxu0 0
    %2145 = vmatprep.subr.bf16.mxu0 0
    %2146 = vmatpush1.bf16.msra.mxu0 0
    %2147 = vmatprep.subr.bf16.mxu0 0
    %2148 = vmatpush1.bf16.msra.mxu0 0
    %2149 = vmatprep.subr.bf16.mxu0 0
    %2150 = vmatpush1.bf16.msra.mxu0 0
    %2151 = vmatprep.subr.bf16.mxu0 0
    %2152 = vmatpush1.bf16.msra.mxu0 %v2132
    %2153 = vmatprep.subr.bf16.mxu0 0
    %2154 = vmatpush2.bf16.msra.mxu0 0
    %2155 = vmatprep.subr.bf16.mxu0 0
    %2156 = vmatpush2.bf16.msra.mxu0 0
    %2157 = vmatprep.subr.bf16.mxu0 0
    %2158 = vmatpush2.bf16.msra.mxu0 0
    %2159 = vmatprep.subr.bf16.mxu0 0
    %2160 = vmatpush2.bf16.msra.mxu0 0
    %2161 = vmatprep.subr.bf16.mxu0 0
    %2162 = vmatpush2.bf16.msra.mxu0 0
    %2163 = vmatprep.subr.bf16.mxu0 0
    %2164 = vmatpush2.bf16.msra.mxu0 0
    %2165 = vmatprep.subr.bf16.mxu0 0
    %2166 = vmatpush2.bf16.msra.mxu0 0
    %2167 = vmatprep.subr.bf16.mxu0 0
    %2168 = vmatpush2.bf16.msra.mxu0 0
    %2169 = vmatprep.mubr.bf16.mxu0 0
    %2170 = vmatmul.mubr.bf16.gmra.mxu0 %v2135
    %v2171 = vpop.f32.mrf.mxu0
    %v2172 = vadd.f32 0.0, %v2171
    %v2173 = vpop.f32.mrf.mxu0
    %v2174 = vpop.f32.mrf.mxu0
    %v2175 = vadd.f32 0.0, %v2174
    %v2176 = vpop.f32.mrf.mxu0
    %2177 = vdwg.mxu0
    %v2178 = vpack.c.bf16 %v2175, %v2172
    %v2179 = vld [vmem:[%s1666 + $0xc] sm:$0xf]
    %v2181 = vsel %vm517, %v2178, 0
    %v2184 = vsel %vm411, %v2179, 0
    %2186 = vmatprep.subr.bf16.mxu0 0
    %2187 = vmatpush1.bf16.msra.mxu0 0
    %2188 = vmatprep.subr.bf16.mxu0 0
    %2189 = vmatpush1.bf16.msra.mxu0 0
    %2190 = vmatprep.subr.bf16.mxu0 0
    %2191 = vmatpush1.bf16.msra.mxu0 0
    %2192 = vmatprep.subr.bf16.mxu0 0
    %2193 = vmatpush1.bf16.msra.mxu0 0
    %2194 = vmatprep.subr.bf16.mxu0 0
    %2195 = vmatpush1.bf16.msra.mxu0 0
    %2196 = vmatprep.subr.bf16.mxu0 0
    %2197 = vmatpush1.bf16.msra.mxu0 0
    %2198 = vmatprep.subr.bf16.mxu0 0
    %2199 = vmatpush1.bf16.msra.mxu0 0
    %2200 = vmatprep.subr.bf16.mxu0 0
    %2201 = vmatpush1.bf16.msra.mxu0 %v2184
    %2202 = vmatprep.subr.bf16.mxu0 0
    %2203 = vmatpush2.bf16.msra.mxu0 0
    %2204 = vmatprep.subr.bf16.mxu0 0
    %2205 = vmatpush2.bf16.msra.mxu0 0
    %2206 = vmatprep.subr.bf16.mxu0 0
    %2207 = vmatpush2.bf16.msra.mxu0 0
    %2208 = vmatprep.subr.bf16.mxu0 0
    %2209 = vmatpush2.bf16.msra.mxu0 0
    %2210 = vmatprep.subr.bf16.mxu0 0
    %2211 = vmatpush2.bf16.msra.mxu0 0
    %2212 = vmatprep.subr.bf16.mxu0 0
    %2213 = vmatpush2.bf16.msra.mxu0 0
    %2214 = vmatprep.subr.bf16.mxu0 0
    %2215 = vmatpush2.bf16.msra.mxu0 0
    %2216 = vmatprep.subr.bf16.mxu0 0
    %2217 = vmatpush2.bf16.msra.mxu0 0
    %2218 = vmatprep.mubr.bf16.mxu0 0
    %2219 = vmatmul.mubr.bf16.gmra.mxu0 %v2181
    %v2220 = vpop.f32.mrf.mxu0
    %v2221 = vadd.f32 0.0, %v2220
    %v2222 = vpop.f32.mrf.mxu0
    %v2223 = vpop.f32.mrf.mxu0
    %v2224 = vadd.f32 0.0, %v2223
    %v2225 = vpop.f32.mrf.mxu0
    %2226 = vdwg.mxu0
    %v2227 = vadd.f32 %v2055, %v2221
    %v2228 = vadd.f32 %v2056, %v2224
    %v2229 = vadd.f32 %v1426, %v2227
    %v2230 = vadd.f32 %v1427, %v2228
    %s2231 = scalar_lea.vmem %s11, 1
    %v2232 = vld [vmem:[%s2231] sm:$0x1]
    %v2234 = vlaneseq
    %v2235 = vshrl.u32 %v2234, 7
    %v2236 = vsub.s32 0, %v2235
    %v2237 = vrot.slane %v2232, %v2236
    %v2239 = vadd.f32 %v2229, %v2237
    %v2240 = vadd.f32 %v2230, %v2237
    %s2241 = scalar_lea.vmem %s12, 1
    %v2242 = vld [vmem:[%s2241] sm:$0x1]
    %s2243 = scalar_lea.vmem %s13, 1
    %v2244 = vld [vmem:[%s2243] sm:$0x1]
    %v2245 = vsel %vm107, %v2239, 0.0
    %2246 = vadd.xlane.f32.xlu0 %v2245
    %v2247 = vpop.xlane.xlu0 %2246
    %v2248 = vsel %vm107, %v2240, 0.0
    %2249 = vadd.xlane.f32.xlu0 %v2248
    %v2250 = vpop.xlane.xlu0 %2249
    %v2251 = vmul.f32 %v2247, %v1218
    %v2252 = vmul.f32 %v2250, %v1218
    %v2253 = vsub.f32 %v2239, %v2251
    %v2254 = vsub.f32 %v2240, %v2252
    %v2255 = vmul.f32 %v2253, %v2253
    %v2256 = vmul.f32 %v2254, %v2254
    %v2257 = vsel %vm107, %v2255, 0.0
    %2258 = vadd.xlane.f32.xlu0 %v2257
    %v2259 = vpop.xlane.xlu0 %2258
    %v2260 = vsel %vm107, %v2256, 0.0
    %2261 = vadd.xlane.f32.xlu0 %v2260
    %v2262 = vpop.xlane.xlu0 %2261
    %v2263 = vmul.f32 %v2259, %v1218
    %v2264 = vmul.f32 %v2262, %v1218
    %v2265 = vadd.f32 %v2263, 1e-06
    %v2266 = vadd.f32 %v2264, 1e-06
    %v2267 = vrsqrt.pop %v2265
    %v2268 = vrsqrt.pop %v2266
    %v2269 = vmul.f32 %v2253, %v2267
    %v2270 = vmul.f32 %v2254, %v2268
    %v2272 = vlaneseq
    %v2273 = vshrl.u32 %v2272, 7
    %v2274 = vsub.s32 0, %v2273
    %v2275 = vrot.slane %v2242, %v2274
    %v2277 = vmul.f32 %v2269, %v2275
    %v2278 = vmul.f32 %v2270, %v2275
    %v2280 = vlaneseq
    %v2281 = vshrl.u32 %v2280, 7
    %v2282 = vsub.s32 0, %v2281
    %v2283 = vrot.slane %v2244, %v2282
    %v2285 = vadd.f32 %v2277, %v2283
    %v2286 = vadd.f32 %v2278, %v2283
    %v2287 = vpack.c.bf16 %v2286, %v2285
    %s2288 = scalar_lea.vmem [#allocation5], 16
    %v2289 = vld [vmem:[%s2288] sm:$0xf]
    %v2290 = vld [vmem:[%s2288 + $0x4] sm:$0xf]
    %v2291 = vld [vmem:[%s2288 + $0x8] sm:$0xf]
    %v2292 = vld [vmem:[%s2288 + $0xc] sm:$0xf]
    %s2293 = scalar_lea.vmem %s15, 1
    %v2294 = vld [vmem:[%s2293] sm:$0x1]
    %v2296 = vlaneseq
    %v2297 = vshrl.u32 %v2296, 7
    %v2298 = vsub.s32 0, %v2297
    %v2299 = vrot.slane %v2294, %v2298
    %v2305 = vunpack.c.l.b16 %v2289
    %v2306 = vunpack.c.l.b16 %v2290
    %v2307 = vunpack.c.l.b16 %v2291
    %v2308 = vunpack.c.l.b16 %v2292
    %v2309 = vpack.c.b16 %v2306, %v2305
    %v2310 = vpack.c.b16 %v2308, %v2307
    %v2314 = vsel %vm107, %v2287, 0
    %2316 = vmatprep.subr.bf16.mxu0 0
    %2317 = vmatpush1.bf16.msra.mxu0 0
    %2318 = vmatprep.subr.bf16.mxu0 0
    %2319 = vmatpush1.bf16.msra.mxu0 0
    %2320 = vmatprep.subr.bf16.mxu0 0
    %2321 = vmatpush1.bf16.msra.mxu0 0
    %2322 = vmatprep.subr.bf16.mxu0 0
    %2323 = vmatpush1.bf16.msra.mxu0 0
    %2324 = vmatprep.subr.bf16.mxu0 0
    %2325 = vmatpush1.bf16.msra.mxu0 0
    %2326 = vmatprep.subr.bf16.mxu0 0
    %2327 = vmatpush1.bf16.msra.mxu0 0
    %2328 = vmatprep.subr.bf16.mxu0 0
    %2329 = vmatpush1.bf16.msra.mxu0 %v2310
    %2330 = vmatprep.subr.bf16.mxu0 0
    %2331 = vmatpush1.bf16.msra.mxu0 %v2309
    %2332 = vmatprep.subr.bf16.mxu0 0
    %2333 = vmatpush2.bf16.msra.mxu0 0
    %2334 = vmatprep.subr.bf16.mxu0 0
    %2335 = vmatpush2.bf16.msra.mxu0 0
    %2336 = vmatprep.subr.bf16.mxu0 0
    %2337 = vmatpush2.bf16.msra.mxu0 0
    %2338 = vmatprep.subr.bf16.mxu0 0
    %2339 = vmatpush2.bf16.msra.mxu0 0
    %2340 = vmatprep.subr.bf16.mxu0 0
    %2341 = vmatpush2.bf16.msra.mxu0 0
    %2342 = vmatprep.subr.bf16.mxu0 0
    %2343 = vmatpush2.bf16.msra.mxu0 0
    %2344 = vmatprep.subr.bf16.mxu0 0
    %2345 = vmatpush2.bf16.msra.mxu0 0
    %2346 = vmatprep.subr.bf16.mxu0 0
    %2347 = vmatpush2.bf16.msra.mxu0 0
    %2348 = vmatprep.mubr.bf16.mxu0 0
    %2349 = vmatmul.mubr.bf16.gmra.mxu0 %v2314
    %v2350 = vpop.f32.mrf.mxu0
    %v2351 = vadd.f32 %v2299, %v2350
    %v2352 = vpop.f32.mrf.mxu0
    %v2353 = vpop.f32.mrf.mxu0
    %v2354 = vadd.f32 %v2299, %v2353
    %v2355 = vpop.f32.mrf.mxu0
    %2356 = vdwg.mxu0
    %v2357 = vmul.f32 %v2351, 0.5
    %v2358 = vmul.f32 %v2354, 0.5
    %v2359 = vmul.f32 %v2351, 0.044715
    %v2360 = vmul.f32 %v2354, 0.044715
    %v2361 = vmul.f32 %v2359, %v2351
    %v2362 = vmul.f32 %v2360, %v2354
    %v2363 = vmul.f32 %v2361, %v2351
    %v2364 = vmul.f32 %v2362, %v2354
    %v2365 = vadd.f32 %v2351, %v2363
    %v2366 = vadd.f32 %v2354, %v2364
    %v2367 = vmul.f32 %v2365, 0.7978846
    %v2368 = vmul.f32 %v2366, 0.7978846
    %v2369 = vtanh.pop %v2367
    %v2370 = vtanh.pop %v2368
    %v2371 = vadd.f32 %v2369, 1.0
    %v2372 = vadd.f32 %v2370, 1.0
    %v2373 = vmul.f32 %v2357, %v2371
    %v2374 = vmul.f32 %v2358, %v2372
    %v2375 = vpack.c.bf16 %v2374, %v2373
    %s2376 = scalar_lea.vmem %s16, 32
    %v2377 = vld [vmem:[%s2376] sm:$0xf]
    %v2378 = vld [vmem:[%s2376 + $0x4] sm:$0xf]
    %v2379 = vld [vmem:[%s2376 + $0x8] sm:$0xf]
    %v2380 = vld [vmem:[%s2376 + $0xc] sm:$0xf]
    %v2381 = vld [vmem:[%s2376 + $0x10] sm:$0xf]
    %v2382 = vld [vmem:[%s2376 + $0x14] sm:$0xf]
    %v2383 = vld [vmem:[%s2376 + $0x18] sm:$0xf]
    %v2384 = vld [vmem:[%s2376 + $0x1c] sm:$0xf]
    %s2385 = scalar_lea.vmem %s17, 1
    %v2386 = vld [vmem:[%s2385] sm:$0x1]
    %v2388 = vlaneseq
    %v2389 = vshrl.u32 %v2388, 7
    %v2390 = vsub.s32 0, %v2389
    %v2391 = vrot.slane %v2386, %v2390
    %v2401 = vunpack.c.l.b16 %v2377
    %v2402 = vunpack.c.l.b16 %v2378
    %v2403 = vunpack.c.l.b16 %v2379
    %v2404 = vunpack.c.l.b16 %v2380
    %v2405 = vunpack.c.l.b16 %v2381
    %v2406 = vunpack.c.l.b16 %v2382
    %v2407 = vunpack.c.l.b16 %v2383
    %v2408 = vunpack.c.l.b16 %v2384
    %v2409 = vpack.c.b16 %v2402, %v2401
    %v2410 = vpack.c.b16 %v2404, %v2403
    %v2411 = vpack.c.b16 %v2406, %v2405
    %v2412 = vpack.c.b16 %v2408, %v2407
    %v2418 = vsel %vm1381, %v2375, 0
    %2420 = vmatprep.subr.bf16.mxu0 0
    %2421 = vmatpush1.bf16.msra.mxu0 0
    %2422 = vmatprep.subr.bf16.mxu0 0
    %2423 = vmatpush1.bf16.msra.mxu0 0
    %2424 = vmatprep.subr.bf16.mxu0 0
    %2425 = vmatpush1.bf16.msra.mxu0 0
    %2426 = vmatprep.subr.bf16.mxu0 0
    %2427 = vmatpush1.bf16.msra.mxu0 0
    %2428 = vmatprep.subr.bf16.mxu0 0
    %2429 = vmatpush1.bf16.msra.mxu0 %v2412
    %2430 = vmatprep.subr.bf16.mxu0 0
    %2431 = vmatpush1.bf16.msra.mxu0 %v2411
    %2432 = vmatprep.subr.bf16.mxu0 0
    %2433 = vmatpush1.bf16.msra.mxu0 %v2410
    %2434 = vmatprep.subr.bf16.mxu0 0
    %2435 = vmatpush1.bf16.msra.mxu0 %v2409
    %2436 = vmatprep.subr.bf16.mxu0 0
    %2437 = vmatpush2.bf16.msra.mxu0 0
    %2438 = vmatprep.subr.bf16.mxu0 0
    %2439 = vmatpush2.bf16.msra.mxu0 0
    %2440 = vmatprep.subr.bf16.mxu0 0
    %2441 = vmatpush2.bf16.msra.mxu0 0
    %2442 = vmatprep.subr.bf16.mxu0 0
    %2443 = vmatpush2.bf16.msra.mxu0 0
    %2444 = vmatprep.subr.bf16.mxu0 0
    %2445 = vmatpush2.bf16.msra.mxu0 0
    %2446 = vmatprep.subr.bf16.mxu0 0
    %2447 = vmatpush2.bf16.msra.mxu0 0
    %2448 = vmatprep.subr.bf16.mxu0 0
    %2449 = vmatpush2.bf16.msra.mxu0 0
    %2450 = vmatprep.subr.bf16.mxu0 0
    %2451 = vmatpush2.bf16.msra.mxu0 0
    %2452 = vmatprep.mubr.bf16.mxu0 0
    %2453 = vmatmul.mubr.bf16.gmra.mxu0 %v2418
    %v2454 = vpop.f32.mrf.mxu0
    %v2455 = vadd.f32 %v2391, %v2454
    %v2456 = vpop.f32.mrf.mxu0
    %v2457 = vpop.f32.mrf.mxu0
    %v2458 = vadd.f32 %v2391, %v2457
    %v2459 = vpop.f32.mrf.mxu0
    %2460 = vdwg.mxu0
    %v2461 = vadd.f32 %v2239, %v2455
    %v2462 = vadd.f32 %v2240, %v2458
    %v2463 = vld [vmem:[%s18] sm:$0x1]
    %v2464 = vld [vmem:[%s19] sm:$0x1]
    %v2465 = vsel %vm107, %v2461, 0.0
    %2466 = vadd.xlane.f32.xlu0 %v2465
    %v2467 = vpop.xlane.xlu0 %2466
    %v2468 = vsel %vm107, %v2462, 0.0
    %2469 = vadd.xlane.f32.xlu0 %v2468
    %v2470 = vpop.xlane.xlu0 %2469
    %v2471 = vmul.f32 %v2467, %v1218
    %v2472 = vmul.f32 %v2470, %v1218
    %v2473 = vsub.f32 %v2461, %v2471
    %v2474 = vsub.f32 %v2462, %v2472
    %v2475 = vmul.f32 %v2473, %v2473
    %v2476 = vmul.f32 %v2474, %v2474
    %v2477 = vsel %vm107, %v2475, 0.0
    %2478 = vadd.xlane.f32.xlu0 %v2477
    %v2479 = vpop.xlane.xlu0 %2478
    %v2480 = vsel %vm107, %v2476, 0.0
    %2481 = vadd.xlane.f32.xlu0 %v2480
    %v2482 = vpop.xlane.xlu0 %2481
    %v2483 = vmul.f32 %v2479, %v1218
    %v2484 = vmul.f32 %v2482, %v1218
    %v2485 = vadd.f32 %v2483, 1e-06
    %v2486 = vadd.f32 %v2484, 1e-06
    %v2487 = vrsqrt.pop %v2485
    %v2488 = vrsqrt.pop %v2486
    %v2489 = vmul.f32 %v2473, %v2487
    %v2490 = vmul.f32 %v2474, %v2488
    %v2492 = vlaneseq
    %v2493 = vshrl.u32 %v2492, 7
    %v2494 = vsub.s32 0, %v2493
    %v2495 = vrot.slane %v2463, %v2494
    %v2497 = vmul.f32 %v2489, %v2495
    %v2498 = vmul.f32 %v2490, %v2495
    %v2500 = vlaneseq
    %v2501 = vshrl.u32 %v2500, 7
    %v2502 = vsub.s32 0, %v2501
    %v2503 = vrot.slane %v2464, %v2502
    %v2505 = vadd.f32 %v2497, %v2503
    %v2506 = vadd.f32 %v2498, %v2503
    %v2507 = vld [vmem:[%s20] sm:$0x1]
    %v2508 = vld [vmem:[#allocation4] sm:$0x1]
    %2510 = vset.pattern.permute.xlu0 0
    %2511 = vperm.xlu0 %2510, %v2508
    %v2512 = vpop.permute.xlu0 %2511
    %v2514 = vlaneseq
    %v2515 = vshrl.u32 %v2514, 7
    %v2516 = vsub.s32 0, %v2515
    %v2517 = vrot.slane %v2512, %v2516
    %v2519 = vsel %vm107, %v2507, 0
    %v2522 = vsel %vm107, %v2505, 0
    %v2525 = vsel %vm107, %v2506, 0
    %2527 = vmatprep.subr.mxu0 0.0
    %2528 = vmatpush1.xpose.msra.mxu0 0.0
    %2529 = vmatprep.subr.mxu0 0.0
    %2530 = vmatpush1.xpose.msra.mxu0 0.0
    %2531 = vmatprep.subr.mxu0 0.0
    %2532 = vmatpush1.xpose.msra.mxu0 0.0
    %2533 = vmatprep.subr.mxu0 0.0
    %2534 = vmatpush1.xpose.msra.mxu0 0.0
    %2535 = vmatprep.subr.mxu0 0.0
    %2536 = vmatpush1.xpose.msra.mxu0 0.0
    %2537 = vmatprep.subr.mxu0 0.0
    %2538 = vmatpush1.xpose.msra.mxu0 0.0
    %2539 = vmatprep.subr.mxu0 0.0
    %2540 = vmatpush1.xpose.msra.mxu0 0.0
    %2541 = vmatprep.subr.mxu0 0.0
    %2542 = vmatpush1.xpose.msra.mxu0 0.0
    %2543 = vmatprep.subr.mxu0 0.0
    %2544 = vmatpush1.xpose.msra.mxu0 0.0
    %2545 = vmatprep.subr.mxu0 0.0
    %2546 = vmatpush1.xpose.msra.mxu0 0.0
    %2547 = vmatprep.subr.mxu0 0.0
    %2548 = vmatpush1.xpose.msra.mxu0 0.0
    %2549 = vmatprep.subr.mxu0 0.0
    %2550 = vmatpush1.xpose.msra.mxu0 0.0
    %2551 = vmatprep.subr.mxu0 0.0
    %2552 = vmatpush1.xpose.msra.mxu0 0.0
    %2553 = vmatprep.subr.mxu0 0.0
    %2554 = vmatpush1.xpose.msra.mxu0 0.0
    %2555 = vmatprep.subr.mxu0 0.0
    %2556 = vmatpush1.xpose.msra.mxu0 %v2525
    %2557 = vmatprep.subr.mxu0 0.0
    %2558 = vmatpush1.xpose.msra.mxu0 %v2522
    %2559 = vmatprep.subr.mxu0 0.0
    %2560 = vmatpush2.xpose.msra.mxu0 0.0
    %2561 = vmatprep.subr.mxu0 0.0
    %2562 = vmatpush2.xpose.msra.mxu0 0.0
    %2563 = vmatprep.subr.mxu0 0.0
    %2564 = vmatpush2.xpose.msra.mxu0 0.0
    %2565 = vmatprep.subr.mxu0 0.0
    %2566 = vmatpush2.xpose.msra.mxu0 0.0
    %2567 = vmatprep.subr.mxu0 0.0
    %2568 = vmatpush2.xpose.msra.mxu0 0.0
    %2569 = vmatprep.subr.mxu0 0.0
    %2570 = vmatpush2.xpose.msra.mxu0 0.0
    %2571 = vmatprep.subr.mxu0 0.0
    %2572 = vmatpush2.xpose.msra.mxu0 0.0
    %2573 = vmatprep.subr.mxu0 0.0
    %2574 = vmatpush2.xpose.msra.mxu0 0.0
    %2575 = vmatprep.subr.mxu0 0.0
    %2576 = vmatpush2.xpose.msra.mxu0 0.0
    %2577 = vmatprep.subr.mxu0 0.0
    %2578 = vmatpush2.xpose.msra.mxu0 0.0
    %2579 = vmatprep.subr.mxu0 0.0
    %2580 = vmatpush2.xpose.msra.mxu0 0.0
    %2581 = vmatprep.subr.mxu0 0.0
    %2582 = vmatpush2.xpose.msra.mxu0 0.0
    %2583 = vmatprep.subr.mxu0 0.0
    %2584 = vmatpush2.xpose.msra.mxu0 0.0
    %2585 = vmatprep.subr.mxu0 0.0
    %2586 = vmatpush2.xpose.msra.mxu0 0.0
    %2587 = vmatprep.subr.mxu0 0.0
    %2588 = vmatpush2.xpose.msra.mxu0 0.0
    %2589 = vmatprep.subr.mxu0 0.0
    %2590 = vmatpush2.xpose.msra.mxu0 0.0
    %2591 = vmatprep.mubr.f32.mxu0 0.0
    %2592 = vmatmul.mubr.f32.gmra.mxu0 %v2519
    %v2593 = vpop.f32.mrf.mxu0
    %v2594 = vadd.f32 %v2517, %v2593
    %v2595 = vpop.f32.mrf.mxu0
    %2596 = vdwg.mxu0
    %v2597 = vxor.u32 %v2594, 2147483648
    %v2598 = vmul.f32 %v2597, 1.442695
    %v2599 = vpow.pop %v2598
    %v2600 = vadd.f32 %v2599, 1.0
    %v2601 = vrcp.pop %v2600
    %v2602 = vmul.f32 1.0, %v2601
    %v2603 = vld [vmem:[%s5] sm:$0x1]
    %v2604 = vmul.f32 %v2602, %v2603
    %vm2605 = vcmask 122880
    %2606 = vst.msk [vmem:[%s22] sm:$0x1] %vm2605, %v2604
    // Predicated region
    $region90: #{_lambda_.1} parent=1 // pred_check
      _
    $region91: #{_lambda_.1} parent=1 // pred_check_branch
      %2608 = sbr.rel (0) target = $region93
    $region92: #{_lambda_.1} parent=1 // pred_region
      _
    $region93: #{_lambda_.1} parent=1 // pred_fallthru
      _
    // Predicated region
    $region94: #{_lambda_.1} parent=1 // pred_check
      _
    $region95: #{_lambda_.1} parent=1 // pred_check_branch
      %2610 = sbr.rel (0) target = $region97
    $region96: #{_lambda_.1} parent=1 // pred_region
      _
    $region97: #{_lambda_.1} parent=1 // pred_fallthru
      _
    %2611 = vsyncpa [#allocation6], 1

</llo_original>
